<compile_context>
chip_gen: v5e
topology: v5e:2x2
jax: 0.10.0
libtpu: 0.0.40
codegen_flags: <defaults>
</compile_context>

<pallas_src>
import jax
import jax.numpy as jnp
from jax.experimental import pallas as pl

# ----------------------- scaled-down CLIP configuration -----------------------
BATCH = 2
CHANNELS = 3
IMAGE_SIZE = 16
PATCH = 8
VISION_HIDDEN = 64     # config.vision_config.hidden_size (scaled down)
VISION_HEADS = 4
VISION_LAYERS = 2
TEXT_HIDDEN = 32       # config.text_config.hidden_size (scaled down)
TEXT_HEADS = 2
TEXT_LAYERS = 2
MLP_RATIO = 4
TEXT_SEQ = 8
VOCAB = 64
EPS = 1e-5

NUM_PATCHES = (IMAGE_SIZE // PATCH) ** 2      # 4
IMG_SEQ = NUM_PATCHES + 1                     # +1 class token -> 5
CPP = CHANNELS * PATCH * PATCH                # flattened patch length = 192
V_ROWS = BATCH * IMG_SEQ                      # 10 stacked vision rows
T_ROWS = BATCH * TEXT_SEQ                     # 16 stacked text rows
OUT_SEQ = TEXT_SEQ + IMG_SEQ                  # 13
V_MLP = VISION_HIDDEN * MLP_RATIO             # 256
T_MLP = TEXT_HIDDEN * MLP_RATIO               # 128

# vision embedding slab row offsets: [patch_w | pos(+cls) tiled | preln_g | preln_b]
VE_PATCH = 0
VE_POS = CPP
VE_LNG = CPP + V_ROWS
VE_LNB = VE_LNG + 1
VE_ROWS = VE_LNB + 1                          # 204

# text/head slab row offsets: [tok | lin1_w | pos tiled | finln_g | finln_b | lin1_b]
TM_TOK = 0
TM_LIN1W = VOCAB
TM_POS = TM_LIN1W + VISION_HIDDEN
TM_FLNG = TM_POS + T_ROWS
TM_FLNB = TM_FLNG + 1
TM_LIN1B = TM_FLNB + 1
TM_ROWS = TM_LIN1B + 1                        # 147


# --------------------------- in-kernel building blocks -------------------------
def _layernorm(x, g, b):
    mean = jnp.mean(x, axis=-1, keepdims=True)
    var = jnp.mean((x - mean) ** 2, axis=-1, keepdims=True)
    return (x - mean) * jax.lax.rsqrt(var + EPS) * g + b


def _head_masks(d, num_heads):
    """Per-head lane masks, built ONCE per tower (hoisted out of layer loop)."""
    col = jax.lax.broadcasted_iota(jnp.int32, (1, d), 1)
    dh = d // num_heads
    return [jnp.where((col >= h * dh) & (col < (h + 1) * dh), 1.0, 0.0)
            for h in range(num_heads)]


def _block_bias(rows, seq, batch, causal):
    """Block-diagonal (per batch element) attention bias, optionally causal."""
    ri = jax.lax.broadcasted_iota(jnp.int32, (rows, rows), 0)
    ci = jax.lax.broadcasted_iota(jnp.int32, (rows, rows), 1)
    allowed = None
    for b in range(batch):
        lo, hi = b * seq, (b + 1) * seq
        blk = (ri >= lo) & (ri < hi) & (ci >= lo) & (ci < hi)
        allowed = blk if allowed is None else (allowed | blk)
    if causal:
        allowed = allowed & (ci <= ri)
    return jnp.where(allowed, 0.0, -1e9)


def _encoder_layer(x, attn_bias, head_masks, attn_w, vecs, mlp_w, fc1_b, l):
    """Pre-LN CLIP encoder layer on batch-stacked rows, fully VMEM/vreg resident.

    attn_w: (L,4,D,D) ref  -> [q,k,v,o] weights
    vecs:   (L,9,D)   ref  -> ln1_g, ln1_b, bq, bk, bv, o_b, ln2_g, ln2_b, fc2_b
    mlp_w:  (L,2,M,D) ref  -> [fc1_w^T, fc2_w]
    fc1_b:  (L,1,M)   ref
    """
    d = x.shape[-1]
    dh = d // len(head_masks)
    scale = dh ** -0.5

    ln1_g = vecs[l, 0:1, :]
    ln1_b = vecs[l, 1:2, :]
    bq = vecs[l, 2:3, :]
    bk = vecs[l, 3:4, :]
    bv = vecs[l, 4:5, :]
    o_b = vecs[l, 5:6, :]
    ln2_g = vecs[l, 6:7, :]
    ln2_b = vecs[l, 7:8, :]
    fc2_b = vecs[l, 8:9, :]

    h = _layernorm(x, ln1_g, ln1_b)
    q = (jnp.dot(h, attn_w[l, 0], preferred_element_type=jnp.float32) + bq) * scale
    k = jnp.dot(h, attn_w[l, 1], preferred_element_type=jnp.float32) + bk
    v = jnp.dot(h, attn_w[l, 2], preferred_element_type=jnp.float32) + bv

    # Per-head attention via lane masks; masking q alone is exact (the mask lives in
    # the contraction dimension).  Heads statically unrolled; no lane slices/concats.
    attn = jnp.zeros(x.shape, jnp.float32)
    for hm in head_masks:
        s = jax.lax.dot_general(q * hm, k, (((1,), (1,)), ((), ())),
                                preferred_element_type=jnp.float32)
        s = s + attn_bias
        s = s - jnp.max(s, axis=-1, keepdims=True)
        p = jnp.exp(s)
        p = p / jnp.sum(p, axis=-1, keepdims=True)
        attn = attn + jnp.dot(p, v * hm, preferred_element_type=jnp.float32)

    x = x + jnp.dot(attn, attn_w[l, 3], preferred_element_type=jnp.float32) + o_b

    h2 = _layernorm(x, ln2_g, ln2_b)
    f = jax.lax.dot_general(h2, mlp_w[l, 0], (((1,), (1,)), ((), ())),
                            preferred_element_type=jnp.float32) + fc1_b[l]
    f = f * jax.nn.sigmoid(1.702 * f)            # quickGELU (EUP slot)
    return x + jnp.dot(f, mlp_w[l, 1], preferred_element_type=jnp.float32) + fc2_b


# ------------------------------- fused CLIP kernel ------------------------------
def _clip_kernel(patches_ref, ids_ref,
                 v_embed_ref, v_attn_w_ref, v_mlp_w_ref, v_vecs_ref, v_fc1_b_ref,
                 t_attn_w_ref, t_mlp_w_ref, t_vecs_ref, t_fc1_b_ref, t_misc_ref,
                 out_ref):
    # -------------------- vision tower (batch stacked on rows) --------------------
    patch_w = v_embed_ref[VE_PATCH:VE_PATCH + CPP, :]
    pos_eff = v_embed_ref[VE_POS:VE_POS + V_ROWS, :]      # pos (+cls pre-folded), tiled
    preln_g = v_embed_ref[VE_LNG:VE_LNG + 1, :]
    preln_b = v_embed_ref[VE_LNB:VE_LNB + 1, :]

    emb = jnp.dot(patches_ref[...], patch_w,
                  preferred_element_type=jnp.float32) + pos_eff
    vh = _layernorm(emb, preln_g, preln_b)                 # pre_layrnorm

    v_masks = _head_masks(VISION_HIDDEN, VISION_HEADS)
    v_bias = _block_bias(V_ROWS, IMG_SEQ, BATCH, causal=False)
    for l in range(VISION_LAYERS):
        vh = _encoder_layer(vh, v_bias, v_masks,
                            v_attn_w_ref, v_vecs_ref, v_mlp_w_ref, v_fc1_b_ref, l)

    # HF vision last_hidden_state has NO post-layernorm; linear1 head fused here.
    lin1_w = t_misc_ref[TM_LIN1W:TM_LIN1W + VISION_HIDDEN, :]
    lin1_b = t_misc_ref[TM_LIN1B:TM_LIN1B + 1, :]
    img = jnp.dot(vh, lin1_w, preferred_element_type=jnp.float32) + lin1_b   # (V_ROWS, 32)

    # --------------------- text tower (batch stacked on rows) ---------------------
    tok_w = t_misc_ref[TM_TOK:TM_TOK + VOCAB, :]
    t_pos = t_misc_ref[TM_POS:TM_POS + T_ROWS, :]
    finln_g = t_misc_ref[TM_FLNG:TM_FLNG + 1, :]
    finln_b = t_misc_ref[TM_FLNB:TM_FLNB + 1, :]

    vocab_iota = jax.lax.broadcasted_iota(jnp.int32, (T_ROWS, VOCAB), 1)
    one_hot = jnp.where(vocab_iota == ids_ref[...], 1.0, 0.0)   # exact embedding gather
    t = jnp.dot(one_hot, tok_w, preferred_element_type=jnp.float32) + t_pos

    t_masks = _head_masks(TEXT_HIDDEN, TEXT_HEADS)
    t_bias = _block_bias(T_ROWS, TEXT_SEQ, BATCH, causal=True)
    for l in range(TEXT_LAYERS):
        t = _encoder_layer(t, t_bias, t_masks,
                           t_attn_w_ref, t_vecs_ref, t_mlp_w_ref, t_fc1_b_ref, l)
    t = _layernorm(t, finln_g, finln_b)                    # final_layer_norm  (T_ROWS, 32)

    # ------------- combined output: per batch element [text(8); image(5)] ---------
    pieces = []
    for b in range(BATCH):
        pieces.append(t[b * TEXT_SEQ:(b + 1) * TEXT_SEQ, :])
        pieces.append(img[b * IMG_SEQ:(b + 1) * IMG_SEQ, :])
    out_ref[...] = jnp.concatenate(pieces, axis=0).astype(out_ref.dtype)


# ----------------------------------- wrapper ------------------------------------
@jax.jit
def fine_tuned_clip_forward(packed, input_ids, pixel_values):
    B = input_ids.shape[0]
    assert B == BATCH and input_ids.shape[1] == TEXT_SEQ
    gh = gw = IMAGE_SIZE // PATCH
    # Conv2d(patch, stride=patch, bias=False) == per-patch matmul; flatten (C,P,P).
    x = pixel_values.reshape(B, CHANNELS, gh, PATCH, gw, PATCH)
    x = x.transpose(0, 2, 4, 1, 3, 5).reshape(B, NUM_PATCHES, CPP)
    # Row 0 of each element's block is the class-token slot (zero patch row; the cls
    # embedding itself is pre-folded into pos_eff during packing).
    patches = jnp.concatenate(
        [jnp.zeros((B, 1, CPP), jnp.float32), x], axis=1).reshape(B * IMG_SEQ, CPP)
    ids = input_ids.astype(jnp.int32).reshape(B * TEXT_SEQ, 1)

    out = pl.pallas_call(
        _clip_kernel,
        out_shape=jax.ShapeDtypeStruct((B * OUT_SEQ, TEXT_HIDDEN), jnp.float32),
    )(patches, ids,
      packed["v_embed"], packed["v_attn_w"], packed["v_mlp_w"],
      packed["v_vecs"], packed["v_fc1_b"],
      packed["t_attn_w"], packed["t_mlp_w"], packed["t_vecs"],
      packed["t_fc1_b"], packed["t_misc"])

    # torch.cat([text_hidden_states, image_hidden_states], dim=1); the kernel already
    # emits rows in that order, so this reshape is a free row-major view.
    return out.reshape(B, OUT_SEQ, TEXT_HIDDEN)


# ------------------------------ parameter init ---------------------------------
def init_params(key):
    keys = iter(jax.random.split(key, 64))

    def w(shape, scale=0.02):
        return scale * jax.random.normal(next(keys), shape, dtype=jnp.float32)

    def zeros(shape):
        return jnp.zeros(shape, jnp.float32)

    def ones(shape):
        return jnp.ones(shape, jnp.float32)

    def stacked_layers(d, L):
        m = d * MLP_RATIO
        return dict(
            ln1_g=ones((L, 1, d)), ln1_b=zeros((L, 1, d)),
            qkv_w=w((L, 3, d, d)), qkv_b=zeros((L, 3, 1, d)),
            o_w=w((L, d, d)), o_b=zeros((L, 1, d)),
            ln2_g=ones((L, 1, d)), ln2_b=zeros((L, 1, d)),
            fc1_w=w((L, d, m)), fc1_b=zeros((L, 1, m)),
            fc2_w=w((L, m, d)), fc2_b=zeros((L, 1, d)),
        )

    return dict(
        v_patch_w=w((CPP, VISION_HIDDEN)),
        v_cls=w((1, VISION_HIDDEN)),
        v_pos=w((IMG_SEQ, VISION_HIDDEN)),
        v_preln_g=ones((1, VISION_HIDDEN)), v_preln_b=zeros((1, VISION_HIDDEN)),
        v_layers=stacked_layers(VISION_HIDDEN, VISION_LAYERS),
        t_tok=w((VOCAB, TEXT_HIDDEN)),
        t_pos=w((TEXT_SEQ, TEXT_HIDDEN)),
        t_layers=stacked_layers(TEXT_HIDDEN, TEXT_LAYERS),
        t_finln_g=ones((1, TEXT_HIDDEN)), t_finln_b=zeros((1, TEXT_HIDDEN)),
        linear1_w=w((VISION_HIDDEN, TEXT_HIDDEN)),
        linear1_b=zeros((1, TEXT_HIDDEN)),
    )


def _pack_tower(lay):
    attn_w = jnp.concatenate([lay["qkv_w"], lay["o_w"][:, None]], axis=1)       # (L,4,D,D)
    mlp_w = jnp.stack(
        [jnp.transpose(lay["fc1_w"], (0, 2, 1)), lay["fc2_w"]], axis=1)          # (L,2,M,D)
    vecs = jnp.concatenate(
        [lay["ln1_g"], lay["ln1_b"],
         lay["qkv_b"][:, 0], lay["qkv_b"][:, 1], lay["qkv_b"][:, 2],
         lay["o_b"], lay["ln2_g"], lay["ln2_b"], lay["fc2_b"]], axis=1)          # (L,9,D)
    return attn_w, mlp_w, vecs, lay["fc1_b"]


def pack_params(p):
    """One-time packing of the natural param pytree into 10 kernel operand slabs."""
    cls_row = jnp.concatenate(
        [p["v_cls"], jnp.zeros((IMG_SEQ - 1, VISION_HIDDEN), jnp.float32)], axis=0)
    pos_eff = jnp.tile(p["v_pos"] + cls_row, (BATCH, 1))                         # (V_ROWS, D)
    v_embed = jnp.concatenate(
        [p["v_patch_w"], pos_eff, p["v_preln_g"], p["v_preln_b"]], axis=0)       # (204, 64)
    assert v_embed.shape[0] == VE_ROWS

    v_attn_w, v_mlp_w, v_vecs, v_fc1_b = _pack_tower(p["v_layers"])
    t_attn_w, t_mlp_w, t_vecs, t_fc1_b = _pack_tower(p["t_layers"])

    t_misc = jnp.concatenate(
        [p["t_tok"], p["linear1_w"], jnp.tile(p["t_pos"], (BATCH, 1)),
         p["t_finln_g"], p["t_finln_b"], p["linear1_b"]], axis=0)                # (147, 32)
    assert t_misc.shape[0] == TM_ROWS

    return dict(v_embed=v_embed, v_attn_w=v_attn_w, v_mlp_w=v_mlp_w,
                v_vecs=v_vecs, v_fc1_b=v_fc1_b,
                t_attn_w=t_attn_w, t_mlp_w=t_mlp_w, t_vecs=t_vecs,
                t_fc1_b=t_fc1_b, t_misc=t_misc)


# ------------------------------------ main --------------------------------------
if __name__ == "__main__":
    key = jax.random.PRNGKey(0)
    kp, ki, kx = jax.random.split(key, 3)
    params = init_params(kp)
    packed = pack_params(params)

    input_ids = jax.random.randint(ki, (BATCH, TEXT_SEQ), 0, VOCAB)
    pixel_values = jax.random.normal(
        kx, (BATCH, CHANNELS, IMAGE_SIZE, IMAGE_SIZE), dtype=jnp.float32)

    out = fine_tuned_clip_forward(packed, input_ids, pixel_values)
    jax.block_until_ready(out)

    expected = (BATCH, TEXT_SEQ + IMG_SEQ, TEXT_HIDDEN)
    assert out.shape == expected, (out.shape, expected)
    assert bool(jnp.all(jnp.isfinite(out)))
    print("KERNEL_OK")
</pallas_src>

<mosaic_0001>
module attributes {stable_mosaic.version = 11 : i64} {
  func.func @_clip_kernel(%arg0: memref<10x192xf32, #tpu.memory_space<vmem>>, %arg1: memref<16x1xi32, #tpu.memory_space<vmem>>, %arg2: memref<204x64xf32, #tpu.memory_space<vmem>>, %arg3: memref<2x4x64x64xf32, #tpu.memory_space<vmem>>, %arg4: memref<2x2x256x64xf32, #tpu.memory_space<vmem>>, %arg5: memref<2x9x64xf32, #tpu.memory_space<vmem>>, %arg6: memref<2x1x256xf32, #tpu.memory_space<vmem>>, %arg7: memref<2x4x32x32xf32, #tpu.memory_space<vmem>>, %arg8: memref<2x2x128x32xf32, #tpu.memory_space<vmem>>, %arg9: memref<2x9x32xf32, #tpu.memory_space<vmem>>, %arg10: memref<2x1x128xf32, #tpu.memory_space<vmem>>, %arg11: memref<147x32xf32, #tpu.memory_space<vmem>>, %arg12: memref<26x32xf32, #tpu.memory_space<vmem>>) attributes {dimension_semantics = [], scalar_prefetch = 0 : i64, scratch_operands = 0 : i64, tpu.core_type = #tpu.core_type<tc>} {
    %c0 = arith.constant 0 : index
    %c0_0 = arith.constant 0 : index
    %0 = vector.load %arg2[%c0, %c0_0] : memref<204x64xf32, #tpu.memory_space<vmem>>, vector<192x64xf32>
    %c192 = arith.constant 192 : index
    %c0_1 = arith.constant 0 : index
    %1 = vector.load %arg2[%c192, %c0_1] : memref<204x64xf32, #tpu.memory_space<vmem>>, vector<10x64xf32>
    %c202 = arith.constant 202 : index
    %c0_2 = arith.constant 0 : index
    %2 = vector.load %arg2[%c202, %c0_2] : memref<204x64xf32, #tpu.memory_space<vmem>>, vector<1x64xf32>
    %c203 = arith.constant 203 : index
    %c0_3 = arith.constant 0 : index
    %3 = vector.load %arg2[%c203, %c0_3] : memref<204x64xf32, #tpu.memory_space<vmem>>, vector<1x64xf32>
    %c0_4 = arith.constant 0 : index
    %c0_5 = arith.constant 0 : index
    %4 = vector.load %arg0[%c0_4, %c0_5] : memref<10x192xf32, #tpu.memory_space<vmem>>, vector<10x192xf32>
    %cst = arith.constant dense<0.000000e+00> : vector<10x64xf32>
    %5 = tpu.matmul %4, %0, %cst {dimension_numbers = #tpu.dot_dimension_numbers<[1], [0], [0], [1], [0, 0, 1, 1], [], []>} : vector<10x192xf32>, vector<192x64xf32>, vector<10x64xf32> -> vector<10x64xf32>
    %6 = arith.addf %5, %1 : vector<10x64xf32>
    %cst_6 = arith.constant dense<0.000000e+00> : vector<10xf32>
    %7 = vector.multi_reduction <add>, %6, %cst_6 [1] : vector<10x64xf32> to vector<10xf32>
    %8 = vector.shape_cast %7 : vector<10xf32> to vector<10x1xf32>
    %cst_7 = arith.constant 6.400000e+01 : f32
    %9 = vector.broadcast %cst_7 : f32 to vector<10x1xf32>
    %10 = arith.divf %8, %9 : vector<10x1xf32>
    %11 = vector.broadcast %10 : vector<10x1xf32> to vector<10x64xf32>
    %12 = arith.subf %6, %11 : vector<10x64xf32>
    %13 = arith.mulf %12, %12 : vector<10x64xf32>
    %cst_8 = arith.constant dense<0.000000e+00> : vector<10xf32>
    %14 = vector.multi_reduction <add>, %13, %cst_8 [1] : vector<10x64xf32> to vector<10xf32>
    %15 = vector.shape_cast %14 : vector<10xf32> to vector<10x1xf32>
    %cst_9 = arith.constant 6.400000e+01 : f32
    %16 = vector.broadcast %cst_9 : f32 to vector<10x1xf32>
    %17 = arith.divf %15, %16 : vector<10x1xf32>
    %18 = vector.broadcast %10 : vector<10x1xf32> to vector<10x64xf32>
    %19 = arith.subf %6, %18 : vector<10x64xf32>
    %cst_10 = arith.constant 9.99999974E-6 : f32
    %20 = vector.broadcast %cst_10 : f32 to vector<10x1xf32>
    %21 = arith.addf %17, %20 : vector<10x1xf32>
    %22 = math.rsqrt %21 : vector<10x1xf32>
    %23 = vector.broadcast %22 : vector<10x1xf32> to vector<10x64xf32>
    %24 = arith.mulf %19, %23 : vector<10x64xf32>
    %25 = vector.broadcast %2 : vector<1x64xf32> to vector<10x64xf32>
    %26 = arith.mulf %24, %25 : vector<10x64xf32>
    %27 = vector.broadcast %3 : vector<1x64xf32> to vector<10x64xf32>
    %28 = arith.addf %26, %27 : vector<10x64xf32>
    %29 = tpu.iota {dimensions = array<i32: 1>} : vector<1x64xi32>
    %c0_i32 = arith.constant 0 : i32
    %30 = vector.broadcast %c0_i32 : i32 to vector<1x64xi32>
    %31 = arith.cmpi sge, %29, %30 : vector<1x64xi32>
    %c16_i32 = arith.constant 16 : i32
    %32 = vector.broadcast %c16_i32 : i32 to vector<1x64xi32>
    %33 = arith.cmpi slt, %29, %32 : vector<1x64xi32>
    %34 = arith.andi %31, %33 : vector<1x64xi1>
    %cst_11 = arith.constant 1.000000e+00 : f32
    %cst_12 = arith.constant 0.000000e+00 : f32
    %35 = vector.broadcast %cst_11 : f32 to vector<1x64xf32>
    %36 = vector.broadcast %cst_12 : f32 to vector<1x64xf32>
    %37 = arith.select %34, %35, %36 : vector<1x64xi1>, vector<1x64xf32>
    %c16_i32_13 = arith.constant 16 : i32
    %38 = vector.broadcast %c16_i32_13 : i32 to vector<1x64xi32>
    %39 = arith.cmpi sge, %29, %38 : vector<1x64xi32>
    %c32_i32 = arith.constant 32 : i32
    %40 = vector.broadcast %c32_i32 : i32 to vector<1x64xi32>
    %41 = arith.cmpi slt, %29, %40 : vector<1x64xi32>
    %42 = arith.andi %39, %41 : vector<1x64xi1>
    %cst_14 = arith.constant 1.000000e+00 : f32
    %cst_15 = arith.constant 0.000000e+00 : f32
    %43 = vector.broadcast %cst_14 : f32 to vector<1x64xf32>
    %44 = vector.broadcast %cst_15 : f32 to vector<1x64xf32>
    %45 = arith.select %42, %43, %44 : vector<1x64xi1>, vector<1x64xf32>
    %c32_i32_16 = arith.constant 32 : i32
    %46 = vector.broadcast %c32_i32_16 : i32 to vector<1x64xi32>
    %47 = arith.cmpi sge, %29, %46 : vector<1x64xi32>
    %c48_i32 = arith.constant 48 : i32
    %48 = vector.broadcast %c48_i32 : i32 to vector<1x64xi32>
    %49 = arith.cmpi slt, %29, %48 : vector<1x64xi32>
    %50 = arith.andi %47, %49 : vector<1x64xi1>
    %cst_17 = arith.constant 1.000000e+00 : f32
    %cst_18 = arith.constant 0.000000e+00 : f32
    %51 = vector.broadcast %cst_17 : f32 to vector<1x64xf32>
    %52 = vector.broadcast %cst_18 : f32 to vector<1x64xf32>
    %53 = arith.select %50, %51, %52 : vector<1x64xi1>, vector<1x64xf32>
    %c48_i32_19 = arith.constant 48 : i32
    %54 = vector.broadcast %c48_i32_19 : i32 to vector<1x64xi32>
    %55 = arith.cmpi sge, %29, %54 : vector<1x64xi32>
    %c64_i32 = arith.constant 64 : i32
    %56 = vector.broadcast %c64_i32 : i32 to vector<1x64xi32>
    %57 = arith.cmpi slt, %29, %56 : vector<1x64xi32>
    %58 = arith.andi %55, %57 : vector<1x64xi1>
    %cst_20 = arith.constant 1.000000e+00 : f32
    %cst_21 = arith.constant 0.000000e+00 : f32
    %59 = vector.broadcast %cst_20 : f32 to vector<1x64xf32>
    %60 = vector.broadcast %cst_21 : f32 to vector<1x64xf32>
    %61 = arith.select %58, %59, %60 : vector<1x64xi1>, vector<1x64xf32>
    %62 = tpu.iota {dimensions = array<i32: 0>} : vector<10x10xi32>
    %63 = tpu.iota {dimensions = array<i32: 1>} : vector<10x10xi32>
    %c0_i32_22 = arith.constant 0 : i32
    %64 = vector.broadcast %c0_i32_22 : i32 to vector<10x10xi32>
    %65 = arith.cmpi sge, %62, %64 : vector<10x10xi32>
    %c5_i32 = arith.constant 5 : i32
    %66 = vector.broadcast %c5_i32 : i32 to vector<10x10xi32>
    %67 = arith.cmpi slt, %62, %66 : vector<10x10xi32>
    %68 = arith.andi %65, %67 : vector<10x10xi1>
    %c0_i32_23 = arith.constant 0 : i32
    %69 = vector.broadcast %c0_i32_23 : i32 to vector<10x10xi32>
    %70 = arith.cmpi sge, %63, %69 : vector<10x10xi32>
    %71 = arith.andi %68, %70 : vector<10x10xi1>
    %c5_i32_24 = arith.constant 5 : i32
    %72 = vector.broadcast %c5_i32_24 : i32 to vector<10x10xi32>
    %73 = arith.cmpi slt, %63, %72 : vector<10x10xi32>
    %74 = arith.andi %71, %73 : vector<10x10xi1>
    %c5_i32_25 = arith.constant 5 : i32
    %75 = vector.broadcast %c5_i32_25 : i32 to vector<10x10xi32>
    %76 = arith.cmpi sge, %62, %75 : vector<10x10xi32>
    %c10_i32 = arith.constant 10 : i32
    %77 = vector.broadcast %c10_i32 : i32 to vector<10x10xi32>
    %78 = arith.cmpi slt, %62, %77 : vector<10x10xi32>
    %79 = arith.andi %76, %78 : vector<10x10xi1>
    %c5_i32_26 = arith.constant 5 : i32
    %80 = vector.broadcast %c5_i32_26 : i32 to vector<10x10xi32>
    %81 = arith.cmpi sge, %63, %80 : vector<10x10xi32>
    %82 = arith.andi %79, %81 : vector<10x10xi1>
    %c10_i32_27 = arith.constant 10 : i32
    %83 = vector.broadcast %c10_i32_27 : i32 to vector<10x10xi32>
    %84 = arith.cmpi slt, %63, %83 : vector<10x10xi32>
    %85 = arith.andi %82, %84 : vector<10x10xi1>
    %86 = arith.ori %74, %85 : vector<10x10xi1>
    %cst_28 = arith.constant 0.000000e+00 : f32
    %cst_29 = arith.constant -1.000000e+09 : f32
    %87 = vector.broadcast %cst_28 : f32 to vector<10x10xf32>
    %88 = vector.broadcast %cst_29 : f32 to vector<10x10xf32>
    %89 = arith.select %86, %87, %88 : vector<10x10xi1>, vector<10x10xf32>
    %c0_30 = arith.constant 0 : index
    %c0_31 = arith.constant 0 : index
    %c0_32 = arith.constant 0 : index
    %90 = vector.load %arg5[%c0_30, %c0_31, %c0_32] : memref<2x9x64xf32, #tpu.memory_space<vmem>>, vector<1x1x64xf32>
    %91 = vector.shape_cast %90 : vector<1x1x64xf32> to vector<1x64xf32>
    %c0_33 = arith.constant 0 : index
    %c1 = arith.constant 1 : index
    %c0_34 = arith.constant 0 : index
    %92 = vector.load %arg5[%c0_33, %c1, %c0_34] : memref<2x9x64xf32, #tpu.memory_space<vmem>>, vector<1x1x64xf32>
    %93 = vector.shape_cast %92 : vector<1x1x64xf32> to vector<1x64xf32>
    %c0_35 = arith.constant 0 : index
    %c2 = arith.constant 2 : index
    %c0_36 = arith.constant 0 : index
    %94 = vector.load %arg5[%c0_35, %c2, %c0_36] : memref<2x9x64xf32, #tpu.memory_space<vmem>>, vector<1x1x64xf32>
    %95 = vector.shape_cast %94 : vector<1x1x64xf32> to vector<1x64xf32>
    %c0_37 = arith.constant 0 : index
    %c3 = arith.constant 3 : index
    %c0_38 = arith.constant 0 : index
    %96 = vector.load %arg5[%c0_37, %c3, %c0_38] : memref<2x9x64xf32, #tpu.memory_space<vmem>>, vector<1x1x64xf32>
    %97 = vector.shape_cast %96 : vector<1x1x64xf32> to vector<1x64xf32>
    %c0_39 = arith.constant 0 : index
    %c4 = arith.constant 4 : index
    %c0_40 = arith.constant 0 : index
    %98 = vector.load %arg5[%c0_39, %c4, %c0_40] : memref<2x9x64xf32, #tpu.memory_space<vmem>>, vector<1x1x64xf32>
    %99 = vector.shape_cast %98 : vector<1x1x64xf32> to vector<1x64xf32>
    %c0_41 = arith.constant 0 : index
    %c5 = arith.constant 5 : index
    %c0_42 = arith.constant 0 : index
    %100 = vector.load %arg5[%c0_41, %c5, %c0_42] : memref<2x9x64xf32, #tpu.memory_space<vmem>>, vector<1x1x64xf32>
    %101 = vector.shape_cast %100 : vector<1x1x64xf32> to vector<1x64xf32>
    %c0_43 = arith.constant 0 : index
    %c6 = arith.constant 6 : index
    %c0_44 = arith.constant 0 : index
    %102 = vector.load %arg5[%c0_43, %c6, %c0_44] : memref<2x9x64xf32, #tpu.memory_space<vmem>>, vector<1x1x64xf32>
    %103 = vector.shape_cast %102 : vector<1x1x64xf32> to vector<1x64xf32>
    %c0_45 = arith.constant 0 : index
    %c7 = arith.constant 7 : index
    %c0_46 = arith.constant 0 : index
    %104 = vector.load %arg5[%c0_45, %c7, %c0_46] : memref<2x9x64xf32, #tpu.memory_space<vmem>>, vector<1x1x64xf32>
    %105 = vector.shape_cast %104 : vector<1x1x64xf32> to vector<1x64xf32>
    %c0_47 = arith.constant 0 : index
    %c8 = arith.constant 8 : index
    %c0_48 = arith.constant 0 : index
    %106 = vector.load %arg5[%c0_47, %c8, %c0_48] : memref<2x9x64xf32, #tpu.memory_space<vmem>>, vector<1x1x64xf32>
    %107 = vector.shape_cast %106 : vector<1x1x64xf32> to vector<1x64xf32>
    %cst_49 = arith.constant dense<0.000000e+00> : vector<10xf32>
    %108 = vector.multi_reduction <add>, %28, %cst_49 [1] : vector<10x64xf32> to vector<10xf32>
    %109 = vector.shape_cast %108 : vector<10xf32> to vector<10x1xf32>
    %cst_50 = arith.constant 6.400000e+01 : f32
    %110 = vector.broadcast %cst_50 : f32 to vector<10x1xf32>
    %111 = arith.divf %109, %110 : vector<10x1xf32>
    %112 = vector.broadcast %111 : vector<10x1xf32> to vector<10x64xf32>
    %113 = arith.subf %28, %112 : vector<10x64xf32>
    %114 = arith.mulf %113, %113 : vector<10x64xf32>
    %cst_51 = arith.constant dense<0.000000e+00> : vector<10xf32>
    %115 = vector.multi_reduction <add>, %114, %cst_51 [1] : vector<10x64xf32> to vector<10xf32>
    %116 = vector.shape_cast %115 : vector<10xf32> to vector<10x1xf32>
    %cst_52 = arith.constant 6.400000e+01 : f32
    %117 = vector.broadcast %cst_52 : f32 to vector<10x1xf32>
    %118 = arith.divf %116, %117 : vector<10x1xf32>
    %119 = vector.broadcast %111 : vector<10x1xf32> to vector<10x64xf32>
    %120 = arith.subf %28, %119 : vector<10x64xf32>
    %cst_53 = arith.constant 9.99999974E-6 : f32
    %121 = vector.broadcast %cst_53 : f32 to vector<10x1xf32>
    %122 = arith.addf %118, %121 : vector<10x1xf32>
    %123 = math.rsqrt %122 : vector<10x1xf32>
    %124 = vector.broadcast %123 : vector<10x1xf32> to vector<10x64xf32>
    %125 = arith.mulf %120, %124 : vector<10x64xf32>
    %126 = vector.broadcast %91 : vector<1x64xf32> to vector<10x64xf32>
    %127 = arith.mulf %125, %126 : vector<10x64xf32>
    %128 = vector.broadcast %93 : vector<1x64xf32> to vector<10x64xf32>
    %129 = arith.addf %127, %128 : vector<10x64xf32>
    %c0_54 = arith.constant 0 : index
    %c0_55 = arith.constant 0 : index
    %c0_56 = arith.constant 0 : index
    %c0_57 = arith.constant 0 : index
    %130 = vector.load %arg3[%c0_54, %c0_55, %c0_56, %c0_57] : memref<2x4x64x64xf32, #tpu.memory_space<vmem>>, vector<1x1x64x64xf32>
    %131 = vector.shape_cast %130 : vector<1x1x64x64xf32> to vector<64x64xf32>
    %cst_58 = arith.constant dense<0.000000e+00> : vector<10x64xf32>
    %132 = tpu.matmul %129, %131, %cst_58 {dimension_numbers = #tpu.dot_dimension_numbers<[1], [0], [0], [1], [0, 0, 1, 1], [], []>} : vector<10x64xf32>, vector<64x64xf32>, vector<10x64xf32> -> vector<10x64xf32>
    %133 = vector.broadcast %95 : vector<1x64xf32> to vector<10x64xf32>
    %134 = arith.addf %132, %133 : vector<10x64xf32>
    %cst_59 = arith.constant 2.500000e-01 : f32
    %135 = vector.broadcast %cst_59 : f32 to vector<10x64xf32>
    %136 = arith.mulf %134, %135 : vector<10x64xf32>
    %c0_60 = arith.constant 0 : index
    %c1_61 = arith.constant 1 : index
    %c0_62 = arith.constant 0 : index
    %c0_63 = arith.constant 0 : index
    %137 = vector.load %arg3[%c0_60, %c1_61, %c0_62, %c0_63] : memref<2x4x64x64xf32, #tpu.memory_space<vmem>>, vector<1x1x64x64xf32>
    %138 = vector.shape_cast %137 : vector<1x1x64x64xf32> to vector<64x64xf32>
    %cst_64 = arith.constant dense<0.000000e+00> : vector<10x64xf32>
    %139 = tpu.matmul %129, %138, %cst_64 {dimension_numbers = #tpu.dot_dimension_numbers<[1], [0], [0], [1], [0, 0, 1, 1], [], []>} : vector<10x64xf32>, vector<64x64xf32>, vector<10x64xf32> -> vector<10x64xf32>
    %140 = vector.broadcast %97 : vector<1x64xf32> to vector<10x64xf32>
    %141 = arith.addf %139, %140 : vector<10x64xf32>
    %c0_65 = arith.constant 0 : index
    %c2_66 = arith.constant 2 : index
    %c0_67 = arith.constant 0 : index
    %c0_68 = arith.constant 0 : index
    %142 = vector.load %arg3[%c0_65, %c2_66, %c0_67, %c0_68] : memref<2x4x64x64xf32, #tpu.memory_space<vmem>>, vector<1x1x64x64xf32>
    %143 = vector.shape_cast %142 : vector<1x1x64x64xf32> to vector<64x64xf32>
    %cst_69 = arith.constant dense<0.000000e+00> : vector<10x64xf32>
    %144 = tpu.matmul %129, %143, %cst_69 {dimension_numbers = #tpu.dot_dimension_numbers<[1], [0], [0], [1], [0, 0, 1, 1], [], []>} : vector<10x64xf32>, vector<64x64xf32>, vector<10x64xf32> -> vector<10x64xf32>
    %145 = vector.broadcast %99 : vector<1x64xf32> to vector<10x64xf32>
    %146 = arith.addf %144, %145 : vector<10x64xf32>
    %cst_70 = arith.constant 0.000000e+00 : f32
    %147 = vector.broadcast %cst_70 : f32 to vector<10x64xf32>
    %148 = vector.broadcast %37 : vector<1x64xf32> to vector<10x64xf32>
    %149 = arith.mulf %136, %148 : vector<10x64xf32>
    %cst_71 = arith.constant dense<0.000000e+00> : vector<10x10xf32>
    %150 = tpu.matmul %149, %141, %cst_71 {dimension_numbers = #tpu.dot_dimension_numbers<[1], [1], [0], [0], [0, 0, 1, 0], [], []>} : vector<10x64xf32>, vector<10x64xf32>, vector<10x10xf32> -> vector<10x10xf32>
    %151 = arith.addf %150, %89 : vector<10x10xf32>
    %cst_72 = arith.constant dense<0xFF800000> : vector<10xf32>
    %152 = vector.multi_reduction <maximumf>, %151, %cst_72 [1] : vector<10x10xf32> to vector<10xf32>
    %153 = vector.shape_cast %152 : vector<10xf32> to vector<10x1xf32>
    %154 = vector.broadcast %153 : vector<10x1xf32> to vector<10x10xf32>
    %155 = arith.subf %151, %154 : vector<10x10xf32>
    %156 = math.exp %155 : vector<10x10xf32>
    %cst_73 = arith.constant dense<0.000000e+00> : vector<10xf32>
    %157 = vector.multi_reduction <add>, %156, %cst_73 [1] : vector<10x10xf32> to vector<10xf32>
    %158 = vector.shape_cast %157 : vector<10xf32> to vector<10x1xf32>
    %159 = vector.broadcast %158 : vector<10x1xf32> to vector<10x10xf32>
    %160 = arith.divf %156, %159 : vector<10x10xf32>
    %161 = vector.broadcast %37 : vector<1x64xf32> to vector<10x64xf32>
    %162 = arith.mulf %146, %161 : vector<10x64xf32>
    %cst_74 = arith.constant dense<0.000000e+00> : vector<10x64xf32>
    %163 = tpu.matmul %160, %162, %cst_74 {dimension_numbers = #tpu.dot_dimension_numbers<[1], [0], [0], [1], [0, 0, 1, 1], [], []>} : vector<10x10xf32>, vector<10x64xf32>, vector<10x64xf32> -> vector<10x64xf32>
    %164 = arith.addf %147, %163 : vector<10x64xf32>
    %165 = vector.broadcast %45 : vector<1x64xf32> to vector<10x64xf32>
    %166 = arith.mulf %136, %165 : vector<10x64xf32>
    %cst_75 = arith.constant dense<0.000000e+00> : vector<10x10xf32>
    %167 = tpu.matmul %166, %141, %cst_75 {dimension_numbers = #tpu.dot_dimension_numbers<[1], [1], [0], [0], [0, 0, 1, 0], [], []>} : vector<10x64xf32>, vector<10x64xf32>, vector<10x10xf32> -> vector<10x10xf32>
    %168 = arith.addf %167, %89 : vector<10x10xf32>
    %cst_76 = arith.constant dense<0xFF800000> : vector<10xf32>
    %169 = vector.multi_reduction <maximumf>, %168, %cst_76 [1] : vector<10x10xf32> to vector<10xf32>
    %170 = vector.shape_cast %169 : vector<10xf32> to vector<10x1xf32>
    %171 = vector.broadcast %170 : vector<10x1xf32> to vector<10x10xf32>
    %172 = arith.subf %168, %171 : vector<10x10xf32>
    %173 = math.exp %172 : vector<10x10xf32>
    %cst_77 = arith.constant dense<0.000000e+00> : vector<10xf32>
    %174 = vector.multi_reduction <add>, %173, %cst_77 [1] : vector<10x10xf32> to vector<10xf32>
    %175 = vector.shape_cast %174 : vector<10xf32> to vector<10x1xf32>
    %176 = vector.broadcast %175 : vector<10x1xf32> to vector<10x10xf32>
    %177 = arith.divf %173, %176 : vector<10x10xf32>
    %178 = vector.broadcast %45 : vector<1x64xf32> to vector<10x64xf32>
    %179 = arith.mulf %146, %178 : vector<10x64xf32>
    %cst_78 = arith.constant dense<0.000000e+00> : vector<10x64xf32>
    %180 = tpu.matmul %177, %179, %cst_78 {dimension_numbers = #tpu.dot_dimension_numbers<[1], [0], [0], [1], [0, 0, 1, 1], [], []>} : vector<10x10xf32>, vector<10x64xf32>, vector<10x64xf32> -> vector<10x64xf32>
    %181 = arith.addf %164, %180 : vector<10x64xf32>
    %182 = vector.broadcast %53 : vector<1x64xf32> to vector<10x64xf32>
    %183 = arith.mulf %136, %182 : vector<10x64xf32>
    %cst_79 = arith.constant dense<0.000000e+00> : vector<10x10xf32>
    %184 = tpu.matmul %183, %141, %cst_79 {dimension_numbers = #tpu.dot_dimension_numbers<[1], [1], [0], [0], [0, 0, 1, 0], [], []>} : vector<10x64xf32>, vector<10x64xf32>, vector<10x10xf32> -> vector<10x10xf32>
    %185 = arith.addf %184, %89 : vector<10x10xf32>
    %cst_80 = arith.constant dense<0xFF800000> : vector<10xf32>
    %186 = vector.multi_reduction <maximumf>, %185, %cst_80 [1] : vector<10x10xf32> to vector<10xf32>
    %187 = vector.shape_cast %186 : vector<10xf32> to vector<10x1xf32>
    %188 = vector.broadcast %187 : vector<10x1xf32> to vector<10x10xf32>
    %189 = arith.subf %185, %188 : vector<10x10xf32>
    %190 = math.exp %189 : vector<10x10xf32>
    %cst_81 = arith.constant dense<0.000000e+00> : vector<10xf32>
    %191 = vector.multi_reduction <add>, %190, %cst_81 [1] : vector<10x10xf32> to vector<10xf32>
    %192 = vector.shape_cast %191 : vector<10xf32> to vector<10x1xf32>
    %193 = vector.broadcast %192 : vector<10x1xf32> to vector<10x10xf32>
    %194 = arith.divf %190, %193 : vector<10x10xf32>
    %195 = vector.broadcast %53 : vector<1x64xf32> to vector<10x64xf32>
    %196 = arith.mulf %146, %195 : vector<10x64xf32>
    %cst_82 = arith.constant dense<0.000000e+00> : vector<10x64xf32>
    %197 = tpu.matmul %194, %196, %cst_82 {dimension_numbers = #tpu.dot_dimension_numbers<[1], [0], [0], [1], [0, 0, 1, 1], [], []>} : vector<10x10xf32>, vector<10x64xf32>, vector<10x64xf32> -> vector<10x64xf32>
    %198 = arith.addf %181, %197 : vector<10x64xf32>
    %199 = vector.broadcast %61 : vector<1x64xf32> to vector<10x64xf32>
    %200 = arith.mulf %136, %199 : vector<10x64xf32>
    %cst_83 = arith.constant dense<0.000000e+00> : vector<10x10xf32>
    %201 = tpu.matmul %200, %141, %cst_83 {dimension_numbers = #tpu.dot_dimension_numbers<[1], [1], [0], [0], [0, 0, 1, 0], [], []>} : vector<10x64xf32>, vector<10x64xf32>, vector<10x10xf32> -> vector<10x10xf32>
    %202 = arith.addf %201, %89 : vector<10x10xf32>
    %cst_84 = arith.constant dense<0xFF800000> : vector<10xf32>
    %203 = vector.multi_reduction <maximumf>, %202, %cst_84 [1] : vector<10x10xf32> to vector<10xf32>
    %204 = vector.shape_cast %203 : vector<10xf32> to vector<10x1xf32>
    %205 = vector.broadcast %204 : vector<10x1xf32> to vector<10x10xf32>
    %206 = arith.subf %202, %205 : vector<10x10xf32>
    %207 = math.exp %206 : vector<10x10xf32>
    %cst_85 = arith.constant dense<0.000000e+00> : vector<10xf32>
    %208 = vector.multi_reduction <add>, %207, %cst_85 [1] : vector<10x10xf32> to vector<10xf32>
    %209 = vector.shape_cast %208 : vector<10xf32> to vector<10x1xf32>
    %210 = vector.broadcast %209 : vector<10x1xf32> to vector<10x10xf32>
    %211 = arith.divf %207, %210 : vector<10x10xf32>
    %212 = vector.broadcast %61 : vector<1x64xf32> to vector<10x64xf32>
    %213 = arith.mulf %146, %212 : vector<10x64xf32>
    %cst_86 = arith.constant dense<0.000000e+00> : vector<10x64xf32>
    %214 = tpu.matmul %211, %213, %cst_86 {dimension_numbers = #tpu.dot_dimension_numbers<[1], [0], [0], [1], [0, 0, 1, 1], [], []>} : vector<10x10xf32>, vector<10x64xf32>, vector<10x64xf32> -> vector<10x64xf32>
    %215 = arith.addf %198, %214 : vector<10x64xf32>
    %c0_87 = arith.constant 0 : index
    %c3_88 = arith.constant 3 : index
    %c0_89 = arith.constant 0 : index
    %c0_90 = arith.constant 0 : index
    %216 = vector.load %arg3[%c0_87, %c3_88, %c0_89, %c0_90] : memref<2x4x64x64xf32, #tpu.memory_space<vmem>>, vector<1x1x64x64xf32>
    %217 = vector.shape_cast %216 : vector<1x1x64x64xf32> to vector<64x64xf32>
    %cst_91 = arith.constant dense<0.000000e+00> : vector<10x64xf32>
    %218 = tpu.matmul %215, %217, %cst_91 {dimension_numbers = #tpu.dot_dimension_numbers<[1], [0], [0], [1], [0, 0, 1, 1], [], []>} : vector<10x64xf32>, vector<64x64xf32>, vector<10x64xf32> -> vector<10x64xf32>
    %219 = arith.addf %28, %218 : vector<10x64xf32>
    %220 = vector.broadcast %101 : vector<1x64xf32> to vector<10x64xf32>
    %221 = arith.addf %219, %220 : vector<10x64xf32>
    %cst_92 = arith.constant dense<0.000000e+00> : vector<10xf32>
    %222 = vector.multi_reduction <add>, %221, %cst_92 [1] : vector<10x64xf32> to vector<10xf32>
    %223 = vector.shape_cast %222 : vector<10xf32> to vector<10x1xf32>
    %cst_93 = arith.constant 6.400000e+01 : f32
    %224 = vector.broadcast %cst_93 : f32 to vector<10x1xf32>
    %225 = arith.divf %223, %224 : vector<10x1xf32>
    %226 = vector.broadcast %225 : vector<10x1xf32> to vector<10x64xf32>
    %227 = arith.subf %221, %226 : vector<10x64xf32>
    %228 = arith.mulf %227, %227 : vector<10x64xf32>
    %cst_94 = arith.constant dense<0.000000e+00> : vector<10xf32>
    %229 = vector.multi_reduction <add>, %228, %cst_94 [1] : vector<10x64xf32> to vector<10xf32>
    %230 = vector.shape_cast %229 : vector<10xf32> to vector<10x1xf32>
    %cst_95 = arith.constant 6.400000e+01 : f32
    %231 = vector.broadcast %cst_95 : f32 to vector<10x1xf32>
    %232 = arith.divf %230, %231 : vector<10x1xf32>
    %233 = vector.broadcast %225 : vector<10x1xf32> to vector<10x64xf32>
    %234 = arith.subf %221, %233 : vector<10x64xf32>
    %cst_96 = arith.constant 9.99999974E-6 : f32
    %235 = vector.broadcast %cst_96 : f32 to vector<10x1xf32>
    %236 = arith.addf %232, %235 : vector<10x1xf32>
    %237 = math.rsqrt %236 : vector<10x1xf32>
    %238 = vector.broadcast %237 : vector<10x1xf32> to vector<10x64xf32>
    %239 = arith.mulf %234, %238 : vector<10x64xf32>
    %240 = vector.broadcast %103 : vector<1x64xf32> to vector<10x64xf32>
    %241 = arith.mulf %239, %240 : vector<10x64xf32>
    %242 = vector.broadcast %105 : vector<1x64xf32> to vector<10x64xf32>
    %243 = arith.addf %241, %242 : vector<10x64xf32>
    %c0_97 = arith.constant 0 : index
    %c0_98 = arith.constant 0 : index
    %c0_99 = arith.constant 0 : index
    %c0_100 = arith.constant 0 : index
    %244 = vector.load %arg4[%c0_97, %c0_98, %c0_99, %c0_100] : memref<2x2x256x64xf32, #tpu.memory_space<vmem>>, vector<1x1x256x64xf32>
    %245 = vector.shape_cast %244 : vector<1x1x256x64xf32> to vector<256x64xf32>
    %cst_101 = arith.constant dense<0.000000e+00> : vector<10x256xf32>
    %246 = tpu.matmul %243, %245, %cst_101 {dimension_numbers = #tpu.dot_dimension_numbers<[1], [1], [0], [0], [0, 0, 1, 0], [], []>} : vector<10x64xf32>, vector<256x64xf32>, vector<10x256xf32> -> vector<10x256xf32>
    %c0_102 = arith.constant 0 : index
    %c0_103 = arith.constant 0 : index
    %c0_104 = arith.constant 0 : index
    %247 = vector.load %arg6[%c0_102, %c0_103, %c0_104] : memref<2x1x256xf32, #tpu.memory_space<vmem>>, vector<1x1x256xf32>
    %248 = vector.shape_cast %247 : vector<1x1x256xf32> to vector<1x256xf32>
    %249 = vector.broadcast %248 : vector<1x256xf32> to vector<10x256xf32>
    %250 = arith.addf %246, %249 : vector<10x256xf32>
    %cst_105 = arith.constant 1.702000e+00 : f32
    %251 = vector.broadcast %cst_105 : f32 to vector<10x256xf32>
    %252 = arith.mulf %251, %250 : vector<10x256xf32>
    %253 = arith.negf %252 : vector<10x256xf32>
    %254 = math.exp %253 : vector<10x256xf32>
    %cst_106 = arith.constant 1.000000e+00 : f32
    %255 = vector.broadcast %cst_106 : f32 to vector<10x256xf32>
    %256 = arith.addf %255, %254 : vector<10x256xf32>
    %257 = arith.divf %255, %256 : vector<10x256xf32>
    %258 = arith.mulf %250, %257 : vector<10x256xf32>
    %c0_107 = arith.constant 0 : index
    %c1_108 = arith.constant 1 : index
    %c0_109 = arith.constant 0 : index
    %c0_110 = arith.constant 0 : index
    %259 = vector.load %arg4[%c0_107, %c1_108, %c0_109, %c0_110] : memref<2x2x256x64xf32, #tpu.memory_space<vmem>>, vector<1x1x256x64xf32>
    %260 = vector.shape_cast %259 : vector<1x1x256x64xf32> to vector<256x64xf32>
    %cst_111 = arith.constant dense<0.000000e+00> : vector<10x64xf32>
    %261 = tpu.matmul %258, %260, %cst_111 {dimension_numbers = #tpu.dot_dimension_numbers<[1], [0], [0], [1], [0, 0, 1, 1], [], []>} : vector<10x256xf32>, vector<256x64xf32>, vector<10x64xf32> -> vector<10x64xf32>
    %262 = arith.addf %221, %261 : vector<10x64xf32>
    %263 = vector.broadcast %107 : vector<1x64xf32> to vector<10x64xf32>
    %264 = arith.addf %262, %263 : vector<10x64xf32>
    %c1_112 = arith.constant 1 : index
    %c0_113 = arith.constant 0 : index
    %c0_114 = arith.constant 0 : index
    %265 = vector.load %arg5[%c1_112, %c0_113, %c0_114] : memref<2x9x64xf32, #tpu.memory_space<vmem>>, vector<1x1x64xf32>
    %266 = vector.shape_cast %265 : vector<1x1x64xf32> to vector<1x64xf32>
    %c1_115 = arith.constant 1 : index
    %c1_116 = arith.constant 1 : index
    %c0_117 = arith.constant 0 : index
    %267 = vector.load %arg5[%c1_115, %c1_116, %c0_117] : memref<2x9x64xf32, #tpu.memory_space<vmem>>, vector<1x1x64xf32>
    %268 = vector.shape_cast %267 : vector<1x1x64xf32> to vector<1x64xf32>
    %c1_118 = arith.constant 1 : index
    %c2_119 = arith.constant 2 : index
    %c0_120 = arith.constant 0 : index
    %269 = vector.load %arg5[%c1_118, %c2_119, %c0_120] : memref<2x9x64xf32, #tpu.memory_space<vmem>>, vector<1x1x64xf32>
    %270 = vector.shape_cast %269 : vector<1x1x64xf32> to vector<1x64xf32>
    %c1_121 = arith.constant 1 : index
    %c3_122 = arith.constant 3 : index
    %c0_123 = arith.constant 0 : index
    %271 = vector.load %arg5[%c1_121, %c3_122, %c0_123] : memref<2x9x64xf32, #tpu.memory_space<vmem>>, vector<1x1x64xf32>
    %272 = vector.shape_cast %271 : vector<1x1x64xf32> to vector<1x64xf32>
    %c1_124 = arith.constant 1 : index
    %c4_125 = arith.constant 4 : index
    %c0_126 = arith.constant 0 : index
    %273 = vector.load %arg5[%c1_124, %c4_125, %c0_126] : memref<2x9x64xf32, #tpu.memory_space<vmem>>, vector<1x1x64xf32>
    %274 = vector.shape_cast %273 : vector<1x1x64xf32> to vector<1x64xf32>
    %c1_127 = arith.constant 1 : index
    %c5_128 = arith.constant 5 : index
    %c0_129 = arith.constant 0 : index
    %275 = vector.load %arg5[%c1_127, %c5_128, %c0_129] : memref<2x9x64xf32, #tpu.memory_space<vmem>>, vector<1x1x64xf32>
    %276 = vector.shape_cast %275 : vector<1x1x64xf32> to vector<1x64xf32>
    %c1_130 = arith.constant 1 : index
    %c6_131 = arith.constant 6 : index
    %c0_132 = arith.constant 0 : index
    %277 = vector.load %arg5[%c1_130, %c6_131, %c0_132] : memref<2x9x64xf32, #tpu.memory_space<vmem>>, vector<1x1x64xf32>
    %278 = vector.shape_cast %277 : vector<1x1x64xf32> to vector<1x64xf32>
    %c1_133 = arith.constant 1 : index
    %c7_134 = arith.constant 7 : index
    %c0_135 = arith.constant 0 : index
    %279 = vector.load %arg5[%c1_133, %c7_134, %c0_135] : memref<2x9x64xf32, #tpu.memory_space<vmem>>, vector<1x1x64xf32>
    %280 = vector.shape_cast %279 : vector<1x1x64xf32> to vector<1x64xf32>
    %c1_136 = arith.constant 1 : index
    %c8_137 = arith.constant 8 : index
    %c0_138 = arith.constant 0 : index
    %281 = vector.load %arg5[%c1_136, %c8_137, %c0_138] : memref<2x9x64xf32, #tpu.memory_space<vmem>>, vector<1x1x64xf32>
    %282 = vector.shape_cast %281 : vector<1x1x64xf32> to vector<1x64xf32>
    %cst_139 = arith.constant dense<0.000000e+00> : vector<10xf32>
    %283 = vector.multi_reduction <add>, %264, %cst_139 [1] : vector<10x64xf32> to vector<10xf32>
    %284 = vector.shape_cast %283 : vector<10xf32> to vector<10x1xf32>
    %cst_140 = arith.constant 6.400000e+01 : f32
    %285 = vector.broadcast %cst_140 : f32 to vector<10x1xf32>
    %286 = arith.divf %284, %285 : vector<10x1xf32>
    %287 = vector.broadcast %286 : vector<10x1xf32> to vector<10x64xf32>
    %288 = arith.subf %264, %287 : vector<10x64xf32>
    %289 = arith.mulf %288, %288 : vector<10x64xf32>
    %cst_141 = arith.constant dense<0.000000e+00> : vector<10xf32>
    %290 = vector.multi_reduction <add>, %289, %cst_141 [1] : vector<10x64xf32> to vector<10xf32>
    %291 = vector.shape_cast %290 : vector<10xf32> to vector<10x1xf32>
    %cst_142 = arith.constant 6.400000e+01 : f32
    %292 = vector.broadcast %cst_142 : f32 to vector<10x1xf32>
    %293 = arith.divf %291, %292 : vector<10x1xf32>
    %294 = vector.broadcast %286 : vector<10x1xf32> to vector<10x64xf32>
    %295 = arith.subf %264, %294 : vector<10x64xf32>
    %cst_143 = arith.constant 9.99999974E-6 : f32
    %296 = vector.broadcast %cst_143 : f32 to vector<10x1xf32>
    %297 = arith.addf %293, %296 : vector<10x1xf32>
    %298 = math.rsqrt %297 : vector<10x1xf32>
    %299 = vector.broadcast %298 : vector<10x1xf32> to vector<10x64xf32>
    %300 = arith.mulf %295, %299 : vector<10x64xf32>
    %301 = vector.broadcast %266 : vector<1x64xf32> to vector<10x64xf32>
    %302 = arith.mulf %300, %301 : vector<10x64xf32>
    %303 = vector.broadcast %268 : vector<1x64xf32> to vector<10x64xf32>
    %304 = arith.addf %302, %303 : vector<10x64xf32>
    %c1_144 = arith.constant 1 : index
    %c0_145 = arith.constant 0 : index
    %c0_146 = arith.constant 0 : index
    %c0_147 = arith.constant 0 : index
    %305 = vector.load %arg3[%c1_144, %c0_145, %c0_146, %c0_147] : memref<2x4x64x64xf32, #tpu.memory_space<vmem>>, vector<1x1x64x64xf32>
    %306 = vector.shape_cast %305 : vector<1x1x64x64xf32> to vector<64x64xf32>
    %cst_148 = arith.constant dense<0.000000e+00> : vector<10x64xf32>
    %307 = tpu.matmul %304, %306, %cst_148 {dimension_numbers = #tpu.dot_dimension_numbers<[1], [0], [0], [1], [0, 0, 1, 1], [], []>} : vector<10x64xf32>, vector<64x64xf32>, vector<10x64xf32> -> vector<10x64xf32>
    %308 = vector.broadcast %270 : vector<1x64xf32> to vector<10x64xf32>
    %309 = arith.addf %307, %308 : vector<10x64xf32>
    %cst_149 = arith.constant 2.500000e-01 : f32
    %310 = vector.broadcast %cst_149 : f32 to vector<10x64xf32>
    %311 = arith.mulf %309, %310 : vector<10x64xf32>
    %c1_150 = arith.constant 1 : index
    %c1_151 = arith.constant 1 : index
    %c0_152 = arith.constant 0 : index
    %c0_153 = arith.constant 0 : index
    %312 = vector.load %arg3[%c1_150, %c1_151, %c0_152, %c0_153] : memref<2x4x64x64xf32, #tpu.memory_space<vmem>>, vector<1x1x64x64xf32>
    %313 = vector.shape_cast %312 : vector<1x1x64x64xf32> to vector<64x64xf32>
    %cst_154 = arith.constant dense<0.000000e+00> : vector<10x64xf32>
    %314 = tpu.matmul %304, %313, %cst_154 {dimension_numbers = #tpu.dot_dimension_numbers<[1], [0], [0], [1], [0, 0, 1, 1], [], []>} : vector<10x64xf32>, vector<64x64xf32>, vector<10x64xf32> -> vector<10x64xf32>
    %315 = vector.broadcast %272 : vector<1x64xf32> to vector<10x64xf32>
    %316 = arith.addf %314, %315 : vector<10x64xf32>
    %c1_155 = arith.constant 1 : index
    %c2_156 = arith.constant 2 : index
    %c0_157 = arith.constant 0 : index
    %c0_158 = arith.constant 0 : index
    %317 = vector.load %arg3[%c1_155, %c2_156, %c0_157, %c0_158] : memref<2x4x64x64xf32, #tpu.memory_space<vmem>>, vector<1x1x64x64xf32>
    %318 = vector.shape_cast %317 : vector<1x1x64x64xf32> to vector<64x64xf32>
    %cst_159 = arith.constant dense<0.000000e+00> : vector<10x64xf32>
    %319 = tpu.matmul %304, %318, %cst_159 {dimension_numbers = #tpu.dot_dimension_numbers<[1], [0], [0], [1], [0, 0, 1, 1], [], []>} : vector<10x64xf32>, vector<64x64xf32>, vector<10x64xf32> -> vector<10x64xf32>
    %320 = vector.broadcast %274 : vector<1x64xf32> to vector<10x64xf32>
    %321 = arith.addf %319, %320 : vector<10x64xf32>
    %cst_160 = arith.constant 0.000000e+00 : f32
    %322 = vector.broadcast %cst_160 : f32 to vector<10x64xf32>
    %323 = vector.broadcast %37 : vector<1x64xf32> to vector<10x64xf32>
    %324 = arith.mulf %311, %323 : vector<10x64xf32>
    %cst_161 = arith.constant dense<0.000000e+00> : vector<10x10xf32>
    %325 = tpu.matmul %324, %316, %cst_161 {dimension_numbers = #tpu.dot_dimension_numbers<[1], [1], [0], [0], [0, 0, 1, 0], [], []>} : vector<10x64xf32>, vector<10x64xf32>, vector<10x10xf32> -> vector<10x10xf32>
    %326 = arith.addf %325, %89 : vector<10x10xf32>
    %cst_162 = arith.constant dense<0xFF800000> : vector<10xf32>
    %327 = vector.multi_reduction <maximumf>, %326, %cst_162 [1] : vector<10x10xf32> to vector<10xf32>
    %328 = vector.shape_cast %327 : vector<10xf32> to vector<10x1xf32>
    %329 = vector.broadcast %328 : vector<10x1xf32> to vector<10x10xf32>
    %330 = arith.subf %326, %329 : vector<10x10xf32>
    %331 = math.exp %330 : vector<10x10xf32>
    %cst_163 = arith.constant dense<0.000000e+00> : vector<10xf32>
    %332 = vector.multi_reduction <add>, %331, %cst_163 [1] : vector<10x10xf32> to vector<10xf32>
    %333 = vector.shape_cast %332 : vector<10xf32> to vector<10x1xf32>
    %334 = vector.broadcast %333 : vector<10x1xf32> to vector<10x10xf32>
    %335 = arith.divf %331, %334 : vector<10x10xf32>
    %336 = vector.broadcast %37 : vector<1x64xf32> to vector<10x64xf32>
    %337 = arith.mulf %321, %336 : vector<10x64xf32>
    %cst_164 = arith.constant dense<0.000000e+00> : vector<10x64xf32>
    %338 = tpu.matmul %335, %337, %cst_164 {dimension_numbers = #tpu.dot_dimension_numbers<[1], [0], [0], [1], [0, 0, 1, 1], [], []>} : vector<10x10xf32>, vector<10x64xf32>, vector<10x64xf32> -> vector<10x64xf32>
    %339 = arith.addf %322, %338 : vector<10x64xf32>
    %340 = vector.broadcast %45 : vector<1x64xf32> to vector<10x64xf32>
    %341 = arith.mulf %311, %340 : vector<10x64xf32>
    %cst_165 = arith.constant dense<0.000000e+00> : vector<10x10xf32>
    %342 = tpu.matmul %341, %316, %cst_165 {dimension_numbers = #tpu.dot_dimension_numbers<[1], [1], [0], [0], [0, 0, 1, 0], [], []>} : vector<10x64xf32>, vector<10x64xf32>, vector<10x10xf32> -> vector<10x10xf32>
    %343 = arith.addf %342, %89 : vector<10x10xf32>
    %cst_166 = arith.constant dense<0xFF800000> : vector<10xf32>
    %344 = vector.multi_reduction <maximumf>, %343, %cst_166 [1] : vector<10x10xf32> to vector<10xf32>
    %345 = vector.shape_cast %344 : vector<10xf32> to vector<10x1xf32>
    %346 = vector.broadcast %345 : vector<10x1xf32> to vector<10x10xf32>
    %347 = arith.subf %343, %346 : vector<10x10xf32>
    %348 = math.exp %347 : vector<10x10xf32>
    %cst_167 = arith.constant dense<0.000000e+00> : vector<10xf32>
    %349 = vector.multi_reduction <add>, %348, %cst_167 [1] : vector<10x10xf32> to vector<10xf32>
    %350 = vector.shape_cast %349 : vector<10xf32> to vector<10x1xf32>
    %351 = vector.broadcast %350 : vector<10x1xf32> to vector<10x10xf32>
    %352 = arith.divf %348, %351 : vector<10x10xf32>
    %353 = vector.broadcast %45 : vector<1x64xf32> to vector<10x64xf32>
    %354 = arith.mulf %321, %353 : vector<10x64xf32>
    %cst_168 = arith.constant dense<0.000000e+00> : vector<10x64xf32>
    %355 = tpu.matmul %352, %354, %cst_168 {dimension_numbers = #tpu.dot_dimension_numbers<[1], [0], [0], [1], [0, 0, 1, 1], [], []>} : vector<10x10xf32>, vector<10x64xf32>, vector<10x64xf32> -> vector<10x64xf32>
    %356 = arith.addf %339, %355 : vector<10x64xf32>
    %357 = vector.broadcast %53 : vector<1x64xf32> to vector<10x64xf32>
    %358 = arith.mulf %311, %357 : vector<10x64xf32>
    %cst_169 = arith.constant dense<0.000000e+00> : vector<10x10xf32>
    %359 = tpu.matmul %358, %316, %cst_169 {dimension_numbers = #tpu.dot_dimension_numbers<[1], [1], [0], [0], [0, 0, 1, 0], [], []>} : vector<10x64xf32>, vector<10x64xf32>, vector<10x10xf32> -> vector<10x10xf32>
    %360 = arith.addf %359, %89 : vector<10x10xf32>
    %cst_170 = arith.constant dense<0xFF800000> : vector<10xf32>
    %361 = vector.multi_reduction <maximumf>, %360, %cst_170 [1] : vector<10x10xf32> to vector<10xf32>
    %362 = vector.shape_cast %361 : vector<10xf32> to vector<10x1xf32>
    %363 = vector.broadcast %362 : vector<10x1xf32> to vector<10x10xf32>
    %364 = arith.subf %360, %363 : vector<10x10xf32>
    %365 = math.exp %364 : vector<10x10xf32>
    %cst_171 = arith.constant dense<0.000000e+00> : vector<10xf32>
    %366 = vector.multi_reduction <add>, %365, %cst_171 [1] : vector<10x10xf32> to vector<10xf32>
    %367 = vector.shape_cast %366 : vector<10xf32> to vector<10x1xf32>
    %368 = vector.broadcast %367 : vector<10x1xf32> to vector<10x10xf32>
    %369 = arith.divf %365, %368 : vector<10x10xf32>
    %370 = vector.broadcast %53 : vector<1x64xf32> to vector<10x64xf32>
    %371 = arith.mulf %321, %370 : vector<10x64xf32>
    %cst_172 = arith.constant dense<0.000000e+00> : vector<10x64xf32>
    %372 = tpu.matmul %369, %371, %cst_172 {dimension_numbers = #tpu.dot_dimension_numbers<[1], [0], [0], [1], [0, 0, 1, 1], [], []>} : vector<10x10xf32>, vector<10x64xf32>, vector<10x64xf32> -> vector<10x64xf32>
    %373 = arith.addf %356, %372 : vector<10x64xf32>
    %374 = vector.broadcast %61 : vector<1x64xf32> to vector<10x64xf32>
    %375 = arith.mulf %311, %374 : vector<10x64xf32>
    %cst_173 = arith.constant dense<0.000000e+00> : vector<10x10xf32>
    %376 = tpu.matmul %375, %316, %cst_173 {dimension_numbers = #tpu.dot_dimension_numbers<[1], [1], [0], [0], [0, 0, 1, 0], [], []>} : vector<10x64xf32>, vector<10x64xf32>, vector<10x10xf32> -> vector<10x10xf32>
    %377 = arith.addf %376, %89 : vector<10x10xf32>
    %cst_174 = arith.constant dense<0xFF800000> : vector<10xf32>
    %378 = vector.multi_reduction <maximumf>, %377, %cst_174 [1] : vector<10x10xf32> to vector<10xf32>
    %379 = vector.shape_cast %378 : vector<10xf32> to vector<10x1xf32>
    %380 = vector.broadcast %379 : vector<10x1xf32> to vector<10x10xf32>
    %381 = arith.subf %377, %380 : vector<10x10xf32>
    %382 = math.exp %381 : vector<10x10xf32>
    %cst_175 = arith.constant dense<0.000000e+00> : vector<10xf32>
    %383 = vector.multi_reduction <add>, %382, %cst_175 [1] : vector<10x10xf32> to vector<10xf32>
    %384 = vector.shape_cast %383 : vector<10xf32> to vector<10x1xf32>
    %385 = vector.broadcast %384 : vector<10x1xf32> to vector<10x10xf32>
    %386 = arith.divf %382, %385 : vector<10x10xf32>
    %387 = vector.broadcast %61 : vector<1x64xf32> to vector<10x64xf32>
    %388 = arith.mulf %321, %387 : vector<10x64xf32>
    %cst_176 = arith.constant dense<0.000000e+00> : vector<10x64xf32>
    %389 = tpu.matmul %386, %388, %cst_176 {dimension_numbers = #tpu.dot_dimension_numbers<[1], [0], [0], [1], [0, 0, 1, 1], [], []>} : vector<10x10xf32>, vector<10x64xf32>, vector<10x64xf32> -> vector<10x64xf32>
    %390 = arith.addf %373, %389 : vector<10x64xf32>
    %c1_177 = arith.constant 1 : index
    %c3_178 = arith.constant 3 : index
    %c0_179 = arith.constant 0 : index
    %c0_180 = arith.constant 0 : index
    %391 = vector.load %arg3[%c1_177, %c3_178, %c0_179, %c0_180] : memref<2x4x64x64xf32, #tpu.memory_space<vmem>>, vector<1x1x64x64xf32>
    %392 = vector.shape_cast %391 : vector<1x1x64x64xf32> to vector<64x64xf32>
    %cst_181 = arith.constant dense<0.000000e+00> : vector<10x64xf32>
    %393 = tpu.matmul %390, %392, %cst_181 {dimension_numbers = #tpu.dot_dimension_numbers<[1], [0], [0], [1], [0, 0, 1, 1], [], []>} : vector<10x64xf32>, vector<64x64xf32>, vector<10x64xf32> -> vector<10x64xf32>
    %394 = arith.addf %264, %393 : vector<10x64xf32>
    %395 = vector.broadcast %276 : vector<1x64xf32> to vector<10x64xf32>
    %396 = arith.addf %394, %395 : vector<10x64xf32>
    %cst_182 = arith.constant dense<0.000000e+00> : vector<10xf32>
    %397 = vector.multi_reduction <add>, %396, %cst_182 [1] : vector<10x64xf32> to vector<10xf32>
    %398 = vector.shape_cast %397 : vector<10xf32> to vector<10x1xf32>
    %cst_183 = arith.constant 6.400000e+01 : f32
    %399 = vector.broadcast %cst_183 : f32 to vector<10x1xf32>
    %400 = arith.divf %398, %399 : vector<10x1xf32>
    %401 = vector.broadcast %400 : vector<10x1xf32> to vector<10x64xf32>
    %402 = arith.subf %396, %401 : vector<10x64xf32>
    %403 = arith.mulf %402, %402 : vector<10x64xf32>
    %cst_184 = arith.constant dense<0.000000e+00> : vector<10xf32>
    %404 = vector.multi_reduction <add>, %403, %cst_184 [1] : vector<10x64xf32> to vector<10xf32>
    %405 = vector.shape_cast %404 : vector<10xf32> to vector<10x1xf32>
    %cst_185 = arith.constant 6.400000e+01 : f32
    %406 = vector.broadcast %cst_185 : f32 to vector<10x1xf32>
    %407 = arith.divf %405, %406 : vector<10x1xf32>
    %408 = vector.broadcast %400 : vector<10x1xf32> to vector<10x64xf32>
    %409 = arith.subf %396, %408 : vector<10x64xf32>
    %cst_186 = arith.constant 9.99999974E-6 : f32
    %410 = vector.broadcast %cst_186 : f32 to vector<10x1xf32>
    %411 = arith.addf %407, %410 : vector<10x1xf32>
    %412 = math.rsqrt %411 : vector<10x1xf32>
    %413 = vector.broadcast %412 : vector<10x1xf32> to vector<10x64xf32>
    %414 = arith.mulf %409, %413 : vector<10x64xf32>
    %415 = vector.broadcast %278 : vector<1x64xf32> to vector<10x64xf32>
    %416 = arith.mulf %414, %415 : vector<10x64xf32>
    %417 = vector.broadcast %280 : vector<1x64xf32> to vector<10x64xf32>
    %418 = arith.addf %416, %417 : vector<10x64xf32>
    %c1_187 = arith.constant 1 : index
    %c0_188 = arith.constant 0 : index
    %c0_189 = arith.constant 0 : index
    %c0_190 = arith.constant 0 : index
    %419 = vector.load %arg4[%c1_187, %c0_188, %c0_189, %c0_190] : memref<2x2x256x64xf32, #tpu.memory_space<vmem>>, vector<1x1x256x64xf32>
    %420 = vector.shape_cast %419 : vector<1x1x256x64xf32> to vector<256x64xf32>
    %cst_191 = arith.constant dense<0.000000e+00> : vector<10x256xf32>
    %421 = tpu.matmul %418, %420, %cst_191 {dimension_numbers = #tpu.dot_dimension_numbers<[1], [1], [0], [0], [0, 0, 1, 0], [], []>} : vector<10x64xf32>, vector<256x64xf32>, vector<10x256xf32> -> vector<10x256xf32>
    %c1_192 = arith.constant 1 : index
    %c0_193 = arith.constant 0 : index
    %c0_194 = arith.constant 0 : index
    %422 = vector.load %arg6[%c1_192, %c0_193, %c0_194] : memref<2x1x256xf32, #tpu.memory_space<vmem>>, vector<1x1x256xf32>
    %423 = vector.shape_cast %422 : vector<1x1x256xf32> to vector<1x256xf32>
    %424 = vector.broadcast %423 : vector<1x256xf32> to vector<10x256xf32>
    %425 = arith.addf %421, %424 : vector<10x256xf32>
    %cst_195 = arith.constant 1.702000e+00 : f32
    %426 = vector.broadcast %cst_195 : f32 to vector<10x256xf32>
    %427 = arith.mulf %426, %425 : vector<10x256xf32>
    %428 = arith.negf %427 : vector<10x256xf32>
    %429 = math.exp %428 : vector<10x256xf32>
    %cst_196 = arith.constant 1.000000e+00 : f32
    %430 = vector.broadcast %cst_196 : f32 to vector<10x256xf32>
    %431 = arith.addf %430, %429 : vector<10x256xf32>
    %432 = arith.divf %430, %431 : vector<10x256xf32>
    %433 = arith.mulf %425, %432 : vector<10x256xf32>
    %c1_197 = arith.constant 1 : index
    %c1_198 = arith.constant 1 : index
    %c0_199 = arith.constant 0 : index
    %c0_200 = arith.constant 0 : index
    %434 = vector.load %arg4[%c1_197, %c1_198, %c0_199, %c0_200] : memref<2x2x256x64xf32, #tpu.memory_space<vmem>>, vector<1x1x256x64xf32>
    %435 = vector.shape_cast %434 : vector<1x1x256x64xf32> to vector<256x64xf32>
    %cst_201 = arith.constant dense<0.000000e+00> : vector<10x64xf32>
    %436 = tpu.matmul %433, %435, %cst_201 {dimension_numbers = #tpu.dot_dimension_numbers<[1], [0], [0], [1], [0, 0, 1, 1], [], []>} : vector<10x256xf32>, vector<256x64xf32>, vector<10x64xf32> -> vector<10x64xf32>
    %437 = arith.addf %396, %436 : vector<10x64xf32>
    %438 = vector.broadcast %282 : vector<1x64xf32> to vector<10x64xf32>
    %439 = arith.addf %437, %438 : vector<10x64xf32>
    %c64 = arith.constant 64 : index
    %c0_202 = arith.constant 0 : index
    %440 = vector.load %arg11[%c64, %c0_202] : memref<147x32xf32, #tpu.memory_space<vmem>>, vector<64x32xf32>
    %c146 = arith.constant 146 : index
    %c0_203 = arith.constant 0 : index
    %441 = vector.load %arg11[%c146, %c0_203] : memref<147x32xf32, #tpu.memory_space<vmem>>, vector<1x32xf32>
    %cst_204 = arith.constant dense<0.000000e+00> : vector<10x32xf32>
    %442 = tpu.matmul %439, %440, %cst_204 {dimension_numbers = #tpu.dot_dimension_numbers<[1], [0], [0], [1], [0, 0, 1, 1], [], []>} : vector<10x64xf32>, vector<64x32xf32>, vector<10x32xf32> -> vector<10x32xf32>
    %443 = vector.broadcast %441 : vector<1x32xf32> to vector<10x32xf32>
    %444 = arith.addf %442, %443 : vector<10x32xf32>
    %c0_205 = arith.constant 0 : index
    %c0_206 = arith.constant 0 : index
    %445 = vector.load %arg11[%c0_205, %c0_206] : memref<147x32xf32, #tpu.memory_space<vmem>>, vector<64x32xf32>
    %c128 = arith.constant 128 : index
    %c0_207 = arith.constant 0 : index
    %446 = vector.load %arg11[%c128, %c0_207] : memref<147x32xf32, #tpu.memory_space<vmem>>, vector<16x32xf32>
    %c144 = arith.constant 144 : index
    %c0_208 = arith.constant 0 : index
    %447 = vector.load %arg11[%c144, %c0_208] : memref<147x32xf32, #tpu.memory_space<vmem>>, vector<1x32xf32>
    %c145 = arith.constant 145 : index
    %c0_209 = arith.constant 0 : index
    %448 = vector.load %arg11[%c145, %c0_209] : memref<147x32xf32, #tpu.memory_space<vmem>>, vector<1x32xf32>
    %449 = tpu.iota {dimensions = array<i32: 1>} : vector<16x64xi32>
    %c0_210 = arith.constant 0 : index
    %c0_211 = arith.constant 0 : index
    %450 = vector.load %arg1[%c0_210, %c0_211] : memref<16x1xi32, #tpu.memory_space<vmem>>, vector<16x1xi32>
    %451 = vector.broadcast %450 : vector<16x1xi32> to vector<16x64xi32>
    %452 = arith.cmpi eq, %449, %451 : vector<16x64xi32>
    %cst_212 = arith.constant 1.000000e+00 : f32
    %cst_213 = arith.constant 0.000000e+00 : f32
    %453 = vector.broadcast %cst_212 : f32 to vector<16x64xf32>
    %454 = vector.broadcast %cst_213 : f32 to vector<16x64xf32>
    %455 = arith.select %452, %453, %454 : vector<16x64xi1>, vector<16x64xf32>
    %cst_214 = arith.constant dense<0.000000e+00> : vector<16x32xf32>
    %456 = tpu.matmul %455, %445, %cst_214 {dimension_numbers = #tpu.dot_dimension_numbers<[1], [0], [0], [1], [0, 0, 1, 1], [], []>} : vector<16x64xf32>, vector<64x32xf32>, vector<16x32xf32> -> vector<16x32xf32>
    %457 = arith.addf %456, %446 : vector<16x32xf32>
    %458 = tpu.iota {dimensions = array<i32: 1>} : vector<1x32xi32>
    %c0_i32_215 = arith.constant 0 : i32
    %459 = vector.broadcast %c0_i32_215 : i32 to vector<1x32xi32>
    %460 = arith.cmpi sge, %458, %459 : vector<1x32xi32>
    %c16_i32_216 = arith.constant 16 : i32
    %461 = vector.broadcast %c16_i32_216 : i32 to vector<1x32xi32>
    %462 = arith.cmpi slt, %458, %461 : vector<1x32xi32>
    %463 = arith.andi %460, %462 : vector<1x32xi1>
    %cst_217 = arith.constant 1.000000e+00 : f32
    %cst_218 = arith.constant 0.000000e+00 : f32
    %464 = vector.broadcast %cst_217 : f32 to vector<1x32xf32>
    %465 = vector.broadcast %cst_218 : f32 to vector<1x32xf32>
    %466 = arith.select %463, %464, %465 : vector<1x32xi1>, vector<1x32xf32>
    %c16_i32_219 = arith.constant 16 : i32
    %467 = vector.broadcast %c16_i32_219 : i32 to vector<1x32xi32>
    %468 = arith.cmpi sge, %458, %467 : vector<1x32xi32>
    %c32_i32_220 = arith.constant 32 : i32
    %469 = vector.broadcast %c32_i32_220 : i32 to vector<1x32xi32>
    %470 = arith.cmpi slt, %458, %469 : vector<1x32xi32>
    %471 = arith.andi %468, %470 : vector<1x32xi1>
    %cst_221 = arith.constant 1.000000e+00 : f32
    %cst_222 = arith.constant 0.000000e+00 : f32
    %472 = vector.broadcast %cst_221 : f32 to vector<1x32xf32>
    %473 = vector.broadcast %cst_222 : f32 to vector<1x32xf32>
    %474 = arith.select %471, %472, %473 : vector<1x32xi1>, vector<1x32xf32>
    %475 = tpu.iota {dimensions = array<i32: 0>} : vector<16x16xi32>
    %476 = tpu.iota {dimensions = array<i32: 1>} : vector<16x16xi32>
    %c0_i32_223 = arith.constant 0 : i32
    %477 = vector.broadcast %c0_i32_223 : i32 to vector<16x16xi32>
    %478 = arith.cmpi sge, %475, %477 : vector<16x16xi32>
    %c8_i32 = arith.constant 8 : i32
    %479 = vector.broadcast %c8_i32 : i32 to vector<16x16xi32>
    %480 = arith.cmpi slt, %475, %479 : vector<16x16xi32>
    %481 = arith.andi %478, %480 : vector<16x16xi1>
    %c0_i32_224 = arith.constant 0 : i32
    %482 = vector.broadcast %c0_i32_224 : i32 to vector<16x16xi32>
    %483 = arith.cmpi sge, %476, %482 : vector<16x16xi32>
    %484 = arith.andi %481, %483 : vector<16x16xi1>
    %c8_i32_225 = arith.constant 8 : i32
    %485 = vector.broadcast %c8_i32_225 : i32 to vector<16x16xi32>
    %486 = arith.cmpi slt, %476, %485 : vector<16x16xi32>
    %487 = arith.andi %484, %486 : vector<16x16xi1>
    %c8_i32_226 = arith.constant 8 : i32
    %488 = vector.broadcast %c8_i32_226 : i32 to vector<16x16xi32>
    %489 = arith.cmpi sge, %475, %488 : vector<16x16xi32>
    %c16_i32_227 = arith.constant 16 : i32
    %490 = vector.broadcast %c16_i32_227 : i32 to vector<16x16xi32>
    %491 = arith.cmpi slt, %475, %490 : vector<16x16xi32>
    %492 = arith.andi %489, %491 : vector<16x16xi1>
    %c8_i32_228 = arith.constant 8 : i32
    %493 = vector.broadcast %c8_i32_228 : i32 to vector<16x16xi32>
    %494 = arith.cmpi sge, %476, %493 : vector<16x16xi32>
    %495 = arith.andi %492, %494 : vector<16x16xi1>
    %c16_i32_229 = arith.constant 16 : i32
    %496 = vector.broadcast %c16_i32_229 : i32 to vector<16x16xi32>
    %497 = arith.cmpi slt, %476, %496 : vector<16x16xi32>
    %498 = arith.andi %495, %497 : vector<16x16xi1>
    %499 = arith.ori %487, %498 : vector<16x16xi1>
    %500 = arith.cmpi sle, %476, %475 : vector<16x16xi32>
    %501 = arith.andi %499, %500 : vector<16x16xi1>
    %cst_230 = arith.constant 0.000000e+00 : f32
    %cst_231 = arith.constant -1.000000e+09 : f32
    %502 = vector.broadcast %cst_230 : f32 to vector<16x16xf32>
    %503 = vector.broadcast %cst_231 : f32 to vector<16x16xf32>
    %504 = arith.select %501, %502, %503 : vector<16x16xi1>, vector<16x16xf32>
    %c0_232 = arith.constant 0 : index
    %c0_233 = arith.constant 0 : index
    %c0_234 = arith.constant 0 : index
    %505 = vector.load %arg9[%c0_232, %c0_233, %c0_234] : memref<2x9x32xf32, #tpu.memory_space<vmem>>, vector<1x1x32xf32>
    %506 = vector.shape_cast %505 : vector<1x1x32xf32> to vector<1x32xf32>
    %c0_235 = arith.constant 0 : index
    %c1_236 = arith.constant 1 : index
    %c0_237 = arith.constant 0 : index
    %507 = vector.load %arg9[%c0_235, %c1_236, %c0_237] : memref<2x9x32xf32, #tpu.memory_space<vmem>>, vector<1x1x32xf32>
    %508 = vector.shape_cast %507 : vector<1x1x32xf32> to vector<1x32xf32>
    %c0_238 = arith.constant 0 : index
    %c2_239 = arith.constant 2 : index
    %c0_240 = arith.constant 0 : index
    %509 = vector.load %arg9[%c0_238, %c2_239, %c0_240] : memref<2x9x32xf32, #tpu.memory_space<vmem>>, vector<1x1x32xf32>
    %510 = vector.shape_cast %509 : vector<1x1x32xf32> to vector<1x32xf32>
    %c0_241 = arith.constant 0 : index
    %c3_242 = arith.constant 3 : index
    %c0_243 = arith.constant 0 : index
    %511 = vector.load %arg9[%c0_241, %c3_242, %c0_243] : memref<2x9x32xf32, #tpu.memory_space<vmem>>, vector<1x1x32xf32>
    %512 = vector.shape_cast %511 : vector<1x1x32xf32> to vector<1x32xf32>
    %c0_244 = arith.constant 0 : index
    %c4_245 = arith.constant 4 : index
    %c0_246 = arith.constant 0 : index
    %513 = vector.load %arg9[%c0_244, %c4_245, %c0_246] : memref<2x9x32xf32, #tpu.memory_space<vmem>>, vector<1x1x32xf32>
    %514 = vector.shape_cast %513 : vector<1x1x32xf32> to vector<1x32xf32>
    %c0_247 = arith.constant 0 : index
    %c5_248 = arith.constant 5 : index
    %c0_249 = arith.constant 0 : index
    %515 = vector.load %arg9[%c0_247, %c5_248, %c0_249] : memref<2x9x32xf32, #tpu.memory_space<vmem>>, vector<1x1x32xf32>
    %516 = vector.shape_cast %515 : vector<1x1x32xf32> to vector<1x32xf32>
    %c0_250 = arith.constant 0 : index
    %c6_251 = arith.constant 6 : index
    %c0_252 = arith.constant 0 : index
    %517 = vector.load %arg9[%c0_250, %c6_251, %c0_252] : memref<2x9x32xf32, #tpu.memory_space<vmem>>, vector<1x1x32xf32>
    %518 = vector.shape_cast %517 : vector<1x1x32xf32> to vector<1x32xf32>
    %c0_253 = arith.constant 0 : index
    %c7_254 = arith.constant 7 : index
    %c0_255 = arith.constant 0 : index
    %519 = vector.load %arg9[%c0_253, %c7_254, %c0_255] : memref<2x9x32xf32, #tpu.memory_space<vmem>>, vector<1x1x32xf32>
    %520 = vector.shape_cast %519 : vector<1x1x32xf32> to vector<1x32xf32>
    %c0_256 = arith.constant 0 : index
    %c8_257 = arith.constant 8 : index
    %c0_258 = arith.constant 0 : index
    %521 = vector.load %arg9[%c0_256, %c8_257, %c0_258] : memref<2x9x32xf32, #tpu.memory_space<vmem>>, vector<1x1x32xf32>
    %522 = vector.shape_cast %521 : vector<1x1x32xf32> to vector<1x32xf32>
    %cst_259 = arith.constant dense<0.000000e+00> : vector<16xf32>
    %523 = vector.multi_reduction <add>, %457, %cst_259 [1] : vector<16x32xf32> to vector<16xf32>
    %524 = vector.shape_cast %523 : vector<16xf32> to vector<16x1xf32>
    %cst_260 = arith.constant 3.200000e+01 : f32
    %525 = vector.broadcast %cst_260 : f32 to vector<16x1xf32>
    %526 = arith.divf %524, %525 : vector<16x1xf32>
    %527 = vector.broadcast %526 : vector<16x1xf32> to vector<16x32xf32>
    %528 = arith.subf %457, %527 : vector<16x32xf32>
    %529 = arith.mulf %528, %528 : vector<16x32xf32>
    %cst_261 = arith.constant dense<0.000000e+00> : vector<16xf32>
    %530 = vector.multi_reduction <add>, %529, %cst_261 [1] : vector<16x32xf32> to vector<16xf32>
    %531 = vector.shape_cast %530 : vector<16xf32> to vector<16x1xf32>
    %cst_262 = arith.constant 3.200000e+01 : f32
    %532 = vector.broadcast %cst_262 : f32 to vector<16x1xf32>
    %533 = arith.divf %531, %532 : vector<16x1xf32>
    %534 = vector.broadcast %526 : vector<16x1xf32> to vector<16x32xf32>
    %535 = arith.subf %457, %534 : vector<16x32xf32>
    %cst_263 = arith.constant 9.99999974E-6 : f32
    %536 = vector.broadcast %cst_263 : f32 to vector<16x1xf32>
    %537 = arith.addf %533, %536 : vector<16x1xf32>
    %538 = math.rsqrt %537 : vector<16x1xf32>
    %539 = vector.broadcast %538 : vector<16x1xf32> to vector<16x32xf32>
    %540 = arith.mulf %535, %539 : vector<16x32xf32>
    %541 = vector.broadcast %506 : vector<1x32xf32> to vector<16x32xf32>
    %542 = arith.mulf %540, %541 : vector<16x32xf32>
    %543 = vector.broadcast %508 : vector<1x32xf32> to vector<16x32xf32>
    %544 = arith.addf %542, %543 : vector<16x32xf32>
    %c0_264 = arith.constant 0 : index
    %c0_265 = arith.constant 0 : index
    %c0_266 = arith.constant 0 : index
    %c0_267 = arith.constant 0 : index
    %545 = vector.load %arg7[%c0_264, %c0_265, %c0_266, %c0_267] : memref<2x4x32x32xf32, #tpu.memory_space<vmem>>, vector<1x1x32x32xf32>
    %546 = vector.shape_cast %545 : vector<1x1x32x32xf32> to vector<32x32xf32>
    %cst_268 = arith.constant dense<0.000000e+00> : vector<16x32xf32>
    %547 = tpu.matmul %544, %546, %cst_268 {dimension_numbers = #tpu.dot_dimension_numbers<[1], [0], [0], [1], [0, 0, 1, 1], [], []>} : vector<16x32xf32>, vector<32x32xf32>, vector<16x32xf32> -> vector<16x32xf32>
    %548 = vector.broadcast %510 : vector<1x32xf32> to vector<16x32xf32>
    %549 = arith.addf %547, %548 : vector<16x32xf32>
    %cst_269 = arith.constant 2.500000e-01 : f32
    %550 = vector.broadcast %cst_269 : f32 to vector<16x32xf32>
    %551 = arith.mulf %549, %550 : vector<16x32xf32>
    %c0_270 = arith.constant 0 : index
    %c1_271 = arith.constant 1 : index
    %c0_272 = arith.constant 0 : index
    %c0_273 = arith.constant 0 : index
    %552 = vector.load %arg7[%c0_270, %c1_271, %c0_272, %c0_273] : memref<2x4x32x32xf32, #tpu.memory_space<vmem>>, vector<1x1x32x32xf32>
    %553 = vector.shape_cast %552 : vector<1x1x32x32xf32> to vector<32x32xf32>
    %cst_274 = arith.constant dense<0.000000e+00> : vector<16x32xf32>
    %554 = tpu.matmul %544, %553, %cst_274 {dimension_numbers = #tpu.dot_dimension_numbers<[1], [0], [0], [1], [0, 0, 1, 1], [], []>} : vector<16x32xf32>, vector<32x32xf32>, vector<16x32xf32> -> vector<16x32xf32>
    %555 = vector.broadcast %512 : vector<1x32xf32> to vector<16x32xf32>
    %556 = arith.addf %554, %555 : vector<16x32xf32>
    %c0_275 = arith.constant 0 : index
    %c2_276 = arith.constant 2 : index
    %c0_277 = arith.constant 0 : index
    %c0_278 = arith.constant 0 : index
    %557 = vector.load %arg7[%c0_275, %c2_276, %c0_277, %c0_278] : memref<2x4x32x32xf32, #tpu.memory_space<vmem>>, vector<1x1x32x32xf32>
    %558 = vector.shape_cast %557 : vector<1x1x32x32xf32> to vector<32x32xf32>
    %cst_279 = arith.constant dense<0.000000e+00> : vector<16x32xf32>
    %559 = tpu.matmul %544, %558, %cst_279 {dimension_numbers = #tpu.dot_dimension_numbers<[1], [0], [0], [1], [0, 0, 1, 1], [], []>} : vector<16x32xf32>, vector<32x32xf32>, vector<16x32xf32> -> vector<16x32xf32>
    %560 = vector.broadcast %514 : vector<1x32xf32> to vector<16x32xf32>
    %561 = arith.addf %559, %560 : vector<16x32xf32>
    %cst_280 = arith.constant 0.000000e+00 : f32
    %562 = vector.broadcast %cst_280 : f32 to vector<16x32xf32>
    %563 = vector.broadcast %466 : vector<1x32xf32> to vector<16x32xf32>
    %564 = arith.mulf %551, %563 : vector<16x32xf32>
    %cst_281 = arith.constant dense<0.000000e+00> : vector<16x16xf32>
    %565 = tpu.matmul %564, %556, %cst_281 {dimension_numbers = #tpu.dot_dimension_numbers<[1], [1], [0], [0], [0, 0, 1, 0], [], []>} : vector<16x32xf32>, vector<16x32xf32>, vector<16x16xf32> -> vector<16x16xf32>
    %566 = arith.addf %565, %504 : vector<16x16xf32>
    %cst_282 = arith.constant dense<0xFF800000> : vector<16xf32>
    %567 = vector.multi_reduction <maximumf>, %566, %cst_282 [1] : vector<16x16xf32> to vector<16xf32>
    %568 = vector.shape_cast %567 : vector<16xf32> to vector<16x1xf32>
    %569 = vector.broadcast %568 : vector<16x1xf32> to vector<16x16xf32>
    %570 = arith.subf %566, %569 : vector<16x16xf32>
    %571 = math.exp %570 : vector<16x16xf32>
    %cst_283 = arith.constant dense<0.000000e+00> : vector<16xf32>
    %572 = vector.multi_reduction <add>, %571, %cst_283 [1] : vector<16x16xf32> to vector<16xf32>
    %573 = vector.shape_cast %572 : vector<16xf32> to vector<16x1xf32>
    %574 = vector.broadcast %573 : vector<16x1xf32> to vector<16x16xf32>
    %575 = arith.divf %571, %574 : vector<16x16xf32>
    %576 = vector.broadcast %466 : vector<1x32xf32> to vector<16x32xf32>
    %577 = arith.mulf %561, %576 : vector<16x32xf32>
    %cst_284 = arith.constant dense<0.000000e+00> : vector<16x32xf32>
    %578 = tpu.matmul %575, %577, %cst_284 {dimension_numbers = #tpu.dot_dimension_numbers<[1], [0], [0], [1], [0, 0, 1, 1], [], []>} : vector<16x16xf32>, vector<16x32xf32>, vector<16x32xf32> -> vector<16x32xf32>
    %579 = arith.addf %562, %578 : vector<16x32xf32>
    %580 = vector.broadcast %474 : vector<1x32xf32> to vector<16x32xf32>
    %581 = arith.mulf %551, %580 : vector<16x32xf32>
    %cst_285 = arith.constant dense<0.000000e+00> : vector<16x16xf32>
    %582 = tpu.matmul %581, %556, %cst_285 {dimension_numbers = #tpu.dot_dimension_numbers<[1], [1], [0], [0], [0, 0, 1, 0], [], []>} : vector<16x32xf32>, vector<16x32xf32>, vector<16x16xf32> -> vector<16x16xf32>
    %583 = arith.addf %582, %504 : vector<16x16xf32>
    %cst_286 = arith.constant dense<0xFF800000> : vector<16xf32>
    %584 = vector.multi_reduction <maximumf>, %583, %cst_286 [1] : vector<16x16xf32> to vector<16xf32>
    %585 = vector.shape_cast %584 : vector<16xf32> to vector<16x1xf32>
    %586 = vector.broadcast %585 : vector<16x1xf32> to vector<16x16xf32>
    %587 = arith.subf %583, %586 : vector<16x16xf32>
    %588 = math.exp %587 : vector<16x16xf32>
    %cst_287 = arith.constant dense<0.000000e+00> : vector<16xf32>
    %589 = vector.multi_reduction <add>, %588, %cst_287 [1] : vector<16x16xf32> to vector<16xf32>
    %590 = vector.shape_cast %589 : vector<16xf32> to vector<16x1xf32>
    %591 = vector.broadcast %590 : vector<16x1xf32> to vector<16x16xf32>
    %592 = arith.divf %588, %591 : vector<16x16xf32>
    %593 = vector.broadcast %474 : vector<1x32xf32> to vector<16x32xf32>
    %594 = arith.mulf %561, %593 : vector<16x32xf32>
    %cst_288 = arith.constant dense<0.000000e+00> : vector<16x32xf32>
    %595 = tpu.matmul %592, %594, %cst_288 {dimension_numbers = #tpu.dot_dimension_numbers<[1], [0], [0], [1], [0, 0, 1, 1], [], []>} : vector<16x16xf32>, vector<16x32xf32>, vector<16x32xf32> -> vector<16x32xf32>
    %596 = arith.addf %579, %595 : vector<16x32xf32>
    %c0_289 = arith.constant 0 : index
    %c3_290 = arith.constant 3 : index
    %c0_291 = arith.constant 0 : index
    %c0_292 = arith.constant 0 : index
    %597 = vector.load %arg7[%c0_289, %c3_290, %c0_291, %c0_292] : memref<2x4x32x32xf32, #tpu.memory_space<vmem>>, vector<1x1x32x32xf32>
    %598 = vector.shape_cast %597 : vector<1x1x32x32xf32> to vector<32x32xf32>
    %cst_293 = arith.constant dense<0.000000e+00> : vector<16x32xf32>
    %599 = tpu.matmul %596, %598, %cst_293 {dimension_numbers = #tpu.dot_dimension_numbers<[1], [0], [0], [1], [0, 0, 1, 1], [], []>} : vector<16x32xf32>, vector<32x32xf32>, vector<16x32xf32> -> vector<16x32xf32>
    %600 = arith.addf %457, %599 : vector<16x32xf32>
    %601 = vector.broadcast %516 : vector<1x32xf32> to vector<16x32xf32>
    %602 = arith.addf %600, %601 : vector<16x32xf32>
    %cst_294 = arith.constant dense<0.000000e+00> : vector<16xf32>
    %603 = vector.multi_reduction <add>, %602, %cst_294 [1] : vector<16x32xf32> to vector<16xf32>
    %604 = vector.shape_cast %603 : vector<16xf32> to vector<16x1xf32>
    %cst_295 = arith.constant 3.200000e+01 : f32
    %605 = vector.broadcast %cst_295 : f32 to vector<16x1xf32>
    %606 = arith.divf %604, %605 : vector<16x1xf32>
    %607 = vector.broadcast %606 : vector<16x1xf32> to vector<16x32xf32>
    %608 = arith.subf %602, %607 : vector<16x32xf32>
    %609 = arith.mulf %608, %608 : vector<16x32xf32>
    %cst_296 = arith.constant dense<0.000000e+00> : vector<16xf32>
    %610 = vector.multi_reduction <add>, %609, %cst_296 [1] : vector<16x32xf32> to vector<16xf32>
    %611 = vector.shape_cast %610 : vector<16xf32> to vector<16x1xf32>
    %cst_297 = arith.constant 3.200000e+01 : f32
    %612 = vector.broadcast %cst_297 : f32 to vector<16x1xf32>
    %613 = arith.divf %611, %612 : vector<16x1xf32>
    %614 = vector.broadcast %606 : vector<16x1xf32> to vector<16x32xf32>
    %615 = arith.subf %602, %614 : vector<16x32xf32>
    %cst_298 = arith.constant 9.99999974E-6 : f32
    %616 = vector.broadcast %cst_298 : f32 to vector<16x1xf32>
    %617 = arith.addf %613, %616 : vector<16x1xf32>
    %618 = math.rsqrt %617 : vector<16x1xf32>
    %619 = vector.broadcast %618 : vector<16x1xf32> to vector<16x32xf32>
    %620 = arith.mulf %615, %619 : vector<16x32xf32>
    %621 = vector.broadcast %518 : vector<1x32xf32> to vector<16x32xf32>
    %622 = arith.mulf %620, %621 : vector<16x32xf32>
    %623 = vector.broadcast %520 : vector<1x32xf32> to vector<16x32xf32>
    %624 = arith.addf %622, %623 : vector<16x32xf32>
    %c0_299 = arith.constant 0 : index
    %c0_300 = arith.constant 0 : index
    %c0_301 = arith.constant 0 : index
    %c0_302 = arith.constant 0 : index
    %625 = vector.load %arg8[%c0_299, %c0_300, %c0_301, %c0_302] : memref<2x2x128x32xf32, #tpu.memory_space<vmem>>, vector<1x1x128x32xf32>
    %626 = vector.shape_cast %625 : vector<1x1x128x32xf32> to vector<128x32xf32>
    %cst_303 = arith.constant dense<0.000000e+00> : vector<16x128xf32>
    %627 = tpu.matmul %624, %626, %cst_303 {dimension_numbers = #tpu.dot_dimension_numbers<[1], [1], [0], [0], [0, 0, 1, 0], [], []>} : vector<16x32xf32>, vector<128x32xf32>, vector<16x128xf32> -> vector<16x128xf32>
    %c0_304 = arith.constant 0 : index
    %c0_305 = arith.constant 0 : index
    %c0_306 = arith.constant 0 : index
    %628 = vector.load %arg10[%c0_304, %c0_305, %c0_306] : memref<2x1x128xf32, #tpu.memory_space<vmem>>, vector<1x1x128xf32>
    %629 = vector.shape_cast %628 : vector<1x1x128xf32> to vector<1x128xf32>
    %630 = vector.broadcast %629 : vector<1x128xf32> to vector<16x128xf32>
    %631 = arith.addf %627, %630 : vector<16x128xf32>
    %cst_307 = arith.constant 1.702000e+00 : f32
    %632 = vector.broadcast %cst_307 : f32 to vector<16x128xf32>
    %633 = arith.mulf %632, %631 : vector<16x128xf32>
    %634 = arith.negf %633 : vector<16x128xf32>
    %635 = math.exp %634 : vector<16x128xf32>
    %cst_308 = arith.constant 1.000000e+00 : f32
    %636 = vector.broadcast %cst_308 : f32 to vector<16x128xf32>
    %637 = arith.addf %636, %635 : vector<16x128xf32>
    %638 = arith.divf %636, %637 : vector<16x128xf32>
    %639 = arith.mulf %631, %638 : vector<16x128xf32>
    %c0_309 = arith.constant 0 : index
    %c1_310 = arith.constant 1 : index
    %c0_311 = arith.constant 0 : index
    %c0_312 = arith.constant 0 : index
    %640 = vector.load %arg8[%c0_309, %c1_310, %c0_311, %c0_312] : memref<2x2x128x32xf32, #tpu.memory_space<vmem>>, vector<1x1x128x32xf32>
    %641 = vector.shape_cast %640 : vector<1x1x128x32xf32> to vector<128x32xf32>
    %cst_313 = arith.constant dense<0.000000e+00> : vector<16x32xf32>
    %642 = tpu.matmul %639, %641, %cst_313 {dimension_numbers = #tpu.dot_dimension_numbers<[1], [0], [0], [1], [0, 0, 1, 1], [], []>} : vector<16x128xf32>, vector<128x32xf32>, vector<16x32xf32> -> vector<16x32xf32>
    %643 = arith.addf %602, %642 : vector<16x32xf32>
    %644 = vector.broadcast %522 : vector<1x32xf32> to vector<16x32xf32>
    %645 = arith.addf %643, %644 : vector<16x32xf32>
    %c1_314 = arith.constant 1 : index
    %c0_315 = arith.constant 0 : index
    %c0_316 = arith.constant 0 : index
    %646 = vector.load %arg9[%c1_314, %c0_315, %c0_316] : memref<2x9x32xf32, #tpu.memory_space<vmem>>, vector<1x1x32xf32>
    %647 = vector.shape_cast %646 : vector<1x1x32xf32> to vector<1x32xf32>
    %c1_317 = arith.constant 1 : index
    %c1_318 = arith.constant 1 : index
    %c0_319 = arith.constant 0 : index
    %648 = vector.load %arg9[%c1_317, %c1_318, %c0_319] : memref<2x9x32xf32, #tpu.memory_space<vmem>>, vector<1x1x32xf32>
    %649 = vector.shape_cast %648 : vector<1x1x32xf32> to vector<1x32xf32>
    %c1_320 = arith.constant 1 : index
    %c2_321 = arith.constant 2 : index
    %c0_322 = arith.constant 0 : index
    %650 = vector.load %arg9[%c1_320, %c2_321, %c0_322] : memref<2x9x32xf32, #tpu.memory_space<vmem>>, vector<1x1x32xf32>
    %651 = vector.shape_cast %650 : vector<1x1x32xf32> to vector<1x32xf32>
    %c1_323 = arith.constant 1 : index
    %c3_324 = arith.constant 3 : index
    %c0_325 = arith.constant 0 : index
    %652 = vector.load %arg9[%c1_323, %c3_324, %c0_325] : memref<2x9x32xf32, #tpu.memory_space<vmem>>, vector<1x1x32xf32>
    %653 = vector.shape_cast %652 : vector<1x1x32xf32> to vector<1x32xf32>
    %c1_326 = arith.constant 1 : index
    %c4_327 = arith.constant 4 : index
    %c0_328 = arith.constant 0 : index
    %654 = vector.load %arg9[%c1_326, %c4_327, %c0_328] : memref<2x9x32xf32, #tpu.memory_space<vmem>>, vector<1x1x32xf32>
    %655 = vector.shape_cast %654 : vector<1x1x32xf32> to vector<1x32xf32>
    %c1_329 = arith.constant 1 : index
    %c5_330 = arith.constant 5 : index
    %c0_331 = arith.constant 0 : index
    %656 = vector.load %arg9[%c1_329, %c5_330, %c0_331] : memref<2x9x32xf32, #tpu.memory_space<vmem>>, vector<1x1x32xf32>
    %657 = vector.shape_cast %656 : vector<1x1x32xf32> to vector<1x32xf32>
    %c1_332 = arith.constant 1 : index
    %c6_333 = arith.constant 6 : index
    %c0_334 = arith.constant 0 : index
    %658 = vector.load %arg9[%c1_332, %c6_333, %c0_334] : memref<2x9x32xf32, #tpu.memory_space<vmem>>, vector<1x1x32xf32>
    %659 = vector.shape_cast %658 : vector<1x1x32xf32> to vector<1x32xf32>
    %c1_335 = arith.constant 1 : index
    %c7_336 = arith.constant 7 : index
    %c0_337 = arith.constant 0 : index
    %660 = vector.load %arg9[%c1_335, %c7_336, %c0_337] : memref<2x9x32xf32, #tpu.memory_space<vmem>>, vector<1x1x32xf32>
    %661 = vector.shape_cast %660 : vector<1x1x32xf32> to vector<1x32xf32>
    %c1_338 = arith.constant 1 : index
    %c8_339 = arith.constant 8 : index
    %c0_340 = arith.constant 0 : index
    %662 = vector.load %arg9[%c1_338, %c8_339, %c0_340] : memref<2x9x32xf32, #tpu.memory_space<vmem>>, vector<1x1x32xf32>
    %663 = vector.shape_cast %662 : vector<1x1x32xf32> to vector<1x32xf32>
    %cst_341 = arith.constant dense<0.000000e+00> : vector<16xf32>
    %664 = vector.multi_reduction <add>, %645, %cst_341 [1] : vector<16x32xf32> to vector<16xf32>
    %665 = vector.shape_cast %664 : vector<16xf32> to vector<16x1xf32>
    %cst_342 = arith.constant 3.200000e+01 : f32
    %666 = vector.broadcast %cst_342 : f32 to vector<16x1xf32>
    %667 = arith.divf %665, %666 : vector<16x1xf32>
    %668 = vector.broadcast %667 : vector<16x1xf32> to vector<16x32xf32>
    %669 = arith.subf %645, %668 : vector<16x32xf32>
    %670 = arith.mulf %669, %669 : vector<16x32xf32>
    %cst_343 = arith.constant dense<0.000000e+00> : vector<16xf32>
    %671 = vector.multi_reduction <add>, %670, %cst_343 [1] : vector<16x32xf32> to vector<16xf32>
    %672 = vector.shape_cast %671 : vector<16xf32> to vector<16x1xf32>
    %cst_344 = arith.constant 3.200000e+01 : f32
    %673 = vector.broadcast %cst_344 : f32 to vector<16x1xf32>
    %674 = arith.divf %672, %673 : vector<16x1xf32>
    %675 = vector.broadcast %667 : vector<16x1xf32> to vector<16x32xf32>
    %676 = arith.subf %645, %675 : vector<16x32xf32>
    %cst_345 = arith.constant 9.99999974E-6 : f32
    %677 = vector.broadcast %cst_345 : f32 to vector<16x1xf32>
    %678 = arith.addf %674, %677 : vector<16x1xf32>
    %679 = math.rsqrt %678 : vector<16x1xf32>
    %680 = vector.broadcast %679 : vector<16x1xf32> to vector<16x32xf32>
    %681 = arith.mulf %676, %680 : vector<16x32xf32>
    %682 = vector.broadcast %647 : vector<1x32xf32> to vector<16x32xf32>
    %683 = arith.mulf %681, %682 : vector<16x32xf32>
    %684 = vector.broadcast %649 : vector<1x32xf32> to vector<16x32xf32>
    %685 = arith.addf %683, %684 : vector<16x32xf32>
    %c1_346 = arith.constant 1 : index
    %c0_347 = arith.constant 0 : index
    %c0_348 = arith.constant 0 : index
    %c0_349 = arith.constant 0 : index
    %686 = vector.load %arg7[%c1_346, %c0_347, %c0_348, %c0_349] : memref<2x4x32x32xf32, #tpu.memory_space<vmem>>, vector<1x1x32x32xf32>
    %687 = vector.shape_cast %686 : vector<1x1x32x32xf32> to vector<32x32xf32>
    %cst_350 = arith.constant dense<0.000000e+00> : vector<16x32xf32>
    %688 = tpu.matmul %685, %687, %cst_350 {dimension_numbers = #tpu.dot_dimension_numbers<[1], [0], [0], [1], [0, 0, 1, 1], [], []>} : vector<16x32xf32>, vector<32x32xf32>, vector<16x32xf32> -> vector<16x32xf32>
    %689 = vector.broadcast %651 : vector<1x32xf32> to vector<16x32xf32>
    %690 = arith.addf %688, %689 : vector<16x32xf32>
    %cst_351 = arith.constant 2.500000e-01 : f32
    %691 = vector.broadcast %cst_351 : f32 to vector<16x32xf32>
    %692 = arith.mulf %690, %691 : vector<16x32xf32>
    %c1_352 = arith.constant 1 : index
    %c1_353 = arith.constant 1 : index
    %c0_354 = arith.constant 0 : index
    %c0_355 = arith.constant 0 : index
    %693 = vector.load %arg7[%c1_352, %c1_353, %c0_354, %c0_355] : memref<2x4x32x32xf32, #tpu.memory_space<vmem>>, vector<1x1x32x32xf32>
    %694 = vector.shape_cast %693 : vector<1x1x32x32xf32> to vector<32x32xf32>
    %cst_356 = arith.constant dense<0.000000e+00> : vector<16x32xf32>
    %695 = tpu.matmul %685, %694, %cst_356 {dimension_numbers = #tpu.dot_dimension_numbers<[1], [0], [0], [1], [0, 0, 1, 1], [], []>} : vector<16x32xf32>, vector<32x32xf32>, vector<16x32xf32> -> vector<16x32xf32>
    %696 = vector.broadcast %653 : vector<1x32xf32> to vector<16x32xf32>
    %697 = arith.addf %695, %696 : vector<16x32xf32>
    %c1_357 = arith.constant 1 : index
    %c2_358 = arith.constant 2 : index
    %c0_359 = arith.constant 0 : index
    %c0_360 = arith.constant 0 : index
    %698 = vector.load %arg7[%c1_357, %c2_358, %c0_359, %c0_360] : memref<2x4x32x32xf32, #tpu.memory_space<vmem>>, vector<1x1x32x32xf32>
    %699 = vector.shape_cast %698 : vector<1x1x32x32xf32> to vector<32x32xf32>
    %cst_361 = arith.constant dense<0.000000e+00> : vector<16x32xf32>
    %700 = tpu.matmul %685, %699, %cst_361 {dimension_numbers = #tpu.dot_dimension_numbers<[1], [0], [0], [1], [0, 0, 1, 1], [], []>} : vector<16x32xf32>, vector<32x32xf32>, vector<16x32xf32> -> vector<16x32xf32>
    %701 = vector.broadcast %655 : vector<1x32xf32> to vector<16x32xf32>
    %702 = arith.addf %700, %701 : vector<16x32xf32>
    %cst_362 = arith.constant 0.000000e+00 : f32
    %703 = vector.broadcast %cst_362 : f32 to vector<16x32xf32>
    %704 = vector.broadcast %466 : vector<1x32xf32> to vector<16x32xf32>
    %705 = arith.mulf %692, %704 : vector<16x32xf32>
    %cst_363 = arith.constant dense<0.000000e+00> : vector<16x16xf32>
    %706 = tpu.matmul %705, %697, %cst_363 {dimension_numbers = #tpu.dot_dimension_numbers<[1], [1], [0], [0], [0, 0, 1, 0], [], []>} : vector<16x32xf32>, vector<16x32xf32>, vector<16x16xf32> -> vector<16x16xf32>
    %707 = arith.addf %706, %504 : vector<16x16xf32>
    %cst_364 = arith.constant dense<0xFF800000> : vector<16xf32>
    %708 = vector.multi_reduction <maximumf>, %707, %cst_364 [1] : vector<16x16xf32> to vector<16xf32>
    %709 = vector.shape_cast %708 : vector<16xf32> to vector<16x1xf32>
    %710 = vector.broadcast %709 : vector<16x1xf32> to vector<16x16xf32>
    %711 = arith.subf %707, %710 : vector<16x16xf32>
    %712 = math.exp %711 : vector<16x16xf32>
    %cst_365 = arith.constant dense<0.000000e+00> : vector<16xf32>
    %713 = vector.multi_reduction <add>, %712, %cst_365 [1] : vector<16x16xf32> to vector<16xf32>
    %714 = vector.shape_cast %713 : vector<16xf32> to vector<16x1xf32>
    %715 = vector.broadcast %714 : vector<16x1xf32> to vector<16x16xf32>
    %716 = arith.divf %712, %715 : vector<16x16xf32>
    %717 = vector.broadcast %466 : vector<1x32xf32> to vector<16x32xf32>
    %718 = arith.mulf %702, %717 : vector<16x32xf32>
    %cst_366 = arith.constant dense<0.000000e+00> : vector<16x32xf32>
    %719 = tpu.matmul %716, %718, %cst_366 {dimension_numbers = #tpu.dot_dimension_numbers<[1], [0], [0], [1], [0, 0, 1, 1], [], []>} : vector<16x16xf32>, vector<16x32xf32>, vector<16x32xf32> -> vector<16x32xf32>
    %720 = arith.addf %703, %719 : vector<16x32xf32>
    %721 = vector.broadcast %474 : vector<1x32xf32> to vector<16x32xf32>
    %722 = arith.mulf %692, %721 : vector<16x32xf32>
    %cst_367 = arith.constant dense<0.000000e+00> : vector<16x16xf32>
    %723 = tpu.matmul %722, %697, %cst_367 {dimension_numbers = #tpu.dot_dimension_numbers<[1], [1], [0], [0], [0, 0, 1, 0], [], []>} : vector<16x32xf32>, vector<16x32xf32>, vector<16x16xf32> -> vector<16x16xf32>
    %724 = arith.addf %723, %504 : vector<16x16xf32>
    %cst_368 = arith.constant dense<0xFF800000> : vector<16xf32>
    %725 = vector.multi_reduction <maximumf>, %724, %cst_368 [1] : vector<16x16xf32> to vector<16xf32>
    %726 = vector.shape_cast %725 : vector<16xf32> to vector<16x1xf32>
    %727 = vector.broadcast %726 : vector<16x1xf32> to vector<16x16xf32>
    %728 = arith.subf %724, %727 : vector<16x16xf32>
    %729 = math.exp %728 : vector<16x16xf32>
    %cst_369 = arith.constant dense<0.000000e+00> : vector<16xf32>
    %730 = vector.multi_reduction <add>, %729, %cst_369 [1] : vector<16x16xf32> to vector<16xf32>
    %731 = vector.shape_cast %730 : vector<16xf32> to vector<16x1xf32>
    %732 = vector.broadcast %731 : vector<16x1xf32> to vector<16x16xf32>
    %733 = arith.divf %729, %732 : vector<16x16xf32>
    %734 = vector.broadcast %474 : vector<1x32xf32> to vector<16x32xf32>
    %735 = arith.mulf %702, %734 : vector<16x32xf32>
    %cst_370 = arith.constant dense<0.000000e+00> : vector<16x32xf32>
    %736 = tpu.matmul %733, %735, %cst_370 {dimension_numbers = #tpu.dot_dimension_numbers<[1], [0], [0], [1], [0, 0, 1, 1], [], []>} : vector<16x16xf32>, vector<16x32xf32>, vector<16x32xf32> -> vector<16x32xf32>
    %737 = arith.addf %720, %736 : vector<16x32xf32>
    %c1_371 = arith.constant 1 : index
    %c3_372 = arith.constant 3 : index
    %c0_373 = arith.constant 0 : index
    %c0_374 = arith.constant 0 : index
    %738 = vector.load %arg7[%c1_371, %c3_372, %c0_373, %c0_374] : memref<2x4x32x32xf32, #tpu.memory_space<vmem>>, vector<1x1x32x32xf32>
    %739 = vector.shape_cast %738 : vector<1x1x32x32xf32> to vector<32x32xf32>
    %cst_375 = arith.constant dense<0.000000e+00> : vector<16x32xf32>
    %740 = tpu.matmul %737, %739, %cst_375 {dimension_numbers = #tpu.dot_dimension_numbers<[1], [0], [0], [1], [0, 0, 1, 1], [], []>} : vector<16x32xf32>, vector<32x32xf32>, vector<16x32xf32> -> vector<16x32xf32>
    %741 = arith.addf %645, %740 : vector<16x32xf32>
    %742 = vector.broadcast %657 : vector<1x32xf32> to vector<16x32xf32>
    %743 = arith.addf %741, %742 : vector<16x32xf32>
    %cst_376 = arith.constant dense<0.000000e+00> : vector<16xf32>
    %744 = vector.multi_reduction <add>, %743, %cst_376 [1] : vector<16x32xf32> to vector<16xf32>
    %745 = vector.shape_cast %744 : vector<16xf32> to vector<16x1xf32>
    %cst_377 = arith.constant 3.200000e+01 : f32
    %746 = vector.broadcast %cst_377 : f32 to vector<16x1xf32>
    %747 = arith.divf %745, %746 : vector<16x1xf32>
    %748 = vector.broadcast %747 : vector<16x1xf32> to vector<16x32xf32>
    %749 = arith.subf %743, %748 : vector<16x32xf32>
    %750 = arith.mulf %749, %749 : vector<16x32xf32>
    %cst_378 = arith.constant dense<0.000000e+00> : vector<16xf32>
    %751 = vector.multi_reduction <add>, %750, %cst_378 [1] : vector<16x32xf32> to vector<16xf32>
    %752 = vector.shape_cast %751 : vector<16xf32> to vector<16x1xf32>
    %cst_379 = arith.constant 3.200000e+01 : f32
    %753 = vector.broadcast %cst_379 : f32 to vector<16x1xf32>
    %754 = arith.divf %752, %753 : vector<16x1xf32>
    %755 = vector.broadcast %747 : vector<16x1xf32> to vector<16x32xf32>
    %756 = arith.subf %743, %755 : vector<16x32xf32>
    %cst_380 = arith.constant 9.99999974E-6 : f32
    %757 = vector.broadcast %cst_380 : f32 to vector<16x1xf32>
    %758 = arith.addf %754, %757 : vector<16x1xf32>
    %759 = math.rsqrt %758 : vector<16x1xf32>
    %760 = vector.broadcast %759 : vector<16x1xf32> to vector<16x32xf32>
    %761 = arith.mulf %756, %760 : vector<16x32xf32>
    %762 = vector.broadcast %659 : vector<1x32xf32> to vector<16x32xf32>
    %763 = arith.mulf %761, %762 : vector<16x32xf32>
    %764 = vector.broadcast %661 : vector<1x32xf32> to vector<16x32xf32>
    %765 = arith.addf %763, %764 : vector<16x32xf32>
    %c1_381 = arith.constant 1 : index
    %c0_382 = arith.constant 0 : index
    %c0_383 = arith.constant 0 : index
    %c0_384 = arith.constant 0 : index
    %766 = vector.load %arg8[%c1_381, %c0_382, %c0_383, %c0_384] : memref<2x2x128x32xf32, #tpu.memory_space<vmem>>, vector<1x1x128x32xf32>
    %767 = vector.shape_cast %766 : vector<1x1x128x32xf32> to vector<128x32xf32>
    %cst_385 = arith.constant dense<0.000000e+00> : vector<16x128xf32>
    %768 = tpu.matmul %765, %767, %cst_385 {dimension_numbers = #tpu.dot_dimension_numbers<[1], [1], [0], [0], [0, 0, 1, 0], [], []>} : vector<16x32xf32>, vector<128x32xf32>, vector<16x128xf32> -> vector<16x128xf32>
    %c1_386 = arith.constant 1 : index
    %c0_387 = arith.constant 0 : index
    %c0_388 = arith.constant 0 : index
    %769 = vector.load %arg10[%c1_386, %c0_387, %c0_388] : memref<2x1x128xf32, #tpu.memory_space<vmem>>, vector<1x1x128xf32>
    %770 = vector.shape_cast %769 : vector<1x1x128xf32> to vector<1x128xf32>
    %771 = vector.broadcast %770 : vector<1x128xf32> to vector<16x128xf32>
    %772 = arith.addf %768, %771 : vector<16x128xf32>
    %cst_389 = arith.constant 1.702000e+00 : f32
    %773 = vector.broadcast %cst_389 : f32 to vector<16x128xf32>
    %774 = arith.mulf %773, %772 : vector<16x128xf32>
    %775 = arith.negf %774 : vector<16x128xf32>
    %776 = math.exp %775 : vector<16x128xf32>
    %cst_390 = arith.constant 1.000000e+00 : f32
    %777 = vector.broadcast %cst_390 : f32 to vector<16x128xf32>
    %778 = arith.addf %777, %776 : vector<16x128xf32>
    %779 = arith.divf %777, %778 : vector<16x128xf32>
    %780 = arith.mulf %772, %779 : vector<16x128xf32>
    %c1_391 = arith.constant 1 : index
    %c1_392 = arith.constant 1 : index
    %c0_393 = arith.constant 0 : index
    %c0_394 = arith.constant 0 : index
    %781 = vector.load %arg8[%c1_391, %c1_392, %c0_393, %c0_394] : memref<2x2x128x32xf32, #tpu.memory_space<vmem>>, vector<1x1x128x32xf32>
    %782 = vector.shape_cast %781 : vector<1x1x128x32xf32> to vector<128x32xf32>
    %cst_395 = arith.constant dense<0.000000e+00> : vector<16x32xf32>
    %783 = tpu.matmul %780, %782, %cst_395 {dimension_numbers = #tpu.dot_dimension_numbers<[1], [0], [0], [1], [0, 0, 1, 1], [], []>} : vector<16x128xf32>, vector<128x32xf32>, vector<16x32xf32> -> vector<16x32xf32>
    %784 = arith.addf %743, %783 : vector<16x32xf32>
    %785 = vector.broadcast %663 : vector<1x32xf32> to vector<16x32xf32>
    %786 = arith.addf %784, %785 : vector<16x32xf32>
    %cst_396 = arith.constant dense<0.000000e+00> : vector<16xf32>
    %787 = vector.multi_reduction <add>, %786, %cst_396 [1] : vector<16x32xf32> to vector<16xf32>
    %788 = vector.shape_cast %787 : vector<16xf32> to vector<16x1xf32>
    %cst_397 = arith.constant 3.200000e+01 : f32
    %789 = vector.broadcast %cst_397 : f32 to vector<16x1xf32>
    %790 = arith.divf %788, %789 : vector<16x1xf32>
    %791 = vector.broadcast %790 : vector<16x1xf32> to vector<16x32xf32>
    %792 = arith.subf %786, %791 : vector<16x32xf32>
    %793 = arith.mulf %792, %792 : vector<16x32xf32>
    %cst_398 = arith.constant dense<0.000000e+00> : vector<16xf32>
    %794 = vector.multi_reduction <add>, %793, %cst_398 [1] : vector<16x32xf32> to vector<16xf32>
    %795 = vector.shape_cast %794 : vector<16xf32> to vector<16x1xf32>
    %cst_399 = arith.constant 3.200000e+01 : f32
    %796 = vector.broadcast %cst_399 : f32 to vector<16x1xf32>
    %797 = arith.divf %795, %796 : vector<16x1xf32>
    %798 = vector.broadcast %790 : vector<16x1xf32> to vector<16x32xf32>
    %799 = arith.subf %786, %798 : vector<16x32xf32>
    %cst_400 = arith.constant 9.99999974E-6 : f32
    %800 = vector.broadcast %cst_400 : f32 to vector<16x1xf32>
    %801 = arith.addf %797, %800 : vector<16x1xf32>
    %802 = math.rsqrt %801 : vector<16x1xf32>
    %803 = vector.broadcast %802 : vector<16x1xf32> to vector<16x32xf32>
    %804 = arith.mulf %799, %803 : vector<16x32xf32>
    %805 = vector.broadcast %447 : vector<1x32xf32> to vector<16x32xf32>
    %806 = arith.mulf %804, %805 : vector<16x32xf32>
    %807 = vector.broadcast %448 : vector<1x32xf32> to vector<16x32xf32>
    %808 = arith.addf %806, %807 : vector<16x32xf32>
    %809 = vector.extract_strided_slice %808 {offsets = [0, 0], sizes = [8, 32], strides = [1, 1]} : vector<16x32xf32> to vector<8x32xf32>
    %810 = vector.extract_strided_slice %444 {offsets = [0, 0], sizes = [5, 32], strides = [1, 1]} : vector<10x32xf32> to vector<5x32xf32>
    %811 = vector.extract_strided_slice %808 {offsets = [8, 0], sizes = [8, 32], strides = [1, 1]} : vector<16x32xf32> to vector<8x32xf32>
    %812 = vector.extract_strided_slice %444 {offsets = [5, 0], sizes = [5, 32], strides = [1, 1]} : vector<10x32xf32> to vector<5x32xf32>
    %813 = tpu.concatenate %809, %810, %811, %812 in 0 : vector<8x32xf32>, vector<5x32xf32>, vector<8x32xf32>, vector<5x32xf32> -> vector<26x32xf32>
    %c0_401 = arith.constant 0 : index
    %c0_402 = arith.constant 0 : index
    %814 = vector.load %arg12[%c0_401, %c0_402] : memref<26x32xf32, #tpu.memory_space<vmem>>, vector<26x32xf32>
    tpu.vector_store %arg12[%c0_401, %c0_402], %813 {strides = array<i32>} : memref<26x32xf32, #tpu.memory_space<vmem>>, vector<26x32xf32>,
    return
  }
}

</mosaic_0001>

<llo_original>
// kernel: fine_tuned_clip_forward.1
$region0: #{fine_tuned_clip_forward.1}
  #allocation0 [shape = 'u32[]', space=smem, size = 0x4, offset = 0x4, fixed_abs, tag = 'smem constant byte address 0x4 - core index']
  #allocation1 [shape = 'u32[72,128]{1,0:T(1,128)}', space=vmem, size = 0x9000, scoped, tag = 'internal scratch']
  %s0 = inlined_call_operand.vmem [shape: f32[10,192], index: 0, kind: input, shape index: {}]
  %s1 = inlined_call_operand.vmem [shape: s32[16,1], index: 1, kind: input, shape index: {}]
  %s2 = inlined_call_operand.vmem [shape: f32[204,64], index: 2, kind: input, shape index: {}]
  %s3 = inlined_call_operand.vmem [shape: f32[2,4,64,64], index: 3, kind: input, shape index: {}]
  %s4 = inlined_call_operand.vmem [shape: f32[2,2,256,64], index: 4, kind: input, shape index: {}]
  %s5 = inlined_call_operand.vmem [shape: f32[2,9,64], index: 5, kind: input, shape index: {}]
  %s6 = inlined_call_operand.vmem [shape: f32[2,1,256], index: 6, kind: input, shape index: {}]
  %s7 = inlined_call_operand.vmem [shape: f32[2,4,32,32], index: 7, kind: input, shape index: {}]
  %s8 = inlined_call_operand.vmem [shape: f32[2,2,128,32], index: 8, kind: input, shape index: {}]
  %s9 = inlined_call_operand.vmem [shape: f32[2,9,32], index: 9, kind: input, shape index: {}]
  %s10 = inlined_call_operand.vmem [shape: f32[2,1,128], index: 10, kind: input, shape index: {}]
  %s11 = inlined_call_operand.vmem [shape: f32[147,32], index: 11, kind: input, shape index: {}]
  %s12 = inlined_call_operand.vmem [shape: f32[26,32], index: 12, kind: output, shape index: {}]
  %s13 = sld [smem:[#allocation0]]
  $region58: #{fine_tuned_clip_forward.1} parent=0
    _
  %s15 = ssub.s32 1, %s13
  %s16 = scalar_select 0, %s15, %s13
  // Predicated region
  $region2: #{fine_tuned_clip_forward.1} parent=0 // pred_check
    _
  $region3: #{fine_tuned_clip_forward.1} parent=0 // pred_check_branch
    %18 = sbr.rel (0) target = $region5
  $region4: #{fine_tuned_clip_forward.1} parent=0 // pred_region
    _
  $region5: #{fine_tuned_clip_forward.1} parent=0 // pred_fallthru
    _
  // Predicated region
  $region6: #{fine_tuned_clip_forward.1} parent=0 // pred_check
    _
  $region7: #{fine_tuned_clip_forward.1} parent=0 // pred_check_branch
    %20 = sbr.rel (0) target = $region9
  $region8: #{fine_tuned_clip_forward.1} parent=0 // pred_region
    _
  $region9: #{fine_tuned_clip_forward.1} parent=0 // pred_fallthru
    _
  // Predicated region
  $region10: #{fine_tuned_clip_forward.1} parent=0 // pred_check
    _
  $region11: #{fine_tuned_clip_forward.1} parent=0 // pred_check_branch
    %22 = sbr.rel (0) target = $region13
  $region12: #{fine_tuned_clip_forward.1} parent=0 // pred_region
    _
  $region13: #{fine_tuned_clip_forward.1} parent=0 // pred_fallthru
    _
  // Predicated region
  $region14: #{fine_tuned_clip_forward.1} parent=0 // pred_check
    _
  $region15: #{fine_tuned_clip_forward.1} parent=0 // pred_check_branch
    %24 = sbr.rel (0) target = $region17
  $region16: #{fine_tuned_clip_forward.1} parent=0 // pred_region
    _
  $region17: #{fine_tuned_clip_forward.1} parent=0 // pred_fallthru
    _
  // Predicated region
  $region18: #{fine_tuned_clip_forward.1} parent=0 // pred_check
    _
  $region19: #{fine_tuned_clip_forward.1} parent=0 // pred_check_branch
    %26 = sbr.rel (0) target = $region21
  $region20: #{fine_tuned_clip_forward.1} parent=0 // pred_region
    _
  $region21: #{fine_tuned_clip_forward.1} parent=0 // pred_fallthru
    _
  // Predicated region
  $region22: #{fine_tuned_clip_forward.1} parent=0 // pred_check
    _
  $region23: #{fine_tuned_clip_forward.1} parent=0 // pred_check_branch
    %28 = sbr.rel (0) target = $region25
  $region24: #{fine_tuned_clip_forward.1} parent=0 // pred_region
    _
  $region25: #{fine_tuned_clip_forward.1} parent=0 // pred_fallthru
    _
  // Predicated region
  $region26: #{fine_tuned_clip_forward.1} parent=0 // pred_check
    _
  $region27: #{fine_tuned_clip_forward.1} parent=0 // pred_check_branch
    %30 = sbr.rel (0) target = $region29
  $region28: #{fine_tuned_clip_forward.1} parent=0 // pred_region
    _
  $region29: #{fine_tuned_clip_forward.1} parent=0 // pred_fallthru
    _
  // Predicated region
  $region30: #{fine_tuned_clip_forward.1} parent=0 // pred_check
    _
  $region31: #{fine_tuned_clip_forward.1} parent=0 // pred_check_branch
    %32 = sbr.rel (0) target = $region33
  $region32: #{fine_tuned_clip_forward.1} parent=0 // pred_region
    _
  $region33: #{fine_tuned_clip_forward.1} parent=0 // pred_fallthru
    _
  // Predicated region
  $region34: #{fine_tuned_clip_forward.1} parent=0 // pred_check
    _
  $region35: #{fine_tuned_clip_forward.1} parent=0 // pred_check_branch
    %34 = sbr.rel (0) target = $region37
  $region36: #{fine_tuned_clip_forward.1} parent=0 // pred_region
    _
  $region37: #{fine_tuned_clip_forward.1} parent=0 // pred_fallthru
    _
  // Predicated region
  $region38: #{fine_tuned_clip_forward.1} parent=0 // pred_check
    _
  $region39: #{fine_tuned_clip_forward.1} parent=0 // pred_check_branch
    %36 = sbr.rel (0) target = $region41
  $region40: #{fine_tuned_clip_forward.1} parent=0 // pred_region
    _
  $region41: #{fine_tuned_clip_forward.1} parent=0 // pred_fallthru
    _
  // Predicated region
  $region42: #{fine_tuned_clip_forward.1} parent=0 // pred_check
    _
  $region43: #{fine_tuned_clip_forward.1} parent=0 // pred_check_branch
    %38 = sbr.rel (0) target = $region45
  $region44: #{fine_tuned_clip_forward.1} parent=0 // pred_region
    _
  $region45: #{fine_tuned_clip_forward.1} parent=0 // pred_fallthru
    _
  // Predicated region
  $region46: #{fine_tuned_clip_forward.1} parent=0 // pred_check
    _
  $region47: #{fine_tuned_clip_forward.1} parent=0 // pred_check_branch
    %40 = sbr.rel (0) target = $region49
  $region48: #{fine_tuned_clip_forward.1} parent=0 // pred_region
    _
  $region49: #{fine_tuned_clip_forward.1} parent=0 // pred_fallthru
    _
  %v41 = vld [vmem:[%s2] sm:$0xff]
  %v42 = vld [vmem:[%s2 + $0x8] sm:$0xff]
  %v43 = vld [vmem:[%s2 + $0x10] sm:$0xff]
  %v44 = vld [vmem:[%s2 + $0x18] sm:$0xff]
  %v45 = vld [vmem:[%s2 + $0x20] sm:$0xff]
  %v46 = vld [vmem:[%s2 + $0x28] sm:$0xff]
  %v47 = vld [vmem:[%s2 + $0x30] sm:$0xff]
  %v48 = vld [vmem:[%s2 + $0x38] sm:$0xff]
  %v49 = vld [vmem:[%s2 + $0x40] sm:$0xff]
  %v50 = vld [vmem:[%s2 + $0x48] sm:$0xff]
  %v51 = vld [vmem:[%s2 + $0x50] sm:$0xff]
  %v52 = vld [vmem:[%s2 + $0x58] sm:$0xff]
  %v53 = vld [vmem:[%s2 + $0x60] sm:$0xff]
  %v54 = vld [vmem:[%s2 + $0x68] sm:$0xff]
  %v55 = vld [vmem:[%s2 + $0x70] sm:$0xff]
  %v56 = vld [vmem:[%s2 + $0x78] sm:$0xff]
  %v57 = vld [vmem:[%s2 + $0x80] sm:$0xff]
  %v58 = vld [vmem:[%s2 + $0x88] sm:$0xff]
  %v59 = vld [vmem:[%s2 + $0x90] sm:$0xff]
  %v60 = vld [vmem:[%s2 + $0x98] sm:$0xff]
  %v61 = vld [vmem:[%s2 + $0xa0] sm:$0xff]
  %v62 = vld [vmem:[%s2 + $0xa8] sm:$0xff]
  %v63 = vld [vmem:[%s2 + $0xb0] sm:$0xff]
  %v64 = vld [vmem:[%s2 + $0xb8] sm:$0xff]
  %v65 = vld [vmem:[%s2 + $0xc0] sm:$0xff]
  %v66 = vld [vmem:[%s2 + $0xc8] sm:$0x3]
  %v67 = vld [vmem:[%s2 + $0xca] sm:$0x1]
  %v68 = vld [vmem:[%s2 + $0xcb] sm:$0x1]
  %v69 = vld [vmem:[%s0] sm:$0xff]
  %v70 = vld [vmem:[%s0 + $0x8] sm:$0xff]
  %v71 = vld [vmem:[%s0 + $0x10] sm:$0x3]
  %v72 = vld [vmem:[%s0 + $0x18] sm:$0x3]
  %vm73 = vcmask 523264
  %v75 = vsel %vm73, %v70, 0
  %v78 = vsel %vm73, %v72, 0
  %80 = vmatpush.msra.mxu0 %v56
  %81 = vmatpush.msra.mxu0 %v55
  %82 = vmatpush.msra.mxu0 %v54
  %83 = vmatpush.msra.mxu0 %v53
  %84 = vmatpush.msra.mxu0 %v52
  %85 = vmatpush.msra.mxu0 %v51
  %86 = vmatpush.msra.mxu0 %v50
  %87 = vmatpush.msra.mxu0 %v49
  %88 = vmatpush.msra.mxu0 %v48
  %89 = vmatpush.msra.mxu0 %v47
  %90 = vmatpush.msra.mxu0 %v46
  %91 = vmatpush.msra.mxu0 %v45
  %92 = vmatpush.msra.mxu0 %v44
  %93 = vmatpush.msra.mxu0 %v43
  %94 = vmatpush.msra.mxu0 %v42
  %95 = vmatpush.msra.mxu0 %v41
  %96 = vmatmul.f32.gmra.mxu0 %v69
  %v97 = vpop.f32.mrf.mxu0
  %v98 = vadd.f32 %v65, %v97
  %99 = vmatmul.f32.gmra.mxu0 %v71
  %v100 = vpop.f32.mrf.mxu0
  %v101 = vadd.f32 %v66, %v100
  %102 = vdwg.mxu0
  %103 = vmatpush.msra.mxu0 0.0
  %104 = vmatpush.msra.mxu0 0.0
  %105 = vmatpush.msra.mxu0 0.0
  %106 = vmatpush.msra.mxu0 0.0
  %107 = vmatpush.msra.mxu0 0.0
  %108 = vmatpush.msra.mxu0 0.0
  %109 = vmatpush.msra.mxu0 0.0
  %110 = vmatpush.msra.mxu0 0.0
  %111 = vmatpush.msra.mxu0 %v64
  %112 = vmatpush.msra.mxu0 %v63
  %113 = vmatpush.msra.mxu0 %v62
  %114 = vmatpush.msra.mxu0 %v61
  %115 = vmatpush.msra.mxu0 %v60
  %116 = vmatpush.msra.mxu0 %v59
  %117 = vmatpush.msra.mxu0 %v58
  %118 = vmatpush.msra.mxu0 %v57
  %119 = vmatmul.f32.gmra.mxu0 %v75
  %v120 = vpop.f32.mrf.mxu0
  %v121 = vadd.f32 %v98, %v120
  %122 = vmatmul.f32.gmra.mxu0 %v78
  %v123 = vpop.f32.mrf.mxu0
  %v124 = vadd.f32 %v101, %v123
  %125 = vdwg.mxu0
  %v126 = vsel %vm73, %v121, 0.0
  %127 = vadd.xlane.f32.xlu0 %v126
  %v128 = vpop.xlane.xlu0 %127
  %vm129 = vcmask 517120
  %v130 = vsel %vm129, %v124, 0.0
  %131 = vadd.xlane.f32.xlu0 %v130
  %v132 = vpop.xlane.xlu0 %131
  %v133 = vrcp.pop 64.0
  %v134 = vmul.f32 64.0, %v133
  %v135 = vsub.f32 1.0, %v134
  %v136 = vmul.f32 %v133, %v135
  %v137 = vadd.f32 %v133, %v136
  %vm138 = vweird.f32 %v133
  %v139 = vsel %vm138, %v133, %v137
  %v140 = vmul.f32 %v128, %v139
  %v141 = vmul.f32 %v132, %v139
  %v142 = vsub.f32 %v121, %v140
  %v143 = vsub.f32 %v124, %v141
  %v144 = vmul.f32 %v142, %v142
  %v145 = vmul.f32 %v143, %v143
  %v146 = vsel %vm73, %v144, 0.0
  %147 = vadd.xlane.f32.xlu0 %v146
  %v148 = vpop.xlane.xlu0 %147
  %v149 = vsel %vm129, %v145, 0.0
  %150 = vadd.xlane.f32.xlu0 %v149
  %v151 = vpop.xlane.xlu0 %150
  %v152 = vmul.f32 %v148, %v139
  %v153 = vmul.f32 %v151, %v139
  %v154 = vadd.f32 %v152, 1e-05
  %v155 = vadd.f32 %v153, 1e-05
  %v156 = vrsqrt.pop %v154
  %v157 = vmul.f32 %v156, %v154
  %v158 = vmul.f32 %v157, %v156
  %v159 = vmul.f32 0.5, %v158
  %v160 = vsub.f32 1.5, %v159
  %v161 = vmul.f32 %v156, %v160
  %vm162 = vweird.f32 %v154
  %vm163 = vweird.f32 %v156
  %vm164 = vmor %vm162, %vm163
  %v165 = vsel %vm164, %v156, %v161
  %v166 = vrsqrt.pop %v155
  %v167 = vmul.f32 %v166, %v155
  %v168 = vmul.f32 %v167, %v166
  %v169 = vmul.f32 0.5, %v168
  %v170 = vsub.f32 1.5, %v169
  %v171 = vmul.f32 %v166, %v170
  %vm172 = vweird.f32 %v155
  %vm173 = vweird.f32 %v166
  %vm174 = vmor %vm172, %vm173
  %v175 = vsel %vm174, %v166, %v171
  %v176 = vmul.f32 %v142, %v165
  %v177 = vmul.f32 %v143, %v175
  %v178 = vperm.slane %v67, 0
  %v179 = vmul.f32 %v176, %v178
  %v180 = vmul.f32 %v177, %v178
  %v181 = vperm.slane %v68, 0
  %v182 = vadd.f32 %v179, %v181
  %v183 = vadd.f32 %v180, %v181
  %v184 = vlaneseq
  %v185 = vand.u32 %v184, 127
  %vm186 = vcmp.ge.s32.totalorder %v185, 0
  %vm187 = vcmp.lt.s32.totalorder %v185, 16
  %vm188 = vmand %vm186, %vm187
  %v189 = vsel %vm188, 1.0, 0.0
  %vm190 = vcmp.ge.s32.totalorder %v185, 16
  %vm191 = vcmp.lt.s32.totalorder %v185, 32
  %vm192 = vmand %vm190, %vm191
  %v193 = vsel %vm192, 1.0, 0.0
  %vm194 = vcmp.ge.s32.totalorder %v185, 32
  %vm195 = vcmp.lt.s32.totalorder %v185, 48
  %vm196 = vmand %vm194, %vm195
  %v197 = vsel %vm196, 1.0, 0.0
  %vm198 = vcmp.ge.s32.totalorder %v185, 48
  %vm199 = vcmp.lt.s32.totalorder %v185, 64
  %vm200 = vmand %vm198, %vm199
  %v201 = vsel %vm200, 1.0, 0.0
  %v202 = vlaneseq
  %v203 = vshrl.u32 %v202, 7
  %v204 = vadd.s32 %v203, 8
  %vm205 = vcmp.ge.s32.totalorder %v203, 0
  %vm206 = vcmp.ge.s32.totalorder %v204, 0
  %vm207 = vcmp.lt.s32.totalorder %v203, 5
  %vm208 = vcmp.lt.s32.totalorder %v204, 5
  %vm209 = vmand %vm205, %vm207
  %vm210 = vmand %vm206, %vm208
  %vm211 = vmand %vm209, %vm186
  %vm212 = vmand %vm210, %vm186
  %vm213 = vcmp.lt.s32.totalorder %v185, 5
  %vm214 = vmand %vm211, %vm213
  %vm215 = vmand %vm212, %vm213
  %vm216 = vcmp.ge.s32.totalorder %v203, 5
  %vm217 = vcmp.ge.s32.totalorder %v204, 5
  %vm218 = vcmp.lt.s32.totalorder %v203, 10
  %vm219 = vcmp.lt.s32.totalorder %v204, 10
  %vm220 = vmand %vm216, %vm218
  %vm221 = vmand %vm217, %vm219
  %vm222 = vcmp.ge.s32.totalorder %v185, 5
  %vm223 = vmand %vm220, %vm222
  %vm224 = vmand %vm221, %vm222
  %vm225 = vcmp.lt.s32.totalorder %v185, 10
  %vm226 = vmand %vm223, %vm225
  %vm227 = vmand %vm224, %vm225
  %vm228 = vmor %vm214, %vm226
  %vm229 = vmor %vm215, %vm227
  %v230 = vsel %vm228, 0.0, -1e+09
  %v231 = vsel %vm229, 0.0, -1e+09
  %v232 = vld [vmem:[%s5] sm:$0x1]
  %v233 = vld [vmem:[%s5 + $0x1] sm:$0x1]
  %v234 = vld [vmem:[%s5 + $0x2] sm:$0x1]
  %v235 = vld [vmem:[%s5 + $0x3] sm:$0x1]
  %v236 = vld [vmem:[%s5 + $0x4] sm:$0x1]
  %v237 = vld [vmem:[%s5 + $0x5] sm:$0x1]
  %v238 = vld [vmem:[%s5 + $0x6] sm:$0x1]
  %v239 = vld [vmem:[%s5 + $0x7] sm:$0x1]
  %v240 = vld [vmem:[%s5 + $0x8] sm:$0x1]
  %v241 = vsel %vm73, %v182, 0.0
  %242 = vadd.xlane.f32.xlu0 %v241
  %v243 = vpop.xlane.xlu0 %242
  %v244 = vsel %vm129, %v183, 0.0
  %245 = vadd.xlane.f32.xlu0 %v244
  %v246 = vpop.xlane.xlu0 %245
  %v247 = vmul.f32 %v243, %v139
  %v248 = vmul.f32 %v246, %v139
  %v249 = vsub.f32 %v182, %v247
  %v250 = vsub.f32 %v183, %v248
  %v251 = vmul.f32 %v249, %v249
  %v252 = vmul.f32 %v250, %v250
  %v253 = vsel %vm73, %v251, 0.0
  %254 = vadd.xlane.f32.xlu0 %v253
  %v255 = vpop.xlane.xlu0 %254
  %v256 = vsel %vm129, %v252, 0.0
  %257 = vadd.xlane.f32.xlu0 %v256
  %v258 = vpop.xlane.xlu0 %257
  %v259 = vmul.f32 %v255, %v139
  %v260 = vmul.f32 %v258, %v139
  %v261 = vadd.f32 %v259, 1e-05
  %v262 = vadd.f32 %v260, 1e-05
  %v263 = vrsqrt.pop %v261
  %v264 = vmul.f32 %v263, %v261
  %v265 = vmul.f32 %v264, %v263
  %v266 = vmul.f32 0.5, %v265
  %v267 = vsub.f32 1.5, %v266
  %v268 = vmul.f32 %v263, %v267
  %vm269 = vweird.f32 %v261
  %vm270 = vweird.f32 %v263
  %vm271 = vmor %vm269, %vm270
  %v272 = vsel %vm271, %v263, %v268
  %v273 = vrsqrt.pop %v262
  %v274 = vmul.f32 %v273, %v262
  %v275 = vmul.f32 %v274, %v273
  %v276 = vmul.f32 0.5, %v275
  %v277 = vsub.f32 1.5, %v276
  %v278 = vmul.f32 %v273, %v277
  %vm279 = vweird.f32 %v262
  %vm280 = vweird.f32 %v273
  %vm281 = vmor %vm279, %vm280
  %v282 = vsel %vm281, %v273, %v278
  %v283 = vmul.f32 %v249, %v272
  %v284 = vmul.f32 %v250, %v282
  %v285 = vperm.slane %v232, 0
  %v286 = vmul.f32 %v283, %v285
  %v287 = vmul.f32 %v284, %v285
  %v288 = vperm.slane %v233, 0
  %v289 = vadd.f32 %v286, %v288
  %v290 = vadd.f32 %v287, %v288
  %v291 = vld [vmem:[%s3] sm:$0xff]
  %v292 = vld [vmem:[%s3 + $0x8] sm:$0xff]
  %v293 = vld [vmem:[%s3 + $0x10] sm:$0xff]
  %v294 = vld [vmem:[%s3 + $0x18] sm:$0xff]
  %v295 = vld [vmem:[%s3 + $0x20] sm:$0xff]
  %v296 = vld [vmem:[%s3 + $0x28] sm:$0xff]
  %v297 = vld [vmem:[%s3 + $0x30] sm:$0xff]
  %v298 = vld [vmem:[%s3 + $0x38] sm:$0xff]
  %v299 = vperm.slane %v234, 0
  %v301 = vsel %vm73, %v289, 0
  %v304 = vsel %vm73, %v290, 0
  %306 = vmatpush.msra.mxu0 0.0
  %307 = vmatpush.msra.mxu0 0.0
  %308 = vmatpush.msra.mxu0 0.0
  %309 = vmatpush.msra.mxu0 0.0
  %310 = vmatpush.msra.mxu0 0.0
  %311 = vmatpush.msra.mxu0 0.0
  %312 = vmatpush.msra.mxu0 0.0
  %313 = vmatpush.msra.mxu0 0.0
  %314 = vmatpush.msra.mxu0 %v298
  %315 = vmatpush.msra.mxu0 %v297
  %316 = vmatpush.msra.mxu0 %v296
  %317 = vmatpush.msra.mxu0 %v295
  %318 = vmatpush.msra.mxu0 %v294
  %319 = vmatpush.msra.mxu0 %v293
  %320 = vmatpush.msra.mxu0 %v292
  %321 = vmatpush.msra.mxu0 %v291
  %322 = vmatmul.f32.gmra.mxu0 %v301
  %v323 = vpop.f32.mrf.mxu0
  %v324 = vadd.f32 %v299, %v323
  %325 = vmatmul.f32.gmra.mxu0 %v304
  %v326 = vpop.f32.mrf.mxu0
  %v327 = vadd.f32 %v299, %v326
  %328 = vdwg.mxu0
  %v329 = vmul.f32 %v324, 0.25
  %v330 = vmul.f32 %v327, 0.25
  %s331 = scalar_lea.vmem %s3, 64
  %v332 = vld [vmem:[%s331] sm:$0xff]
  %v333 = vld [vmem:[%s331 + $0x8] sm:$0xff]
  %v334 = vld [vmem:[%s331 + $0x10] sm:$0xff]
  %v335 = vld [vmem:[%s331 + $0x18] sm:$0xff]
  %v336 = vld [vmem:[%s331 + $0x20] sm:$0xff]
  %v337 = vld [vmem:[%s331 + $0x28] sm:$0xff]
  %v338 = vld [vmem:[%s331 + $0x30] sm:$0xff]
  %v339 = vld [vmem:[%s331 + $0x38] sm:$0xff]
  %v340 = vperm.slane %v235, 0
  %341 = vmatpush.msra.mxu0 0.0
  %342 = vmatpush.msra.mxu0 0.0
  %343 = vmatpush.msra.mxu0 0.0
  %344 = vmatpush.msra.mxu0 0.0
  %345 = vmatpush.msra.mxu0 0.0
  %346 = vmatpush.msra.mxu0 0.0
  %347 = vmatpush.msra.mxu0 0.0
  %348 = vmatpush.msra.mxu0 0.0
  %349 = vmatpush.msra.mxu0 %v339
  %350 = vmatpush.msra.mxu0 %v338
  %351 = vmatpush.msra.mxu0 %v337
  %352 = vmatpush.msra.mxu0 %v336
  %353 = vmatpush.msra.mxu0 %v335
  %354 = vmatpush.msra.mxu0 %v334
  %355 = vmatpush.msra.mxu0 %v333
  %356 = vmatpush.msra.mxu0 %v332
  %357 = vmatmul.f32.gmra.mxu0 %v301
  %v358 = vpop.f32.mrf.mxu0
  %v359 = vadd.f32 %v340, %v358
  %360 = vmatmul.f32.gmra.mxu0 %v304
  %v361 = vpop.f32.mrf.mxu0
  %v362 = vadd.f32 %v340, %v361
  %363 = vdwg.mxu0
  %s364 = scalar_lea.vmem %s3, 128
  %v365 = vld [vmem:[%s364] sm:$0xff]
  %v366 = vld [vmem:[%s364 + $0x8] sm:$0xff]
  %v367 = vld [vmem:[%s364 + $0x10] sm:$0xff]
  %v368 = vld [vmem:[%s364 + $0x18] sm:$0xff]
  %v369 = vld [vmem:[%s364 + $0x20] sm:$0xff]
  %v370 = vld [vmem:[%s364 + $0x28] sm:$0xff]
  %v371 = vld [vmem:[%s364 + $0x30] sm:$0xff]
  %v372 = vld [vmem:[%s364 + $0x38] sm:$0xff]
  %v373 = vperm.slane %v236, 0
  %374 = vmatpush.msra.mxu0 0.0
  %375 = vmatpush.msra.mxu0 0.0
  %376 = vmatpush.msra.mxu0 0.0
  %377 = vmatpush.msra.mxu0 0.0
  %378 = vmatpush.msra.mxu0 0.0
  %379 = vmatpush.msra.mxu0 0.0
  %380 = vmatpush.msra.mxu0 0.0
  %381 = vmatpush.msra.mxu0 0.0
  %382 = vmatpush.msra.mxu0 %v372
  %383 = vmatpush.msra.mxu0 %v371
  %384 = vmatpush.msra.mxu0 %v370
  %385 = vmatpush.msra.mxu0 %v369
  %386 = vmatpush.msra.mxu0 %v368
  %387 = vmatpush.msra.mxu0 %v367
  %388 = vmatpush.msra.mxu0 %v366
  %389 = vmatpush.msra.mxu0 %v365
  %390 = vmatmul.f32.gmra.mxu0 %v301
  %v391 = vpop.f32.mrf.mxu0
  %v392 = vadd.f32 %v373, %v391
  %393 = vmatmul.f32.gmra.mxu0 %v304
  %v394 = vpop.f32.mrf.mxu0
  %v395 = vadd.f32 %v373, %v394
  %396 = vdwg.mxu0
  %v397 = vmul.f32 %v329, %v189
  %v398 = vmul.f32 %v330, %v189
  %v400 = vsel %vm73, %v397, 0
  %v403 = vsel %vm73, %v398, 0
  %v406 = vsel %vm73, %v359, 0
  %v409 = vsel %vm73, %v362, 0
  %411 = vmatpush.xpose.msra.mxu0 0.0
  %412 = vmatpush.xpose.msra.mxu0 0.0
  %413 = vmatpush.xpose.msra.mxu0 0.0
  %414 = vmatpush.xpose.msra.mxu0 0.0
  %415 = vmatpush.xpose.msra.mxu0 0.0
  %416 = vmatpush.xpose.msra.mxu0 0.0
  %417 = vmatpush.xpose.msra.mxu0 0.0
  %418 = vmatpush.xpose.msra.mxu0 0.0
  %419 = vmatpush.xpose.msra.mxu0 0.0
  %420 = vmatpush.xpose.msra.mxu0 0.0
  %421 = vmatpush.xpose.msra.mxu0 0.0
  %422 = vmatpush.xpose.msra.mxu0 0.0
  %423 = vmatpush.xpose.msra.mxu0 0.0
  %424 = vmatpush.xpose.msra.mxu0 0.0
  %425 = vmatpush.xpose.msra.mxu0 %v409
  %426 = vmatpush.xpose.msra.mxu0 %v406
  %427 = vmatmul.f32.gmra.mxu0 %v400
  %v428 = vpop.f32.mrf.mxu0
  %v429 = vadd.f32 %v230, %v428
  %430 = vmatmul.f32.gmra.mxu0 %v403
  %v431 = vpop.f32.mrf.mxu0
  %v432 = vadd.f32 %v231, %v431
  %433 = vdwg.mxu0
  %vm434 = vcmask 80896
  %v435 = vsel %vm434, %v429, -inf
  %436 = vmax.xlane.f32.xlu0 %v435
  %v437 = vpop.xlane.xlu0 %436
  %vm438 = vcmask 74752
  %v439 = vsel %vm438, %v432, -inf
  %440 = vmax.xlane.f32.xlu0 %v439
  %v441 = vpop.xlane.xlu0 %440
  %v442 = vsub.f32 %v429, %v437
  %v443 = vsub.f32 %v432, %v441
  %v444 = vmul.f32 %v442, 1.442695
  %v445 = vpow.pop %v444
  %v446 = vmul.f32 %v443, 1.442695
  %v447 = vpow.pop %v446
  %v448 = vsel %vm434, %v445, 0.0
  %449 = vadd.xlane.f32.xlu0 %v448
  %v450 = vpop.xlane.xlu0 %449
  %v451 = vsel %vm438, %v447, 0.0
  %452 = vadd.xlane.f32.xlu0 %v451
  %v453 = vpop.xlane.xlu0 %452
  %v454 = vrcp.pop %v450
  %v455 = vmul.f32 %v450, %v454
  %v456 = vsub.f32 1.0, %v455
  %v457 = vmul.f32 %v454, %v456
  %v458 = vadd.f32 %v454, %v457
  %vm459 = vweird.f32 %v450
  %vm460 = vweird.f32 %v454
  %vm461 = vmor %vm459, %vm460
  %v462 = vsel %vm461, %v454, %v458
  %v463 = vand.u32 2147483647, %v450
  %vm464 = vcmp.eq.f32.partialorder %v463, 8.507059e+37
  %v465 = vand.u32 %v450, 2147483648
  %v466 = vor.u32 1.1754944e-38, %v465
  %v467 = vsel %vm464, %v466, %v462
  %v468 = vmul.f32 %v445, %v467
  %v469 = vrcp.pop %v453
  %v470 = vmul.f32 %v453, %v469
  %v471 = vsub.f32 1.0, %v470
  %v472 = vmul.f32 %v469, %v471
  %v473 = vadd.f32 %v469, %v472
  %vm474 = vweird.f32 %v453
  %vm475 = vweird.f32 %v469
  %vm476 = vmor %vm474, %vm475
  %v477 = vsel %vm476, %v469, %v473
  %v478 = vand.u32 2147483647, %v453
  %vm479 = vcmp.eq.f32.partialorder %v478, 8.507059e+37
  %v480 = vand.u32 %v453, 2147483648
  %v481 = vor.u32 1.1754944e-38, %v480
  %v482 = vsel %vm479, %v481, %v477
  %v483 = vmul.f32 %v447, %v482
  %v484 = vmul.f32 %v392, %v189
  %v485 = vmul.f32 %v395, %v189
  %v486 = vmul.f32 %v329, %v193
  %v487 = vmul.f32 %v330, %v193
  %v489 = vsel %vm73, %v486, 0
  %v492 = vsel %vm73, %v487, 0
  %494 = vmatpush.xpose.msra.mxu0 0.0
  %495 = vmatpush.xpose.msra.mxu0 0.0
  %496 = vmatpush.xpose.msra.mxu0 0.0
  %497 = vmatpush.xpose.msra.mxu0 0.0
  %498 = vmatpush.xpose.msra.mxu0 0.0
  %499 = vmatpush.xpose.msra.mxu0 0.0
  %500 = vmatpush.xpose.msra.mxu0 0.0
  %501 = vmatpush.xpose.msra.mxu0 0.0
  %502 = vmatpush.xpose.msra.mxu0 0.0
  %503 = vmatpush.xpose.msra.mxu0 0.0
  %504 = vmatpush.xpose.msra.mxu0 0.0
  %505 = vmatpush.xpose.msra.mxu0 0.0
  %506 = vmatpush.xpose.msra.mxu0 0.0
  %507 = vmatpush.xpose.msra.mxu0 0.0
  %508 = vmatpush.xpose.msra.mxu0 %v409
  %509 = vmatpush.xpose.msra.mxu0 %v406
  %510 = vmatmul.f32.gmra.mxu0 %v489
  %v511 = vpop.f32.mrf.mxu0
  %v512 = vadd.f32 %v230, %v511
  %513 = vmatmul.f32.gmra.mxu0 %v492
  %v514 = vpop.f32.mrf.mxu0
  %v515 = vadd.f32 %v231, %v514
  %516 = vdwg.mxu0
  %v517 = vsel %vm434, %v512, -inf
  %518 = vmax.xlane.f32.xlu0 %v517
  %v519 = vpop.xlane.xlu0 %518
  %v520 = vsel %vm438, %v515, -inf
  %521 = vmax.xlane.f32.xlu0 %v520
  %v522 = vpop.xlane.xlu0 %521
  %v523 = vsub.f32 %v512, %v519
  %v524 = vsub.f32 %v515, %v522
  %v525 = vmul.f32 %v523, 1.442695
  %v526 = vpow.pop %v525
  %v527 = vmul.f32 %v524, 1.442695
  %v528 = vpow.pop %v527
  %v529 = vsel %vm434, %v526, 0.0
  %530 = vadd.xlane.f32.xlu0 %v529
  %v531 = vpop.xlane.xlu0 %530
  %v532 = vsel %vm438, %v528, 0.0
  %533 = vadd.xlane.f32.xlu0 %v532
  %v534 = vpop.xlane.xlu0 %533
  %v535 = vrcp.pop %v531
  %v536 = vmul.f32 %v531, %v535
  %v537 = vsub.f32 1.0, %v536
  %v538 = vmul.f32 %v535, %v537
  %v539 = vadd.f32 %v535, %v538
  %vm540 = vweird.f32 %v531
  %vm541 = vweird.f32 %v535
  %vm542 = vmor %vm540, %vm541
  %v543 = vsel %vm542, %v535, %v539
  %v544 = vand.u32 2147483647, %v531
  %vm545 = vcmp.eq.f32.partialorder %v544, 8.507059e+37
  %v546 = vand.u32 %v531, 2147483648
  %v547 = vor.u32 1.1754944e-38, %v546
  %v548 = vsel %vm545, %v547, %v543
  %v549 = vmul.f32 %v526, %v548
  %v550 = vrcp.pop %v534
  %v551 = vmul.f32 %v534, %v550
  %v552 = vsub.f32 1.0, %v551
  %v553 = vmul.f32 %v550, %v552
  %v554 = vadd.f32 %v550, %v553
  %vm555 = vweird.f32 %v534
  %vm556 = vweird.f32 %v550
  %vm557 = vmor %vm555, %vm556
  %v558 = vsel %vm557, %v550, %v554
  %v559 = vand.u32 2147483647, %v534
  %vm560 = vcmp.eq.f32.partialorder %v559, 8.507059e+37
  %v561 = vand.u32 %v534, 2147483648
  %v562 = vor.u32 1.1754944e-38, %v561
  %v563 = vsel %vm560, %v562, %v558
  %v564 = vmul.f32 %v528, %v563
  %v565 = vmul.f32 %v392, %v193
  %v566 = vmul.f32 %v395, %v193
  %v568 = vsel %vm434, %v549, 0
  %v571 = vsel %vm434, %v564, 0
  %vm573 = vcmask 1041408
  %v575 = vsel %vm573, %v566, 0
  %577 = vmatpush.msra.mxu0 0.0
  %578 = vmatpush.msra.mxu0 0.0
  %579 = vmatpush.msra.mxu0 0.0
  %580 = vmatpush.msra.mxu0 0.0
  %581 = vmatpush.msra.mxu0 0.0
  %582 = vmatpush.msra.mxu0 0.0
  %583 = vmatpush.msra.mxu0 0.0
  %584 = vmatpush.msra.mxu0 0.0
  %585 = vmatpush.msra.mxu0 0.0
  %586 = vmatpush.msra.mxu0 0.0
  %587 = vmatpush.msra.mxu0 0.0
  %588 = vmatpush.msra.mxu0 0.0
  %589 = vmatpush.msra.mxu0 0.0
  %590 = vmatpush.msra.mxu0 0.0
  %591 = vmatpush.msra.mxu0 %v575
  %592 = vmatpush.msra.mxu0 %v565
  %593 = vmatmul.f32.gmra.mxu0 %v568
  %v594 = vpop.f32.mrf.mxu0
  %v595 = vadd.f32 0.0, %v594
  %596 = vmatmul.f32.gmra.mxu0 %v571
  %v597 = vpop.f32.mrf.mxu0
  %v598 = vadd.f32 0.0, %v597
  %599 = vdwg.mxu0
  %v601 = vsel %vm434, %v468, 0
  %v604 = vsel %vm434, %v483, 0
  %v607 = vsel %vm573, %v485, 0
  %609 = vmatpush.msra.mxu0 0.0
  %610 = vmatpush.msra.mxu0 0.0
  %611 = vmatpush.msra.mxu0 0.0
  %612 = vmatpush.msra.mxu0 0.0
  %613 = vmatpush.msra.mxu0 0.0
  %614 = vmatpush.msra.mxu0 0.0
  %615 = vmatpush.msra.mxu0 0.0
  %616 = vmatpush.msra.mxu0 0.0
  %617 = vmatpush.msra.mxu0 0.0
  %618 = vmatpush.msra.mxu0 0.0
  %619 = vmatpush.msra.mxu0 0.0
  %620 = vmatpush.msra.mxu0 0.0
  %621 = vmatpush.msra.mxu0 0.0
  %622 = vmatpush.msra.mxu0 0.0
  %623 = vmatpush.msra.mxu0 %v607
  %624 = vmatpush.msra.mxu0 %v484
  %625 = vmatmul.f32.gmra.mxu0 %v601
  %v626 = vpop.f32.mrf.mxu0
  %v627 = vadd.f32 %v595, %v626
  %628 = vmatmul.f32.gmra.mxu0 %v604
  %v629 = vpop.f32.mrf.mxu0
  %v630 = vadd.f32 %v598, %v629
  %631 = vdwg.mxu0
  %v632 = vmul.f32 %v329, %v197
  %v633 = vmul.f32 %v330, %v197
  %v635 = vsel %vm73, %v632, 0
  %v638 = vsel %vm73, %v633, 0
  %640 = vmatpush.xpose.msra.mxu0 0.0
  %641 = vmatpush.xpose.msra.mxu0 0.0
  %642 = vmatpush.xpose.msra.mxu0 0.0
  %643 = vmatpush.xpose.msra.mxu0 0.0
  %644 = vmatpush.xpose.msra.mxu0 0.0
  %645 = vmatpush.xpose.msra.mxu0 0.0
  %646 = vmatpush.xpose.msra.mxu0 0.0
  %647 = vmatpush.xpose.msra.mxu0 0.0
  %648 = vmatpush.xpose.msra.mxu0 0.0
  %649 = vmatpush.xpose.msra.mxu0 0.0
  %650 = vmatpush.xpose.msra.mxu0 0.0
  %651 = vmatpush.xpose.msra.mxu0 0.0
  %652 = vmatpush.xpose.msra.mxu0 0.0
  %653 = vmatpush.xpose.msra.mxu0 0.0
  %654 = vmatpush.xpose.msra.mxu0 %v409
  %655 = vmatpush.xpose.msra.mxu0 %v406
  %656 = vmatmul.f32.gmra.mxu0 %v635
  %v657 = vpop.f32.mrf.mxu0
  %v658 = vadd.f32 %v230, %v657
  %659 = vmatmul.f32.gmra.mxu0 %v638
  %v660 = vpop.f32.mrf.mxu0
  %v661 = vadd.f32 %v231, %v660
  %662 = vdwg.mxu0
  %v663 = vsel %vm434, %v658, -inf
  %664 = vmax.xlane.f32.xlu0 %v663
  %v665 = vpop.xlane.xlu0 %664
  %v666 = vsel %vm438, %v661, -inf
  %667 = vmax.xlane.f32.xlu0 %v666
  %v668 = vpop.xlane.xlu0 %667
  %v669 = vsub.f32 %v658, %v665
  %v670 = vsub.f32 %v661, %v668
  %v671 = vmul.f32 %v669, 1.442695
  %v672 = vpow.pop %v671
  %v673 = vmul.f32 %v670, 1.442695
  %v674 = vpow.pop %v673
  %v675 = vsel %vm434, %v672, 0.0
  %676 = vadd.xlane.f32.xlu0 %v675
  %v677 = vpop.xlane.xlu0 %676
  %v678 = vsel %vm438, %v674, 0.0
  %679 = vadd.xlane.f32.xlu0 %v678
  %v680 = vpop.xlane.xlu0 %679
  %v681 = vrcp.pop %v677
  %v682 = vmul.f32 %v677, %v681
  %v683 = vsub.f32 1.0, %v682
  %v684 = vmul.f32 %v681, %v683
  %v685 = vadd.f32 %v681, %v684
  %vm686 = vweird.f32 %v677
  %vm687 = vweird.f32 %v681
  %vm688 = vmor %vm686, %vm687
  %v689 = vsel %vm688, %v681, %v685
  %v690 = vand.u32 2147483647, %v677
  %vm691 = vcmp.eq.f32.partialorder %v690, 8.507059e+37
  %v692 = vand.u32 %v677, 2147483648
  %v693 = vor.u32 1.1754944e-38, %v692
  %v694 = vsel %vm691, %v693, %v689
  %v695 = vmul.f32 %v672, %v694
  %v696 = vrcp.pop %v680
  %v697 = vmul.f32 %v680, %v696
  %v698 = vsub.f32 1.0, %v697
  %v699 = vmul.f32 %v696, %v698
  %v700 = vadd.f32 %v696, %v699
  %vm701 = vweird.f32 %v680
  %vm702 = vweird.f32 %v696
  %vm703 = vmor %vm701, %vm702
  %v704 = vsel %vm703, %v696, %v700
  %v705 = vand.u32 2147483647, %v680
  %vm706 = vcmp.eq.f32.partialorder %v705, 8.507059e+37
  %v707 = vand.u32 %v680, 2147483648
  %v708 = vor.u32 1.1754944e-38, %v707
  %v709 = vsel %vm706, %v708, %v704
  %v710 = vmul.f32 %v674, %v709
  %v711 = vmul.f32 %v392, %v197
  %v712 = vmul.f32 %v395, %v197
  %v714 = vsel %vm434, %v695, 0
  %v717 = vsel %vm434, %v710, 0
  %v720 = vsel %vm573, %v712, 0
  %722 = vmatpush.msra.mxu0 0.0
  %723 = vmatpush.msra.mxu0 0.0
  %724 = vmatpush.msra.mxu0 0.0
  %725 = vmatpush.msra.mxu0 0.0
  %726 = vmatpush.msra.mxu0 0.0
  %727 = vmatpush.msra.mxu0 0.0
  %728 = vmatpush.msra.mxu0 0.0
  %729 = vmatpush.msra.mxu0 0.0
  %730 = vmatpush.msra.mxu0 0.0
  %731 = vmatpush.msra.mxu0 0.0
  %732 = vmatpush.msra.mxu0 0.0
  %733 = vmatpush.msra.mxu0 0.0
  %734 = vmatpush.msra.mxu0 0.0
  %735 = vmatpush.msra.mxu0 0.0
  %736 = vmatpush.msra.mxu0 %v720
  %737 = vmatpush.msra.mxu0 %v711
  %738 = vmatmul.f32.gmra.mxu0 %v714
  %v739 = vpop.f32.mrf.mxu0
  %v740 = vadd.f32 0.0, %v739
  %741 = vmatmul.f32.gmra.mxu0 %v717
  %v742 = vpop.f32.mrf.mxu0
  %v743 = vadd.f32 0.0, %v742
  %744 = vdwg.mxu0
  %v745 = vadd.f32 %v627, %v740
  %v746 = vadd.f32 %v630, %v743
  %v747 = vmul.f32 %v329, %v201
  %v748 = vmul.f32 %v330, %v201
  %v750 = vsel %vm73, %v747, 0
  %v753 = vsel %vm73, %v748, 0
  %755 = vmatpush.xpose.msra.mxu0 0.0
  %756 = vmatpush.xpose.msra.mxu0 0.0
  %757 = vmatpush.xpose.msra.mxu0 0.0
  %758 = vmatpush.xpose.msra.mxu0 0.0
  %759 = vmatpush.xpose.msra.mxu0 0.0
  %760 = vmatpush.xpose.msra.mxu0 0.0
  %761 = vmatpush.xpose.msra.mxu0 0.0
  %762 = vmatpush.xpose.msra.mxu0 0.0
  %763 = vmatpush.xpose.msra.mxu0 0.0
  %764 = vmatpush.xpose.msra.mxu0 0.0
  %765 = vmatpush.xpose.msra.mxu0 0.0
  %766 = vmatpush.xpose.msra.mxu0 0.0
  %767 = vmatpush.xpose.msra.mxu0 0.0
  %768 = vmatpush.xpose.msra.mxu0 0.0
  %769 = vmatpush.xpose.msra.mxu0 %v409
  %770 = vmatpush.xpose.msra.mxu0 %v406
  %771 = vmatmul.f32.gmra.mxu0 %v750
  %v772 = vpop.f32.mrf.mxu0
  %v773 = vadd.f32 %v230, %v772
  %774 = vmatmul.f32.gmra.mxu0 %v753
  %v775 = vpop.f32.mrf.mxu0
  %v776 = vadd.f32 %v231, %v775
  %777 = vdwg.mxu0
  %v778 = vsel %vm434, %v773, -inf
  %779 = vmax.xlane.f32.xlu0 %v778
  %v780 = vpop.xlane.xlu0 %779
  %v781 = vsel %vm438, %v776, -inf
  %782 = vmax.xlane.f32.xlu0 %v781
  %v783 = vpop.xlane.xlu0 %782
  %v784 = vsub.f32 %v773, %v780
  %v785 = vsub.f32 %v776, %v783
  %v786 = vmul.f32 %v784, 1.442695
  %v787 = vpow.pop %v786
  %v788 = vmul.f32 %v785, 1.442695
  %v789 = vpow.pop %v788
  %v790 = vsel %vm434, %v787, 0.0
  %791 = vadd.xlane.f32.xlu0 %v790
  %v792 = vpop.xlane.xlu0 %791
  %v793 = vsel %vm438, %v789, 0.0
  %794 = vadd.xlane.f32.xlu0 %v793
  %v795 = vpop.xlane.xlu0 %794
  %v796 = vrcp.pop %v792
  %v797 = vmul.f32 %v792, %v796
  %v798 = vsub.f32 1.0, %v797
  %v799 = vmul.f32 %v796, %v798
  %v800 = vadd.f32 %v796, %v799
  %vm801 = vweird.f32 %v792
  %vm802 = vweird.f32 %v796
  %vm803 = vmor %vm801, %vm802
  %v804 = vsel %vm803, %v796, %v800
  %v805 = vand.u32 2147483647, %v792
  %vm806 = vcmp.eq.f32.partialorder %v805, 8.507059e+37
  %v807 = vand.u32 %v792, 2147483648
  %v808 = vor.u32 1.1754944e-38, %v807
  %v809 = vsel %vm806, %v808, %v804
  %v810 = vmul.f32 %v787, %v809
  %v811 = vrcp.pop %v795
  %v812 = vmul.f32 %v795, %v811
  %v813 = vsub.f32 1.0, %v812
  %v814 = vmul.f32 %v811, %v813
  %v815 = vadd.f32 %v811, %v814
  %vm816 = vweird.f32 %v795
  %vm817 = vweird.f32 %v811
  %vm818 = vmor %vm816, %vm817
  %v819 = vsel %vm818, %v811, %v815
  %v820 = vand.u32 2147483647, %v795
  %vm821 = vcmp.eq.f32.partialorder %v820, 8.507059e+37
  %v822 = vand.u32 %v795, 2147483648
  %v823 = vor.u32 1.1754944e-38, %v822
  %v824 = vsel %vm821, %v823, %v819
  %v825 = vmul.f32 %v789, %v824
  %v826 = vmul.f32 %v392, %v201
  %v827 = vmul.f32 %v395, %v201
  %v829 = vsel %vm434, %v810, 0
  %v832 = vsel %vm434, %v825, 0
  %v835 = vsel %vm573, %v827, 0
  %837 = vmatpush.msra.mxu0 0.0
  %838 = vmatpush.msra.mxu0 0.0
  %839 = vmatpush.msra.mxu0 0.0
  %840 = vmatpush.msra.mxu0 0.0
  %841 = vmatpush.msra.mxu0 0.0
  %842 = vmatpush.msra.mxu0 0.0
  %843 = vmatpush.msra.mxu0 0.0
  %844 = vmatpush.msra.mxu0 0.0
  %845 = vmatpush.msra.mxu0 0.0
  %846 = vmatpush.msra.mxu0 0.0
  %847 = vmatpush.msra.mxu0 0.0
  %848 = vmatpush.msra.mxu0 0.0
  %849 = vmatpush.msra.mxu0 0.0
  %850 = vmatpush.msra.mxu0 0.0
  %851 = vmatpush.msra.mxu0 %v835
  %852 = vmatpush.msra.mxu0 %v826
  %853 = vmatmul.f32.gmra.mxu0 %v829
  %v854 = vpop.f32.mrf.mxu0
  %v855 = vadd.f32 0.0, %v854
  %856 = vmatmul.f32.gmra.mxu0 %v832
  %v857 = vpop.f32.mrf.mxu0
  %v858 = vadd.f32 0.0, %v857
  %859 = vdwg.mxu0
  %v860 = vadd.f32 %v745, %v855
  %v861 = vadd.f32 %v746, %v858
  %s862 = scalar_lea.vmem %s3, 192
  %v863 = vld [vmem:[%s862] sm:$0xff]
  %v864 = vld [vmem:[%s862 + $0x8] sm:$0xff]
  %v865 = vld [vmem:[%s862 + $0x10] sm:$0xff]
  %v866 = vld [vmem:[%s862 + $0x18] sm:$0xff]
  %v867 = vld [vmem:[%s862 + $0x20] sm:$0xff]
  %v868 = vld [vmem:[%s862 + $0x28] sm:$0xff]
  %v869 = vld [vmem:[%s862 + $0x30] sm:$0xff]
  %v870 = vld [vmem:[%s862 + $0x38] sm:$0xff]
  %v872 = vsel %vm73, %v860, 0
  %v875 = vsel %vm73, %v861, 0
  %877 = vmatpush.msra.mxu0 0.0
  %878 = vmatpush.msra.mxu0 0.0
  %879 = vmatpush.msra.mxu0 0.0
  %880 = vmatpush.msra.mxu0 0.0
  %881 = vmatpush.msra.mxu0 0.0
  %882 = vmatpush.msra.mxu0 0.0
  %883 = vmatpush.msra.mxu0 0.0
  %884 = vmatpush.msra.mxu0 0.0
  %885 = vmatpush.msra.mxu0 %v870
  %886 = vmatpush.msra.mxu0 %v869
  %887 = vmatpush.msra.mxu0 %v868
  %888 = vmatpush.msra.mxu0 %v867
  %889 = vmatpush.msra.mxu0 %v866
  %890 = vmatpush.msra.mxu0 %v865
  %891 = vmatpush.msra.mxu0 %v864
  %892 = vmatpush.msra.mxu0 %v863
  %893 = vmatmul.f32.gmra.mxu0 %v872
  %v894 = vpop.f32.mrf.mxu0
  %v895 = vadd.f32 0.0, %v894
  %896 = vmatmul.f32.gmra.mxu0 %v875
  %v897 = vpop.f32.mrf.mxu0
  %v898 = vadd.f32 0.0, %v897
  %899 = vdwg.mxu0
  %v900 = vadd.f32 %v182, %v895
  %v901 = vadd.f32 %v183, %v898
  %v902 = vperm.slane %v237, 0
  %v903 = vadd.f32 %v900, %v902
  %v904 = vadd.f32 %v901, %v902
  %v905 = vsel %vm73, %v903, 0.0
  %906 = vadd.xlane.f32.xlu0 %v905
  %v907 = vpop.xlane.xlu0 %906
  %v908 = vsel %vm129, %v904, 0.0
  %909 = vadd.xlane.f32.xlu0 %v908
  %v910 = vpop.xlane.xlu0 %909
  %v911 = vmul.f32 %v907, %v139
  %v912 = vmul.f32 %v910, %v139
  %v913 = vsub.f32 %v903, %v911
  %v914 = vsub.f32 %v904, %v912
  %v915 = vmul.f32 %v913, %v913
  %v916 = vmul.f32 %v914, %v914
  %v917 = vsel %vm73, %v915, 0.0
  %918 = vadd.xlane.f32.xlu0 %v917
  %v919 = vpop.xlane.xlu0 %918
  %v920 = vsel %vm129, %v916, 0.0
  %921 = vadd.xlane.f32.xlu0 %v920
  %v922 = vpop.xlane.xlu0 %921
  %v923 = vmul.f32 %v919, %v139
  %v924 = vmul.f32 %v922, %v139
  %v925 = vadd.f32 %v923, 1e-05
  %v926 = vadd.f32 %v924, 1e-05
  %v927 = vrsqrt.pop %v925
  %v928 = vmul.f32 %v927, %v925
  %v929 = vmul.f32 %v928, %v927
  %v930 = vmul.f32 0.5, %v929
  %v931 = vsub.f32 1.5, %v930
  %v932 = vmul.f32 %v927, %v931
  %vm933 = vweird.f32 %v925
  %vm934 = vweird.f32 %v927
  %vm935 = vmor %vm933, %vm934
  %v936 = vsel %vm935, %v927, %v932
  %v937 = vrsqrt.pop %v926
  %v938 = vmul.f32 %v937, %v926
  %v939 = vmul.f32 %v938, %v937
  %v940 = vmul.f32 0.5, %v939
  %v941 = vsub.f32 1.5, %v940
  %v942 = vmul.f32 %v937, %v941
  %vm943 = vweird.f32 %v926
  %vm944 = vweird.f32 %v937
  %vm945 = vmor %vm943, %vm944
  %v946 = vsel %vm945, %v937, %v942
  %v947 = vmul.f32 %v913, %v936
  %v948 = vmul.f32 %v914, %v946
  %v949 = vperm.slane %v238, 0
  %v950 = vmul.f32 %v947, %v949
  %v951 = vmul.f32 %v948, %v949
  %v952 = vperm.slane %v239, 0
  %v953 = vadd.f32 %v950, %v952
  %v954 = vadd.f32 %v951, %v952
  %v955 = vld [vmem:[%s4] sm:$0xff]
  %v956 = vld [vmem:[%s4 + $0x8] sm:$0xff]
  %v957 = vld [vmem:[%s4 + $0x10] sm:$0xff]
  %v958 = vld [vmem:[%s4 + $0x18] sm:$0xff]
  %v959 = vld [vmem:[%s4 + $0x20] sm:$0xff]
  %v960 = vld [vmem:[%s4 + $0x28] sm:$0xff]
  %v961 = vld [vmem:[%s4 + $0x30] sm:$0xff]
  %v962 = vld [vmem:[%s4 + $0x38] sm:$0xff]
  %v963 = vld [vmem:[%s4 + $0x40] sm:$0xff]
  %v964 = vld [vmem:[%s4 + $0x48] sm:$0xff]
  %v965 = vld [vmem:[%s4 + $0x50] sm:$0xff]
  %v966 = vld [vmem:[%s4 + $0x58] sm:$0xff]
  %v967 = vld [vmem:[%s4 + $0x60] sm:$0xff]
  %v968 = vld [vmem:[%s4 + $0x68] sm:$0xff]
  %v969 = vld [vmem:[%s4 + $0x70] sm:$0xff]
  %v970 = vld [vmem:[%s4 + $0x78] sm:$0xff]
  %v971 = vld [vmem:[%s4 + $0x80] sm:$0xff]
  %v972 = vld [vmem:[%s4 + $0x88] sm:$0xff]
  %v973 = vld [vmem:[%s4 + $0x90] sm:$0xff]
  %v974 = vld [vmem:[%s4 + $0x98] sm:$0xff]
  %v975 = vld [vmem:[%s4 + $0xa0] sm:$0xff]
  %v976 = vld [vmem:[%s4 + $0xa8] sm:$0xff]
  %v977 = vld [vmem:[%s4 + $0xb0] sm:$0xff]
  %v978 = vld [vmem:[%s4 + $0xb8] sm:$0xff]
  %v979 = vld [vmem:[%s4 + $0xc0] sm:$0xff]
  %v980 = vld [vmem:[%s4 + $0xc8] sm:$0xff]
  %v981 = vld [vmem:[%s4 + $0xd0] sm:$0xff]
  %v982 = vld [vmem:[%s4 + $0xd8] sm:$0xff]
  %v983 = vld [vmem:[%s4 + $0xe0] sm:$0xff]
  %v984 = vld [vmem:[%s4 + $0xe8] sm:$0xff]
  %v985 = vld [vmem:[%s4 + $0xf0] sm:$0xff]
  %v986 = vld [vmem:[%s4 + $0xf8] sm:$0xff]
  %v987 = vld [vmem:[%s6] sm:$0x3]
  %v989 = vperm.slane %v987, 0
  %v990 = vperm.slane %v987, 1
  %v994 = vsel %vm73, %v953, 0
  %v997 = vsel %vm73, %v954, 0
  %v1000 = vsel %vm73, %v955, 0
  %v1003 = vsel %vm73, %v956, 0
  %v1006 = vsel %vm73, %v957, 0
  %v1009 = vsel %vm73, %v958, 0
  %v1012 = vsel %vm73, %v959, 0
  %v1015 = vsel %vm73, %v960, 0
  %v1018 = vsel %vm73, %v961, 0
  %v1021 = vsel %vm73, %v962, 0
  %v1024 = vsel %vm73, %v963, 0
  %v1027 = vsel %vm73, %v964, 0
  %v1030 = vsel %vm73, %v965, 0
  %v1033 = vsel %vm73, %v966, 0
  %v1036 = vsel %vm73, %v967, 0
  %v1039 = vsel %vm73, %v968, 0
  %v1042 = vsel %vm73, %v969, 0
  %v1045 = vsel %vm73, %v970, 0
  %v1048 = vsel %vm73, %v971, 0
  %v1051 = vsel %vm73, %v972, 0
  %v1054 = vsel %vm73, %v973, 0
  %v1057 = vsel %vm73, %v974, 0
  %v1060 = vsel %vm73, %v975, 0
  %v1063 = vsel %vm73, %v976, 0
  %v1066 = vsel %vm73, %v977, 0
  %v1069 = vsel %vm73, %v978, 0
  %v1072 = vsel %vm73, %v979, 0
  %v1075 = vsel %vm73, %v980, 0
  %v1078 = vsel %vm73, %v981, 0
  %v1081 = vsel %vm73, %v982, 0
  %v1084 = vsel %vm73, %v983, 0
  %v1087 = vsel %vm73, %v984, 0
  %v1090 = vsel %vm73, %v985, 0
  %v1093 = vsel %vm73, %v986, 0
  %1095 = vmatpush.xpose.msra.mxu0 %v1045
  %1096 = vmatpush.xpose.msra.mxu0 %v1042
  %1097 = vmatpush.xpose.msra.mxu0 %v1039
  %1098 = vmatpush.xpose.msra.mxu0 %v1036
  %1099 = vmatpush.xpose.msra.mxu0 %v1033
  %1100 = vmatpush.xpose.msra.mxu0 %v1030
  %1101 = vmatpush.xpose.msra.mxu0 %v1027
  %1102 = vmatpush.xpose.msra.mxu0 %v1024
  %1103 = vmatpush.xpose.msra.mxu0 %v1021
  %1104 = vmatpush.xpose.msra.mxu0 %v1018
  %1105 = vmatpush.xpose.msra.mxu0 %v1015
  %1106 = vmatpush.xpose.msra.mxu0 %v1012
  %1107 = vmatpush.xpose.msra.mxu0 %v1009
  %1108 = vmatpush.xpose.msra.mxu0 %v1006
  %1109 = vmatpush.xpose.msra.mxu0 %v1003
  %1110 = vmatpush.xpose.msra.mxu0 %v1000
  %1111 = vmatmul.f32.gmra.mxu0 %v994
  %v1112 = vpop.f32.mrf.mxu0
  %v1113 = vadd.f32 %v989, %v1112
  %1114 = vmatmul.f32.gmra.mxu0 %v997
  %v1115 = vpop.f32.mrf.mxu0
  %v1116 = vadd.f32 %v989, %v1115
  %1117 = vdwg.mxu0
  %1118 = vmatpush.xpose.msra.mxu0 %v1093
  %1119 = vmatpush.xpose.msra.mxu0 %v1090
  %1120 = vmatpush.xpose.msra.mxu0 %v1087
  %1121 = vmatpush.xpose.msra.mxu0 %v1084
  %1122 = vmatpush.xpose.msra.mxu0 %v1081
  %1123 = vmatpush.xpose.msra.mxu0 %v1078
  %1124 = vmatpush.xpose.msra.mxu0 %v1075
  %1125 = vmatpush.xpose.msra.mxu0 %v1072
  %1126 = vmatpush.xpose.msra.mxu0 %v1069
  %1127 = vmatpush.xpose.msra.mxu0 %v1066
  %1128 = vmatpush.xpose.msra.mxu0 %v1063
  %1129 = vmatpush.xpose.msra.mxu0 %v1060
  %1130 = vmatpush.xpose.msra.mxu0 %v1057
  %1131 = vmatpush.xpose.msra.mxu0 %v1054
  %1132 = vmatpush.xpose.msra.mxu0 %v1051
  %1133 = vmatpush.xpose.msra.mxu0 %v1048
  %1134 = vmatmul.f32.gmra.mxu0 %v994
  %v1135 = vpop.f32.mrf.mxu0
  %v1136 = vadd.f32 %v990, %v1135
  %1137 = vmatmul.f32.gmra.mxu0 %v997
  %v1138 = vpop.f32.mrf.mxu0
  %v1139 = vadd.f32 %v990, %v1138
  %1140 = vdwg.mxu0
  %v1141 = vmul.f32 %v1113, 1.702
  %v1142 = vmul.f32 %v1136, 1.702
  %v1143 = vmul.f32 %v1116, 1.702
  %v1144 = vmul.f32 %v1139, 1.702
  %v1145 = vxor.u32 %v1141, 2147483648
  %v1146 = vxor.u32 %v1142, 2147483648
  %v1147 = vxor.u32 %v1143, 2147483648
  %v1148 = vxor.u32 %v1144, 2147483648
  %v1149 = vmul.f32 %v1145, 1.442695
  %v1150 = vpow.pop %v1149
  %v1151 = vmul.f32 %v1146, 1.442695
  %v1152 = vpow.pop %v1151
  %v1153 = vmul.f32 %v1147, 1.442695
  %v1154 = vpow.pop %v1153
  %v1155 = vmul.f32 %v1148, 1.442695
  %v1156 = vpow.pop %v1155
  %v1157 = vadd.f32 %v1150, 1.0
  %v1158 = vadd.f32 %v1152, 1.0
  %v1159 = vadd.f32 %v1154, 1.0
  %v1160 = vadd.f32 %v1156, 1.0
  %v1161 = vrcp.pop %v1157
  %v1162 = vmul.f32 %v1157, %v1161
  %v1163 = vsub.f32 1.0, %v1162
  %v1164 = vmul.f32 %v1161, %v1163
  %v1165 = vadd.f32 %v1161, %v1164
  %vm1166 = vweird.f32 %v1157
  %vm1167 = vweird.f32 %v1161
  %vm1168 = vmor %vm1166, %vm1167
  %v1169 = vsel %vm1168, %v1161, %v1165
  %v1170 = vand.u32 2147483647, %v1157
  %vm1171 = vcmp.eq.f32.partialorder %v1170, 8.507059e+37
  %v1172 = vand.u32 %v1157, 2147483648
  %v1173 = vor.u32 1.1754944e-38, %v1172
  %v1174 = vsel %vm1171, %v1173, %v1169
  %v1175 = vmul.f32 1.0, %v1174
  %v1176 = vrcp.pop %v1158
  %v1177 = vmul.f32 %v1158, %v1176
  %v1178 = vsub.f32 1.0, %v1177
  %v1179 = vmul.f32 %v1176, %v1178
  %v1180 = vadd.f32 %v1176, %v1179
  %vm1181 = vweird.f32 %v1158
  %vm1182 = vweird.f32 %v1176
  %vm1183 = vmor %vm1181, %vm1182
  %v1184 = vsel %vm1183, %v1176, %v1180
  %v1185 = vand.u32 2147483647, %v1158
  %vm1186 = vcmp.eq.f32.partialorder %v1185, 8.507059e+37
  %v1187 = vand.u32 %v1158, 2147483648
  %v1188 = vor.u32 1.1754944e-38, %v1187
  %v1189 = vsel %vm1186, %v1188, %v1184
  %v1190 = vmul.f32 1.0, %v1189
  %v1191 = vrcp.pop %v1159
  %v1192 = vmul.f32 %v1159, %v1191
  %v1193 = vsub.f32 1.0, %v1192
  %v1194 = vmul.f32 %v1191, %v1193
  %v1195 = vadd.f32 %v1191, %v1194
  %vm1196 = vweird.f32 %v1159
  %vm1197 = vweird.f32 %v1191
  %vm1198 = vmor %vm1196, %vm1197
  %v1199 = vsel %vm1198, %v1191, %v1195
  %v1200 = vand.u32 2147483647, %v1159
  %vm1201 = vcmp.eq.f32.partialorder %v1200, 8.507059e+37
  %v1202 = vand.u32 %v1159, 2147483648
  %v1203 = vor.u32 1.1754944e-38, %v1202
  %v1204 = vsel %vm1201, %v1203, %v1199
  %v1205 = vmul.f32 1.0, %v1204
  %v1206 = vrcp.pop %v1160
  %v1207 = vmul.f32 %v1160, %v1206
  %v1208 = vsub.f32 1.0, %v1207
  %v1209 = vmul.f32 %v1206, %v1208
  %v1210 = vadd.f32 %v1206, %v1209
  %vm1211 = vweird.f32 %v1160
  %vm1212 = vweird.f32 %v1206
  %vm1213 = vmor %vm1211, %vm1212
  %v1214 = vsel %vm1213, %v1206, %v1210
  %v1215 = vand.u32 2147483647, %v1160
  %vm1216 = vcmp.eq.f32.partialorder %v1215, 8.507059e+37
  %v1217 = vand.u32 %v1160, 2147483648
  %v1218 = vor.u32 1.1754944e-38, %v1217
  %v1219 = vsel %vm1216, %v1218, %v1214
  %v1220 = vmul.f32 1.0, %v1219
  %v1221 = vmul.f32 %v1113, %v1175
  %v1222 = vmul.f32 %v1136, %v1190
  %v1223 = vmul.f32 %v1116, %v1205
  %v1224 = vmul.f32 %v1139, %v1220
  %s1225 = scalar_lea.vmem %s4, 256
  %v1226 = vld [vmem:[%s1225] sm:$0xff]
  %v1227 = vld [vmem:[%s1225 + $0x8] sm:$0xff]
  %v1228 = vld [vmem:[%s1225 + $0x10] sm:$0xff]
  %v1229 = vld [vmem:[%s1225 + $0x18] sm:$0xff]
  %v1230 = vld [vmem:[%s1225 + $0x20] sm:$0xff]
  %v1231 = vld [vmem:[%s1225 + $0x28] sm:$0xff]
  %v1232 = vld [vmem:[%s1225 + $0x30] sm:$0xff]
  %v1233 = vld [vmem:[%s1225 + $0x38] sm:$0xff]
  %v1234 = vld [vmem:[%s1225 + $0x40] sm:$0xff]
  %v1235 = vld [vmem:[%s1225 + $0x48] sm:$0xff]
  %v1236 = vld [vmem:[%s1225 + $0x50] sm:$0xff]
  %v1237 = vld [vmem:[%s1225 + $0x58] sm:$0xff]
  %v1238 = vld [vmem:[%s1225 + $0x60] sm:$0xff]
  %v1239 = vld [vmem:[%s1225 + $0x68] sm:$0xff]
  %v1240 = vld [vmem:[%s1225 + $0x70] sm:$0xff]
  %v1241 = vld [vmem:[%s1225 + $0x78] sm:$0xff]
  %v1242 = vld [vmem:[%s1225 + $0x80] sm:$0xff]
  %v1243 = vld [vmem:[%s1225 + $0x88] sm:$0xff]
  %v1244 = vld [vmem:[%s1225 + $0x90] sm:$0xff]
  %v1245 = vld [vmem:[%s1225 + $0x98] sm:$0xff]
  %v1246 = vld [vmem:[%s1225 + $0xa0] sm:$0xff]
  %v1247 = vld [vmem:[%s1225 + $0xa8] sm:$0xff]
  %v1248 = vld [vmem:[%s1225 + $0xb0] sm:$0xff]
  %v1249 = vld [vmem:[%s1225 + $0xb8] sm:$0xff]
  %v1250 = vld [vmem:[%s1225 + $0xc0] sm:$0xff]
  %v1251 = vld [vmem:[%s1225 + $0xc8] sm:$0xff]
  %v1252 = vld [vmem:[%s1225 + $0xd0] sm:$0xff]
  %v1253 = vld [vmem:[%s1225 + $0xd8] sm:$0xff]
  %v1254 = vld [vmem:[%s1225 + $0xe0] sm:$0xff]
  %v1255 = vld [vmem:[%s1225 + $0xe8] sm:$0xff]
  %v1256 = vld [vmem:[%s1225 + $0xf0] sm:$0xff]
  %v1257 = vld [vmem:[%s1225 + $0xf8] sm:$0xff]
  %1258 = vmatpush.msra.mxu0 %v1241
  %1259 = vmatpush.msra.mxu0 %v1240
  %1260 = vmatpush.msra.mxu0 %v1239
  %1261 = vmatpush.msra.mxu0 %v1238
  %1262 = vmatpush.msra.mxu0 %v1237
  %1263 = vmatpush.msra.mxu0 %v1236
  %1264 = vmatpush.msra.mxu0 %v1235
  %1265 = vmatpush.msra.mxu0 %v1234
  %1266 = vmatpush.msra.mxu0 %v1233
  %1267 = vmatpush.msra.mxu0 %v1232
  %1268 = vmatpush.msra.mxu0 %v1231
  %1269 = vmatpush.msra.mxu0 %v1230
  %1270 = vmatpush.msra.mxu0 %v1229
  %1271 = vmatpush.msra.mxu0 %v1228
  %1272 = vmatpush.msra.mxu0 %v1227
  %1273 = vmatpush.msra.mxu0 %v1226
  %1274 = vmatmul.f32.gmra.mxu0 %v1221
  %v1275 = vpop.f32.mrf.mxu0
  %v1276 = vadd.f32 0.0, %v1275
  %1277 = vmatmul.f32.gmra.mxu0 %v1223
  %v1278 = vpop.f32.mrf.mxu0
  %v1279 = vadd.f32 0.0, %v1278
  %1280 = vdwg.mxu0
  %1281 = vmatpush.msra.mxu0 %v1257
  %1282 = vmatpush.msra.mxu0 %v1256
  %1283 = vmatpush.msra.mxu0 %v1255
  %1284 = vmatpush.msra.mxu0 %v1254
  %1285 = vmatpush.msra.mxu0 %v1253
  %1286 = vmatpush.msra.mxu0 %v1252
  %1287 = vmatpush.msra.mxu0 %v1251
  %1288 = vmatpush.msra.mxu0 %v1250
  %1289 = vmatpush.msra.mxu0 %v1249
  %1290 = vmatpush.msra.mxu0 %v1248
  %1291 = vmatpush.msra.mxu0 %v1247
  %1292 = vmatpush.msra.mxu0 %v1246
  %1293 = vmatpush.msra.mxu0 %v1245
  %1294 = vmatpush.msra.mxu0 %v1244
  %1295 = vmatpush.msra.mxu0 %v1243
  %1296 = vmatpush.msra.mxu0 %v1242
  %1297 = vmatmul.f32.gmra.mxu0 %v1222
  %v1298 = vpop.f32.mrf.mxu0
  %v1299 = vadd.f32 %v1276, %v1298
  %1300 = vmatmul.f32.gmra.mxu0 %v1224
  %v1301 = vpop.f32.mrf.mxu0
  %v1302 = vadd.f32 %v1279, %v1301
  %1303 = vdwg.mxu0
  %v1304 = vadd.f32 %v903, %v1299
  %v1305 = vadd.f32 %v904, %v1302
  %v1306 = vperm.slane %v240, 0
  %v1307 = vadd.f32 %v1304, %v1306
  %v1308 = vadd.f32 %v1305, %v1306
  %s1309 = scalar_lea.vmem %s5, 16
  %v1310 = vld [vmem:[%s1309] sm:$0x1]
  %v1311 = vld [vmem:[%s1309 + $0x1] sm:$0x1]
  %v1312 = vld [vmem:[%s1309 + $0x2] sm:$0x1]
  %v1313 = vld [vmem:[%s1309 + $0x3] sm:$0x1]
  %v1314 = vld [vmem:[%s1309 + $0x4] sm:$0x1]
  %v1315 = vld [vmem:[%s1309 + $0x5] sm:$0x1]
  %v1316 = vld [vmem:[%s1309 + $0x6] sm:$0x1]
  %v1317 = vld [vmem:[%s1309 + $0x7] sm:$0x1]
  %v1318 = vld [vmem:[%s1309 + $0x8] sm:$0x1]
  %v1319 = vsel %vm73, %v1307, 0.0
  %1320 = vadd.xlane.f32.xlu0 %v1319
  %v1321 = vpop.xlane.xlu0 %1320
  %v1322 = vsel %vm129, %v1308, 0.0
  %1323 = vadd.xlane.f32.xlu0 %v1322
  %v1324 = vpop.xlane.xlu0 %1323
  %v1325 = vmul.f32 %v1321, %v139
  %v1326 = vmul.f32 %v1324, %v139
  %v1327 = vsub.f32 %v1307, %v1325
  %v1328 = vsub.f32 %v1308, %v1326
  %v1329 = vmul.f32 %v1327, %v1327
  %v1330 = vmul.f32 %v1328, %v1328
  %v1331 = vsel %vm73, %v1329, 0.0
  %1332 = vadd.xlane.f32.xlu0 %v1331
  %v1333 = vpop.xlane.xlu0 %1332
  %v1334 = vsel %vm129, %v1330, 0.0
  %1335 = vadd.xlane.f32.xlu0 %v1334
  %v1336 = vpop.xlane.xlu0 %1335
  %v1337 = vmul.f32 %v1333, %v139
  %v1338 = vmul.f32 %v1336, %v139
  %v1339 = vadd.f32 %v1337, 1e-05
  %v1340 = vadd.f32 %v1338, 1e-05
  %v1341 = vrsqrt.pop %v1339
  %v1342 = vmul.f32 %v1341, %v1339
  %v1343 = vmul.f32 %v1342, %v1341
  %v1344 = vmul.f32 0.5, %v1343
  %v1345 = vsub.f32 1.5, %v1344
  %v1346 = vmul.f32 %v1341, %v1345
  %vm1347 = vweird.f32 %v1339
  %vm1348 = vweird.f32 %v1341
  %vm1349 = vmor %vm1347, %vm1348
  %v1350 = vsel %vm1349, %v1341, %v1346
  %v1351 = vrsqrt.pop %v1340
  %v1352 = vmul.f32 %v1351, %v1340
  %v1353 = vmul.f32 %v1352, %v1351
  %v1354 = vmul.f32 0.5, %v1353
  %v1355 = vsub.f32 1.5, %v1354
  %v1356 = vmul.f32 %v1351, %v1355
  %vm1357 = vweird.f32 %v1340
  %vm1358 = vweird.f32 %v1351
  %vm1359 = vmor %vm1357, %vm1358
  %v1360 = vsel %vm1359, %v1351, %v1356
  %v1361 = vmul.f32 %v1327, %v1350
  %v1362 = vmul.f32 %v1328, %v1360
  %v1363 = vperm.slane %v1310, 0
  %v1364 = vmul.f32 %v1361, %v1363
  %v1365 = vmul.f32 %v1362, %v1363
  %v1366 = vperm.slane %v1311, 0
  %v1367 = vadd.f32 %v1364, %v1366
  %v1368 = vadd.f32 %v1365, %v1366
  %s1369 = scalar_lea.vmem %s3, 256
  %v1370 = vld [vmem:[%s1369] sm:$0xff]
  %v1371 = vld [vmem:[%s1369 + $0x8] sm:$0xff]
  %v1372 = vld [vmem:[%s1369 + $0x10] sm:$0xff]
  %v1373 = vld [vmem:[%s1369 + $0x18] sm:$0xff]
  %v1374 = vld [vmem:[%s1369 + $0x20] sm:$0xff]
  %v1375 = vld [vmem:[%s1369 + $0x28] sm:$0xff]
  %v1376 = vld [vmem:[%s1369 + $0x30] sm:$0xff]
  %v1377 = vld [vmem:[%s1369 + $0x38] sm:$0xff]
  %v1378 = vperm.slane %v1312, 0
  %v1380 = vsel %vm73, %v1367, 0
  %v1383 = vsel %vm73, %v1368, 0
  %1385 = vmatpush.msra.mxu0 0.0
  %1386 = vmatpush.msra.mxu0 0.0
  %1387 = vmatpush.msra.mxu0 0.0
  %1388 = vmatpush.msra.mxu0 0.0
  %1389 = vmatpush.msra.mxu0 0.0
  %1390 = vmatpush.msra.mxu0 0.0
  %1391 = vmatpush.msra.mxu0 0.0
  %1392 = vmatpush.msra.mxu0 0.0
  %1393 = vmatpush.msra.mxu0 %v1377
  %1394 = vmatpush.msra.mxu0 %v1376
  %1395 = vmatpush.msra.mxu0 %v1375
  %1396 = vmatpush.msra.mxu0 %v1374
  %1397 = vmatpush.msra.mxu0 %v1373
  %1398 = vmatpush.msra.mxu0 %v1372
  %1399 = vmatpush.msra.mxu0 %v1371
  %1400 = vmatpush.msra.mxu0 %v1370
  %1401 = vmatmul.f32.gmra.mxu0 %v1380
  %v1402 = vpop.f32.mrf.mxu0
  %v1403 = vadd.f32 %v1378, %v1402
  %1404 = vmatmul.f32.gmra.mxu0 %v1383
  %v1405 = vpop.f32.mrf.mxu0
  %v1406 = vadd.f32 %v1378, %v1405
  %1407 = vdwg.mxu0
  %v1408 = vmul.f32 %v1403, 0.25
  %v1409 = vmul.f32 %v1406, 0.25
  %s1410 = scalar_lea.vmem %s3, 320
  %v1411 = vld [vmem:[%s1410] sm:$0xff]
  %v1412 = vld [vmem:[%s1410 + $0x8] sm:$0xff]
  %v1413 = vld [vmem:[%s1410 + $0x10] sm:$0xff]
  %v1414 = vld [vmem:[%s1410 + $0x18] sm:$0xff]
  %v1415 = vld [vmem:[%s1410 + $0x20] sm:$0xff]
  %v1416 = vld [vmem:[%s1410 + $0x28] sm:$0xff]
  %v1417 = vld [vmem:[%s1410 + $0x30] sm:$0xff]
  %v1418 = vld [vmem:[%s1410 + $0x38] sm:$0xff]
  %v1419 = vperm.slane %v1313, 0
  %1420 = vmatpush.msra.mxu0 0.0
  %1421 = vmatpush.msra.mxu0 0.0
  %1422 = vmatpush.msra.mxu0 0.0
  %1423 = vmatpush.msra.mxu0 0.0
  %1424 = vmatpush.msra.mxu0 0.0
  %1425 = vmatpush.msra.mxu0 0.0
  %1426 = vmatpush.msra.mxu0 0.0
  %1427 = vmatpush.msra.mxu0 0.0
  %1428 = vmatpush.msra.mxu0 %v1418
  %1429 = vmatpush.msra.mxu0 %v1417
  %1430 = vmatpush.msra.mxu0 %v1416
  %1431 = vmatpush.msra.mxu0 %v1415
  %1432 = vmatpush.msra.mxu0 %v1414
  %1433 = vmatpush.msra.mxu0 %v1413
  %1434 = vmatpush.msra.mxu0 %v1412
  %1435 = vmatpush.msra.mxu0 %v1411
  %1436 = vmatmul.f32.gmra.mxu0 %v1380
  %v1437 = vpop.f32.mrf.mxu0
  %v1438 = vadd.f32 %v1419, %v1437
  %1439 = vmatmul.f32.gmra.mxu0 %v1383
  %v1440 = vpop.f32.mrf.mxu0
  %v1441 = vadd.f32 %v1419, %v1440
  %1442 = vdwg.mxu0
  %s1443 = scalar_lea.vmem %s3, 384
  %v1444 = vld [vmem:[%s1443] sm:$0xff]
  %v1445 = vld [vmem:[%s1443 + $0x8] sm:$0xff]
  %v1446 = vld [vmem:[%s1443 + $0x10] sm:$0xff]
  %v1447 = vld [vmem:[%s1443 + $0x18] sm:$0xff]
  %v1448 = vld [vmem:[%s1443 + $0x20] sm:$0xff]
  %v1449 = vld [vmem:[%s1443 + $0x28] sm:$0xff]
  %v1450 = vld [vmem:[%s1443 + $0x30] sm:$0xff]
  %v1451 = vld [vmem:[%s1443 + $0x38] sm:$0xff]
  %v1452 = vperm.slane %v1314, 0
  %1453 = vmatpush.msra.mxu0 0.0
  %1454 = vmatpush.msra.mxu0 0.0
  %1455 = vmatpush.msra.mxu0 0.0
  %1456 = vmatpush.msra.mxu0 0.0
  %1457 = vmatpush.msra.mxu0 0.0
  %1458 = vmatpush.msra.mxu0 0.0
  %1459 = vmatpush.msra.mxu0 0.0
  %1460 = vmatpush.msra.mxu0 0.0
  %1461 = vmatpush.msra.mxu0 %v1451
  %1462 = vmatpush.msra.mxu0 %v1450
  %1463 = vmatpush.msra.mxu0 %v1449
  %1464 = vmatpush.msra.mxu0 %v1448
  %1465 = vmatpush.msra.mxu0 %v1447
  %1466 = vmatpush.msra.mxu0 %v1446
  %1467 = vmatpush.msra.mxu0 %v1445
  %1468 = vmatpush.msra.mxu0 %v1444
  %1469 = vmatmul.f32.gmra.mxu0 %v1380
  %v1470 = vpop.f32.mrf.mxu0
  %v1471 = vadd.f32 %v1452, %v1470
  %1472 = vmatmul.f32.gmra.mxu0 %v1383
  %v1473 = vpop.f32.mrf.mxu0
  %v1474 = vadd.f32 %v1452, %v1473
  %1475 = vdwg.mxu0
  %v1476 = vmul.f32 %v1408, %v189
  %v1477 = vmul.f32 %v1409, %v189
  %v1479 = vsel %vm73, %v1476, 0
  %v1482 = vsel %vm73, %v1477, 0
  %v1485 = vsel %vm73, %v1438, 0
  %v1488 = vsel %vm73, %v1441, 0
  %1490 = vmatpush.xpose.msra.mxu0 0.0
  %1491 = vmatpush.xpose.msra.mxu0 0.0
  %1492 = vmatpush.xpose.msra.mxu0 0.0
  %1493 = vmatpush.xpose.msra.mxu0 0.0
  %1494 = vmatpush.xpose.msra.mxu0 0.0
  %1495 = vmatpush.xpose.msra.mxu0 0.0
  %1496 = vmatpush.xpose.msra.mxu0 0.0
  %1497 = vmatpush.xpose.msra.mxu0 0.0
  %1498 = vmatpush.xpose.msra.mxu0 0.0
  %1499 = vmatpush.xpose.msra.mxu0 0.0
  %1500 = vmatpush.xpose.msra.mxu0 0.0
  %1501 = vmatpush.xpose.msra.mxu0 0.0
  %1502 = vmatpush.xpose.msra.mxu0 0.0
  %1503 = vmatpush.xpose.msra.mxu0 0.0
  %1504 = vmatpush.xpose.msra.mxu0 %v1488
  %1505 = vmatpush.xpose.msra.mxu0 %v1485
  %1506 = vmatmul.f32.gmra.mxu0 %v1479
  %v1507 = vpop.f32.mrf.mxu0
  %v1508 = vadd.f32 %v230, %v1507
  %1509 = vmatmul.f32.gmra.mxu0 %v1482
  %v1510 = vpop.f32.mrf.mxu0
  %v1511 = vadd.f32 %v231, %v1510
  %1512 = vdwg.mxu0
  %v1513 = vsel %vm434, %v1508, -inf
  %1514 = vmax.xlane.f32.xlu0 %v1513
  %v1515 = vpop.xlane.xlu0 %1514
  %v1516 = vsel %vm438, %v1511, -inf
  %1517 = vmax.xlane.f32.xlu0 %v1516
  %v1518 = vpop.xlane.xlu0 %1517
  %v1519 = vsub.f32 %v1508, %v1515
  %v1520 = vsub.f32 %v1511, %v1518
  %v1521 = vmul.f32 %v1519, 1.442695
  %v1522 = vpow.pop %v1521
  %v1523 = vmul.f32 %v1520, 1.442695
  %v1524 = vpow.pop %v1523
  %v1525 = vsel %vm434, %v1522, 0.0
  %1526 = vadd.xlane.f32.xlu0 %v1525
  %v1527 = vpop.xlane.xlu0 %1526
  %v1528 = vsel %vm438, %v1524, 0.0
  %1529 = vadd.xlane.f32.xlu0 %v1528
  %v1530 = vpop.xlane.xlu0 %1529
  %v1531 = vrcp.pop %v1527
  %v1532 = vmul.f32 %v1527, %v1531
  %v1533 = vsub.f32 1.0, %v1532
  %v1534 = vmul.f32 %v1531, %v1533
  %v1535 = vadd.f32 %v1531, %v1534
  %vm1536 = vweird.f32 %v1527
  %vm1537 = vweird.f32 %v1531
  %vm1538 = vmor %vm1536, %vm1537
  %v1539 = vsel %vm1538, %v1531, %v1535
  %v1540 = vand.u32 2147483647, %v1527
  %vm1541 = vcmp.eq.f32.partialorder %v1540, 8.507059e+37
  %v1542 = vand.u32 %v1527, 2147483648
  %v1543 = vor.u32 1.1754944e-38, %v1542
  %v1544 = vsel %vm1541, %v1543, %v1539
  %v1545 = vmul.f32 %v1522, %v1544
  %v1546 = vrcp.pop %v1530
  %v1547 = vmul.f32 %v1530, %v1546
  %v1548 = vsub.f32 1.0, %v1547
  %v1549 = vmul.f32 %v1546, %v1548
  %v1550 = vadd.f32 %v1546, %v1549
  %vm1551 = vweird.f32 %v1530
  %vm1552 = vweird.f32 %v1546
  %vm1553 = vmor %vm1551, %vm1552
  %v1554 = vsel %vm1553, %v1546, %v1550
  %v1555 = vand.u32 2147483647, %v1530
  %vm1556 = vcmp.eq.f32.partialorder %v1555, 8.507059e+37
  %v1557 = vand.u32 %v1530, 2147483648
  %v1558 = vor.u32 1.1754944e-38, %v1557
  %v1559 = vsel %vm1556, %v1558, %v1554
  %v1560 = vmul.f32 %v1524, %v1559
  %v1561 = vmul.f32 %v1471, %v189
  %v1562 = vmul.f32 %v1474, %v189
  %v1563 = vmul.f32 %v1408, %v193
  %v1564 = vmul.f32 %v1409, %v193
  %v1566 = vsel %vm73, %v1563, 0
  %v1569 = vsel %vm73, %v1564, 0
  %1571 = vmatpush.xpose.msra.mxu0 0.0
  %1572 = vmatpush.xpose.msra.mxu0 0.0
  %1573 = vmatpush.xpose.msra.mxu0 0.0
  %1574 = vmatpush.xpose.msra.mxu0 0.0
  %1575 = vmatpush.xpose.msra.mxu0 0.0
  %1576 = vmatpush.xpose.msra.mxu0 0.0
  %1577 = vmatpush.xpose.msra.mxu0 0.0
  %1578 = vmatpush.xpose.msra.mxu0 0.0
  %1579 = vmatpush.xpose.msra.mxu0 0.0
  %1580 = vmatpush.xpose.msra.mxu0 0.0
  %1581 = vmatpush.xpose.msra.mxu0 0.0
  %1582 = vmatpush.xpose.msra.mxu0 0.0
  %1583 = vmatpush.xpose.msra.mxu0 0.0
  %1584 = vmatpush.xpose.msra.mxu0 0.0
  %1585 = vmatpush.xpose.msra.mxu0 %v1488
  %1586 = vmatpush.xpose.msra.mxu0 %v1485
  %1587 = vmatmul.f32.gmra.mxu0 %v1566
  %v1588 = vpop.f32.mrf.mxu0
  %v1589 = vadd.f32 %v230, %v1588
  %1590 = vmatmul.f32.gmra.mxu0 %v1569
  %v1591 = vpop.f32.mrf.mxu0
  %v1592 = vadd.f32 %v231, %v1591
  %1593 = vdwg.mxu0
  %v1594 = vsel %vm434, %v1589, -inf
  %1595 = vmax.xlane.f32.xlu0 %v1594
  %v1596 = vpop.xlane.xlu0 %1595
  %v1597 = vsel %vm438, %v1592, -inf
  %1598 = vmax.xlane.f32.xlu0 %v1597
  %v1599 = vpop.xlane.xlu0 %1598
  %v1600 = vsub.f32 %v1589, %v1596
  %v1601 = vsub.f32 %v1592, %v1599
  %v1602 = vmul.f32 %v1600, 1.442695
  %v1603 = vpow.pop %v1602
  %v1604 = vmul.f32 %v1601, 1.442695
  %v1605 = vpow.pop %v1604
  %v1606 = vsel %vm434, %v1603, 0.0
  %1607 = vadd.xlane.f32.xlu0 %v1606
  %v1608 = vpop.xlane.xlu0 %1607
  %v1609 = vsel %vm438, %v1605, 0.0
  %1610 = vadd.xlane.f32.xlu0 %v1609
  %v1611 = vpop.xlane.xlu0 %1610
  %v1612 = vrcp.pop %v1608
  %v1613 = vmul.f32 %v1608, %v1612
  %v1614 = vsub.f32 1.0, %v1613
  %v1615 = vmul.f32 %v1612, %v1614
  %v1616 = vadd.f32 %v1612, %v1615
  %vm1617 = vweird.f32 %v1608
  %vm1618 = vweird.f32 %v1612
  %vm1619 = vmor %vm1617, %vm1618
  %v1620 = vsel %vm1619, %v1612, %v1616
  %v1621 = vand.u32 2147483647, %v1608
  %vm1622 = vcmp.eq.f32.partialorder %v1621, 8.507059e+37
  %v1623 = vand.u32 %v1608, 2147483648
  %v1624 = vor.u32 1.1754944e-38, %v1623
  %v1625 = vsel %vm1622, %v1624, %v1620
  %v1626 = vmul.f32 %v1603, %v1625
  %v1627 = vrcp.pop %v1611
  %v1628 = vmul.f32 %v1611, %v1627
  %v1629 = vsub.f32 1.0, %v1628
  %v1630 = vmul.f32 %v1627, %v1629
  %v1631 = vadd.f32 %v1627, %v1630
  %vm1632 = vweird.f32 %v1611
  %vm1633 = vweird.f32 %v1627
  %vm1634 = vmor %vm1632, %vm1633
  %v1635 = vsel %vm1634, %v1627, %v1631
  %v1636 = vand.u32 2147483647, %v1611
  %vm1637 = vcmp.eq.f32.partialorder %v1636, 8.507059e+37
  %v1638 = vand.u32 %v1611, 2147483648
  %v1639 = vor.u32 1.1754944e-38, %v1638
  %v1640 = vsel %vm1637, %v1639, %v1635
  %v1641 = vmul.f32 %v1605, %v1640
  %v1642 = vmul.f32 %v1471, %v193
  %v1643 = vmul.f32 %v1474, %v193
  %v1645 = vsel %vm434, %v1626, 0
  %v1648 = vsel %vm434, %v1641, 0
  %v1651 = vsel %vm573, %v1643, 0
  %1653 = vmatpush.msra.mxu0 0.0
  %1654 = vmatpush.msra.mxu0 0.0
  %1655 = vmatpush.msra.mxu0 0.0
  %1656 = vmatpush.msra.mxu0 0.0
  %1657 = vmatpush.msra.mxu0 0.0
  %1658 = vmatpush.msra.mxu0 0.0
  %1659 = vmatpush.msra.mxu0 0.0
  %1660 = vmatpush.msra.mxu0 0.0
  %1661 = vmatpush.msra.mxu0 0.0
  %1662 = vmatpush.msra.mxu0 0.0
  %1663 = vmatpush.msra.mxu0 0.0
  %1664 = vmatpush.msra.mxu0 0.0
  %1665 = vmatpush.msra.mxu0 0.0
  %1666 = vmatpush.msra.mxu0 0.0
  %1667 = vmatpush.msra.mxu0 %v1651
  %1668 = vmatpush.msra.mxu0 %v1642
  %1669 = vmatmul.f32.gmra.mxu0 %v1645
  %v1670 = vpop.f32.mrf.mxu0
  %v1671 = vadd.f32 0.0, %v1670
  %1672 = vmatmul.f32.gmra.mxu0 %v1648
  %v1673 = vpop.f32.mrf.mxu0
  %v1674 = vadd.f32 0.0, %v1673
  %1675 = vdwg.mxu0
  %v1677 = vsel %vm434, %v1545, 0
  %v1680 = vsel %vm434, %v1560, 0
  %v1683 = vsel %vm573, %v1562, 0
  %1685 = vmatpush.msra.mxu0 0.0
  %1686 = vmatpush.msra.mxu0 0.0
  %1687 = vmatpush.msra.mxu0 0.0
  %1688 = vmatpush.msra.mxu0 0.0
  %1689 = vmatpush.msra.mxu0 0.0
  %1690 = vmatpush.msra.mxu0 0.0
  %1691 = vmatpush.msra.mxu0 0.0
  %1692 = vmatpush.msra.mxu0 0.0
  %1693 = vmatpush.msra.mxu0 0.0
  %1694 = vmatpush.msra.mxu0 0.0
  %1695 = vmatpush.msra.mxu0 0.0
  %1696 = vmatpush.msra.mxu0 0.0
  %1697 = vmatpush.msra.mxu0 0.0
  %1698 = vmatpush.msra.mxu0 0.0
  %1699 = vmatpush.msra.mxu0 %v1683
  %1700 = vmatpush.msra.mxu0 %v1561
  %1701 = vmatmul.f32.gmra.mxu0 %v1677
  %v1702 = vpop.f32.mrf.mxu0
  %v1703 = vadd.f32 %v1671, %v1702
  %1704 = vmatmul.f32.gmra.mxu0 %v1680
  %v1705 = vpop.f32.mrf.mxu0
  %v1706 = vadd.f32 %v1674, %v1705
  %1707 = vdwg.mxu0
  %v1708 = vmul.f32 %v1408, %v197
  %v1709 = vmul.f32 %v1409, %v197
  %v1711 = vsel %vm73, %v1708, 0
  %v1714 = vsel %vm73, %v1709, 0
  %1716 = vmatpush.xpose.msra.mxu0 0.0
  %1717 = vmatpush.xpose.msra.mxu0 0.0
  %1718 = vmatpush.xpose.msra.mxu0 0.0
  %1719 = vmatpush.xpose.msra.mxu0 0.0
  %1720 = vmatpush.xpose.msra.mxu0 0.0
  %1721 = vmatpush.xpose.msra.mxu0 0.0
  %1722 = vmatpush.xpose.msra.mxu0 0.0
  %1723 = vmatpush.xpose.msra.mxu0 0.0
  %1724 = vmatpush.xpose.msra.mxu0 0.0
  %1725 = vmatpush.xpose.msra.mxu0 0.0
  %1726 = vmatpush.xpose.msra.mxu0 0.0
  %1727 = vmatpush.xpose.msra.mxu0 0.0
  %1728 = vmatpush.xpose.msra.mxu0 0.0
  %1729 = vmatpush.xpose.msra.mxu0 0.0
  %1730 = vmatpush.xpose.msra.mxu0 %v1488
  %1731 = vmatpush.xpose.msra.mxu0 %v1485
  %1732 = vmatmul.f32.gmra.mxu0 %v1711
  %v1733 = vpop.f32.mrf.mxu0
  %v1734 = vadd.f32 %v230, %v1733
  %1735 = vmatmul.f32.gmra.mxu0 %v1714
  %v1736 = vpop.f32.mrf.mxu0
  %v1737 = vadd.f32 %v231, %v1736
  %1738 = vdwg.mxu0
  %v1739 = vsel %vm434, %v1734, -inf
  %1740 = vmax.xlane.f32.xlu0 %v1739
  %v1741 = vpop.xlane.xlu0 %1740
  %v1742 = vsel %vm438, %v1737, -inf
  %1743 = vmax.xlane.f32.xlu0 %v1742
  %v1744 = vpop.xlane.xlu0 %1743
  %v1745 = vsub.f32 %v1734, %v1741
  %v1746 = vsub.f32 %v1737, %v1744
  %v1747 = vmul.f32 %v1745, 1.442695
  %v1748 = vpow.pop %v1747
  %v1749 = vmul.f32 %v1746, 1.442695
  %v1750 = vpow.pop %v1749
  %v1751 = vsel %vm434, %v1748, 0.0
  %1752 = vadd.xlane.f32.xlu0 %v1751
  %v1753 = vpop.xlane.xlu0 %1752
  %v1754 = vsel %vm438, %v1750, 0.0
  %1755 = vadd.xlane.f32.xlu0 %v1754
  %v1756 = vpop.xlane.xlu0 %1755
  %v1757 = vrcp.pop %v1753
  %v1758 = vmul.f32 %v1753, %v1757
  %v1759 = vsub.f32 1.0, %v1758
  %v1760 = vmul.f32 %v1757, %v1759
  %v1761 = vadd.f32 %v1757, %v1760
  %vm1762 = vweird.f32 %v1753
  %vm1763 = vweird.f32 %v1757
  %vm1764 = vmor %vm1762, %vm1763
  %v1765 = vsel %vm1764, %v1757, %v1761
  %v1766 = vand.u32 2147483647, %v1753
  %vm1767 = vcmp.eq.f32.partialorder %v1766, 8.507059e+37
  %v1768 = vand.u32 %v1753, 2147483648
  %v1769 = vor.u32 1.1754944e-38, %v1768
  %v1770 = vsel %vm1767, %v1769, %v1765
  %v1771 = vmul.f32 %v1748, %v1770
  %v1772 = vrcp.pop %v1756
  %v1773 = vmul.f32 %v1756, %v1772
  %v1774 = vsub.f32 1.0, %v1773
  %v1775 = vmul.f32 %v1772, %v1774
  %v1776 = vadd.f32 %v1772, %v1775
  %vm1777 = vweird.f32 %v1756
  %vm1778 = vweird.f32 %v1772
  %vm1779 = vmor %vm1777, %vm1778
  %v1780 = vsel %vm1779, %v1772, %v1776
  %v1781 = vand.u32 2147483647, %v1756
  %vm1782 = vcmp.eq.f32.partialorder %v1781, 8.507059e+37
  %v1783 = vand.u32 %v1756, 2147483648
  %v1784 = vor.u32 1.1754944e-38, %v1783
  %v1785 = vsel %vm1782, %v1784, %v1780
  %v1786 = vmul.f32 %v1750, %v1785
  %v1787 = vmul.f32 %v1471, %v197
  %v1788 = vmul.f32 %v1474, %v197
  %v1790 = vsel %vm434, %v1771, 0
  %v1793 = vsel %vm434, %v1786, 0
  %v1796 = vsel %vm573, %v1788, 0
  %1798 = vmatpush.msra.mxu0 0.0
  %1799 = vmatpush.msra.mxu0 0.0
  %1800 = vmatpush.msra.mxu0 0.0
  %1801 = vmatpush.msra.mxu0 0.0
  %1802 = vmatpush.msra.mxu0 0.0
  %1803 = vmatpush.msra.mxu0 0.0
  %1804 = vmatpush.msra.mxu0 0.0
  %1805 = vmatpush.msra.mxu0 0.0
  %1806 = vmatpush.msra.mxu0 0.0
  %1807 = vmatpush.msra.mxu0 0.0
  %1808 = vmatpush.msra.mxu0 0.0
  %1809 = vmatpush.msra.mxu0 0.0
  %1810 = vmatpush.msra.mxu0 0.0
  %1811 = vmatpush.msra.mxu0 0.0
  %1812 = vmatpush.msra.mxu0 %v1796
  %1813 = vmatpush.msra.mxu0 %v1787
  %1814 = vmatmul.f32.gmra.mxu0 %v1790
  %v1815 = vpop.f32.mrf.mxu0
  %v1816 = vadd.f32 0.0, %v1815
  %1817 = vmatmul.f32.gmra.mxu0 %v1793
  %v1818 = vpop.f32.mrf.mxu0
  %v1819 = vadd.f32 0.0, %v1818
  %1820 = vdwg.mxu0
  %v1821 = vadd.f32 %v1703, %v1816
  %v1822 = vadd.f32 %v1706, %v1819
  %v1823 = vmul.f32 %v1408, %v201
  %v1824 = vmul.f32 %v1409, %v201
  %v1826 = vsel %vm73, %v1823, 0
  %v1829 = vsel %vm73, %v1824, 0
  %1831 = vmatpush.xpose.msra.mxu0 0.0
  %1832 = vmatpush.xpose.msra.mxu0 0.0
  %1833 = vmatpush.xpose.msra.mxu0 0.0
  %1834 = vmatpush.xpose.msra.mxu0 0.0
  %1835 = vmatpush.xpose.msra.mxu0 0.0
  %1836 = vmatpush.xpose.msra.mxu0 0.0
  %1837 = vmatpush.xpose.msra.mxu0 0.0
  %1838 = vmatpush.xpose.msra.mxu0 0.0
  %1839 = vmatpush.xpose.msra.mxu0 0.0
  %1840 = vmatpush.xpose.msra.mxu0 0.0
  %1841 = vmatpush.xpose.msra.mxu0 0.0
  %1842 = vmatpush.xpose.msra.mxu0 0.0
  %1843 = vmatpush.xpose.msra.mxu0 0.0
  %1844 = vmatpush.xpose.msra.mxu0 0.0
  %1845 = vmatpush.xpose.msra.mxu0 %v1488
  %1846 = vmatpush.xpose.msra.mxu0 %v1485
  %1847 = vmatmul.f32.gmra.mxu0 %v1826
  %v1848 = vpop.f32.mrf.mxu0
  %v1849 = vadd.f32 %v230, %v1848
  %1850 = vmatmul.f32.gmra.mxu0 %v1829
  %v1851 = vpop.f32.mrf.mxu0
  %v1852 = vadd.f32 %v231, %v1851
  %1853 = vdwg.mxu0
  %v1854 = vsel %vm434, %v1849, -inf
  %1855 = vmax.xlane.f32.xlu0 %v1854
  %v1856 = vpop.xlane.xlu0 %1855
  %v1857 = vsel %vm438, %v1852, -inf
  %1858 = vmax.xlane.f32.xlu0 %v1857
  %v1859 = vpop.xlane.xlu0 %1858
  %v1860 = vsub.f32 %v1849, %v1856
  %v1861 = vsub.f32 %v1852, %v1859
  %v1862 = vmul.f32 %v1860, 1.442695
  %v1863 = vpow.pop %v1862
  %v1864 = vmul.f32 %v1861, 1.442695
  %v1865 = vpow.pop %v1864
  %v1866 = vsel %vm434, %v1863, 0.0
  %1867 = vadd.xlane.f32.xlu0 %v1866
  %v1868 = vpop.xlane.xlu0 %1867
  %v1869 = vsel %vm438, %v1865, 0.0
  %1870 = vadd.xlane.f32.xlu0 %v1869
  %v1871 = vpop.xlane.xlu0 %1870
  %v1872 = vrcp.pop %v1868
  %v1873 = vmul.f32 %v1868, %v1872
  %v1874 = vsub.f32 1.0, %v1873
  %v1875 = vmul.f32 %v1872, %v1874
  %v1876 = vadd.f32 %v1872, %v1875
  %vm1877 = vweird.f32 %v1868
  %vm1878 = vweird.f32 %v1872
  %vm1879 = vmor %vm1877, %vm1878
  %v1880 = vsel %vm1879, %v1872, %v1876
  %v1881 = vand.u32 2147483647, %v1868
  %vm1882 = vcmp.eq.f32.partialorder %v1881, 8.507059e+37
  %v1883 = vand.u32 %v1868, 2147483648
  %v1884 = vor.u32 1.1754944e-38, %v1883
  %v1885 = vsel %vm1882, %v1884, %v1880
  %v1886 = vmul.f32 %v1863, %v1885
  %v1887 = vrcp.pop %v1871
  %v1888 = vmul.f32 %v1871, %v1887
  %v1889 = vsub.f32 1.0, %v1888
  %v1890 = vmul.f32 %v1887, %v1889
  %v1891 = vadd.f32 %v1887, %v1890
  %vm1892 = vweird.f32 %v1871
  %vm1893 = vweird.f32 %v1887
  %vm1894 = vmor %vm1892, %vm1893
  %v1895 = vsel %vm1894, %v1887, %v1891
  %v1896 = vand.u32 2147483647, %v1871
  %vm1897 = vcmp.eq.f32.partialorder %v1896, 8.507059e+37
  %v1898 = vand.u32 %v1871, 2147483648
  %v1899 = vor.u32 1.1754944e-38, %v1898
  %v1900 = vsel %vm1897, %v1899, %v1895
  %v1901 = vmul.f32 %v1865, %v1900
  %v1902 = vmul.f32 %v1471, %v201
  %v1903 = vmul.f32 %v1474, %v201
  %v1905 = vsel %vm434, %v1886, 0
  %v1908 = vsel %vm434, %v1901, 0
  %v1911 = vsel %vm573, %v1903, 0
  %1913 = vmatpush.msra.mxu0 0.0
  %1914 = vmatpush.msra.mxu0 0.0
  %1915 = vmatpush.msra.mxu0 0.0
  %1916 = vmatpush.msra.mxu0 0.0
  %1917 = vmatpush.msra.mxu0 0.0
  %1918 = vmatpush.msra.mxu0 0.0
  %1919 = vmatpush.msra.mxu0 0.0
  %1920 = vmatpush.msra.mxu0 0.0
  %1921 = vmatpush.msra.mxu0 0.0
  %1922 = vmatpush.msra.mxu0 0.0
  %1923 = vmatpush.msra.mxu0 0.0
  %1924 = vmatpush.msra.mxu0 0.0
  %1925 = vmatpush.msra.mxu0 0.0
  %1926 = vmatpush.msra.mxu0 0.0
  %1927 = vmatpush.msra.mxu0 %v1911
  %1928 = vmatpush.msra.mxu0 %v1902
  %1929 = vmatmul.f32.gmra.mxu0 %v1905
  %v1930 = vpop.f32.mrf.mxu0
  %v1931 = vadd.f32 0.0, %v1930
  %1932 = vmatmul.f32.gmra.mxu0 %v1908
  %v1933 = vpop.f32.mrf.mxu0
  %v1934 = vadd.f32 0.0, %v1933
  %1935 = vdwg.mxu0
  %v1936 = vadd.f32 %v1821, %v1931
  %v1937 = vadd.f32 %v1822, %v1934
  %s1938 = scalar_lea.vmem %s3, 448
  %v1939 = vld [vmem:[%s1938] sm:$0xff]
  %v1940 = vld [vmem:[%s1938 + $0x8] sm:$0xff]
  %v1941 = vld [vmem:[%s1938 + $0x10] sm:$0xff]
  %v1942 = vld [vmem:[%s1938 + $0x18] sm:$0xff]
  %v1943 = vld [vmem:[%s1938 + $0x20] sm:$0xff]
  %v1944 = vld [vmem:[%s1938 + $0x28] sm:$0xff]
  %v1945 = vld [vmem:[%s1938 + $0x30] sm:$0xff]
  %v1946 = vld [vmem:[%s1938 + $0x38] sm:$0xff]
  %v1948 = vsel %vm73, %v1936, 0
  %v1951 = vsel %vm73, %v1937, 0
  %1953 = vmatpush.msra.mxu0 0.0
  %1954 = vmatpush.msra.mxu0 0.0
  %1955 = vmatpush.msra.mxu0 0.0
  %1956 = vmatpush.msra.mxu0 0.0
  %1957 = vmatpush.msra.mxu0 0.0
  %1958 = vmatpush.msra.mxu0 0.0
  %1959 = vmatpush.msra.mxu0 0.0
  %1960 = vmatpush.msra.mxu0 0.0
  %1961 = vmatpush.msra.mxu0 %v1946
  %1962 = vmatpush.msra.mxu0 %v1945
  %1963 = vmatpush.msra.mxu0 %v1944
  %1964 = vmatpush.msra.mxu0 %v1943
  %1965 = vmatpush.msra.mxu0 %v1942
  %1966 = vmatpush.msra.mxu0 %v1941
  %1967 = vmatpush.msra.mxu0 %v1940
  %1968 = vmatpush.msra.mxu0 %v1939
  %1969 = vmatmul.f32.gmra.mxu0 %v1948
  %v1970 = vpop.f32.mrf.mxu0
  %v1971 = vadd.f32 0.0, %v1970
  %1972 = vmatmul.f32.gmra.mxu0 %v1951
  %v1973 = vpop.f32.mrf.mxu0
  %v1974 = vadd.f32 0.0, %v1973
  %1975 = vdwg.mxu0
  %v1976 = vadd.f32 %v1307, %v1971
  %v1977 = vadd.f32 %v1308, %v1974
  %v1978 = vperm.slane %v1315, 0
  %v1979 = vadd.f32 %v1976, %v1978
  %v1980 = vadd.f32 %v1977, %v1978
  %v1981 = vsel %vm73, %v1979, 0.0
  %1982 = vadd.xlane.f32.xlu0 %v1981
  %v1983 = vpop.xlane.xlu0 %1982
  %v1984 = vsel %vm129, %v1980, 0.0
  %1985 = vadd.xlane.f32.xlu0 %v1984
  %v1986 = vpop.xlane.xlu0 %1985
  %v1987 = vmul.f32 %v1983, %v139
  %v1988 = vmul.f32 %v1986, %v139
  %v1989 = vsub.f32 %v1979, %v1987
  %v1990 = vsub.f32 %v1980, %v1988
  %v1991 = vmul.f32 %v1989, %v1989
  %v1992 = vmul.f32 %v1990, %v1990
  %v1993 = vsel %vm73, %v1991, 0.0
  %1994 = vadd.xlane.f32.xlu0 %v1993
  %v1995 = vpop.xlane.xlu0 %1994
  %v1996 = vsel %vm129, %v1992, 0.0
  %1997 = vadd.xlane.f32.xlu0 %v1996
  %v1998 = vpop.xlane.xlu0 %1997
  %v1999 = vmul.f32 %v1995, %v139
  %v2000 = vmul.f32 %v1998, %v139
  %v2001 = vadd.f32 %v1999, 1e-05
  %v2002 = vadd.f32 %v2000, 1e-05
  %v2003 = vrsqrt.pop %v2001
  %v2004 = vmul.f32 %v2003, %v2001
  %v2005 = vmul.f32 %v2004, %v2003
  %v2006 = vmul.f32 0.5, %v2005
  %v2007 = vsub.f32 1.5, %v2006
  %v2008 = vmul.f32 %v2003, %v2007
  %vm2009 = vweird.f32 %v2001
  %vm2010 = vweird.f32 %v2003
  %vm2011 = vmor %vm2009, %vm2010
  %v2012 = vsel %vm2011, %v2003, %v2008
  %v2013 = vrsqrt.pop %v2002
  %v2014 = vmul.f32 %v2013, %v2002
  %v2015 = vmul.f32 %v2014, %v2013
  %v2016 = vmul.f32 0.5, %v2015
  %v2017 = vsub.f32 1.5, %v2016
  %v2018 = vmul.f32 %v2013, %v2017
  %vm2019 = vweird.f32 %v2002
  %vm2020 = vweird.f32 %v2013
  %vm2021 = vmor %vm2019, %vm2020
  %v2022 = vsel %vm2021, %v2013, %v2018
  %v2023 = vmul.f32 %v1989, %v2012
  %v2024 = vmul.f32 %v1990, %v2022
  %v2025 = vperm.slane %v1316, 0
  %v2026 = vmul.f32 %v2023, %v2025
  %v2027 = vmul.f32 %v2024, %v2025
  %v2028 = vperm.slane %v1317, 0
  %v2029 = vadd.f32 %v2026, %v2028
  %v2030 = vadd.f32 %v2027, %v2028
  %s2031 = scalar_lea.vmem %s4, 512
  %v2032 = vld [vmem:[%s2031] sm:$0xff]
  %v2033 = vld [vmem:[%s2031 + $0x8] sm:$0xff]
  %v2034 = vld [vmem:[%s2031 + $0x10] sm:$0xff]
  %v2035 = vld [vmem:[%s2031 + $0x18] sm:$0xff]
  %v2036 = vld [vmem:[%s2031 + $0x20] sm:$0xff]
  %v2037 = vld [vmem:[%s2031 + $0x28] sm:$0xff]
  %v2038 = vld [vmem:[%s2031 + $0x30] sm:$0xff]
  %v2039 = vld [vmem:[%s2031 + $0x38] sm:$0xff]
  %v2040 = vld [vmem:[%s2031 + $0x40] sm:$0xff]
  %v2041 = vld [vmem:[%s2031 + $0x48] sm:$0xff]
  %v2042 = vld [vmem:[%s2031 + $0x50] sm:$0xff]
  %v2043 = vld [vmem:[%s2031 + $0x58] sm:$0xff]
  %v2044 = vld [vmem:[%s2031 + $0x60] sm:$0xff]
  %v2045 = vld [vmem:[%s2031 + $0x68] sm:$0xff]
  %v2046 = vld [vmem:[%s2031 + $0x70] sm:$0xff]
  %v2047 = vld [vmem:[%s2031 + $0x78] sm:$0xff]
  %v2048 = vld [vmem:[%s2031 + $0x80] sm:$0xff]
  %v2049 = vld [vmem:[%s2031 + $0x88] sm:$0xff]
  %v2050 = vld [vmem:[%s2031 + $0x90] sm:$0xff]
  %v2051 = vld [vmem:[%s2031 + $0x98] sm:$0xff]
  %v2052 = vld [vmem:[%s2031 + $0xa0] sm:$0xff]
  %v2053 = vld [vmem:[%s2031 + $0xa8] sm:$0xff]
  %v2054 = vld [vmem:[%s2031 + $0xb0] sm:$0xff]
  %v2055 = vld [vmem:[%s2031 + $0xb8] sm:$0xff]
  %v2056 = vld [vmem:[%s2031 + $0xc0] sm:$0xff]
  %v2057 = vld [vmem:[%s2031 + $0xc8] sm:$0xff]
  %v2058 = vld [vmem:[%s2031 + $0xd0] sm:$0xff]
  %v2059 = vld [vmem:[%s2031 + $0xd8] sm:$0xff]
  %v2060 = vld [vmem:[%s2031 + $0xe0] sm:$0xff]
  %v2061 = vld [vmem:[%s2031 + $0xe8] sm:$0xff]
  %v2062 = vld [vmem:[%s2031 + $0xf0] sm:$0xff]
  %v2063 = vld [vmem:[%s2031 + $0xf8] sm:$0xff]
  %s2064 = scalar_lea.vmem %s6, 2
  %v2065 = vld [vmem:[%s2064] sm:$0x3]
  %v2067 = vperm.slane %v2065, 0
  %v2068 = vperm.slane %v2065, 1
  %v2072 = vsel %vm73, %v2029, 0
  %v2075 = vsel %vm73, %v2030, 0
  %v2078 = vsel %vm73, %v2032, 0
  %v2081 = vsel %vm73, %v2033, 0
  %v2084 = vsel %vm73, %v2034, 0
  %v2087 = vsel %vm73, %v2035, 0
  %v2090 = vsel %vm73, %v2036, 0
  %v2093 = vsel %vm73, %v2037, 0
  %v2096 = vsel %vm73, %v2038, 0
  %v2099 = vsel %vm73, %v2039, 0
  %v2102 = vsel %vm73, %v2040, 0
  %v2105 = vsel %vm73, %v2041, 0
  %v2108 = vsel %vm73, %v2042, 0
  %v2111 = vsel %vm73, %v2043, 0
  %v2114 = vsel %vm73, %v2044, 0
  %v2117 = vsel %vm73, %v2045, 0
  %v2120 = vsel %vm73, %v2046, 0
  %v2123 = vsel %vm73, %v2047, 0
  %v2126 = vsel %vm73, %v2048, 0
  %v2129 = vsel %vm73, %v2049, 0
  %v2132 = vsel %vm73, %v2050, 0
  %v2135 = vsel %vm73, %v2051, 0
  %v2138 = vsel %vm73, %v2052, 0
  %v2141 = vsel %vm73, %v2053, 0
  %v2144 = vsel %vm73, %v2054, 0
  %v2147 = vsel %vm73, %v2055, 0
  %v2150 = vsel %vm73, %v2056, 0
  %v2153 = vsel %vm73, %v2057, 0
  %v2156 = vsel %vm73, %v2058, 0
  %v2159 = vsel %vm73, %v2059, 0
  %v2162 = vsel %vm73, %v2060, 0
  %v2165 = vsel %vm73, %v2061, 0
  %v2168 = vsel %vm73, %v2062, 0
  %v2171 = vsel %vm73, %v2063, 0
  %2173 = vmatpush.xpose.msra.mxu0 %v2123
  %2174 = vmatpush.xpose.msra.mxu0 %v2120
  %2175 = vmatpush.xpose.msra.mxu0 %v2117
  %2176 = vmatpush.xpose.msra.mxu0 %v2114
  %2177 = vmatpush.xpose.msra.mxu0 %v2111
  %2178 = vmatpush.xpose.msra.mxu0 %v2108
  %2179 = vmatpush.xpose.msra.mxu0 %v2105
  %2180 = vmatpush.xpose.msra.mxu0 %v2102
  %2181 = vmatpush.xpose.msra.mxu0 %v2099
  %2182 = vmatpush.xpose.msra.mxu0 %v2096
  %2183 = vmatpush.xpose.msra.mxu0 %v2093
  %2184 = vmatpush.xpose.msra.mxu0 %v2090
  %2185 = vmatpush.xpose.msra.mxu0 %v2087
  %2186 = vmatpush.xpose.msra.mxu0 %v2084
  %2187 = vmatpush.xpose.msra.mxu0 %v2081
  %2188 = vmatpush.xpose.msra.mxu0 %v2078
  %2189 = vmatmul.f32.gmra.mxu0 %v2072
  %v2190 = vpop.f32.mrf.mxu0
  %v2191 = vadd.f32 %v2067, %v2190
  %2192 = vmatmul.f32.gmra.mxu0 %v2075
  %v2193 = vpop.f32.mrf.mxu0
  %v2194 = vadd.f32 %v2067, %v2193
  %2195 = vdwg.mxu0
  %2196 = vmatpush.xpose.msra.mxu0 %v2171
  %2197 = vmatpush.xpose.msra.mxu0 %v2168
  %2198 = vmatpush.xpose.msra.mxu0 %v2165
  %2199 = vmatpush.xpose.msra.mxu0 %v2162
  %2200 = vmatpush.xpose.msra.mxu0 %v2159
  %2201 = vmatpush.xpose.msra.mxu0 %v2156
  %2202 = vmatpush.xpose.msra.mxu0 %v2153
  %2203 = vmatpush.xpose.msra.mxu0 %v2150
  %2204 = vmatpush.xpose.msra.mxu0 %v2147
  %2205 = vmatpush.xpose.msra.mxu0 %v2144
  %2206 = vmatpush.xpose.msra.mxu0 %v2141
  %2207 = vmatpush.xpose.msra.mxu0 %v2138
  %2208 = vmatpush.xpose.msra.mxu0 %v2135
  %2209 = vmatpush.xpose.msra.mxu0 %v2132
  %2210 = vmatpush.xpose.msra.mxu0 %v2129
  %2211 = vmatpush.xpose.msra.mxu0 %v2126
  %2212 = vmatmul.f32.gmra.mxu0 %v2072
  %v2213 = vpop.f32.mrf.mxu0
  %v2214 = vadd.f32 %v2068, %v2213
  %2215 = vmatmul.f32.gmra.mxu0 %v2075
  %v2216 = vpop.f32.mrf.mxu0
  %v2217 = vadd.f32 %v2068, %v2216
  %2218 = vdwg.mxu0
  %v2219 = vmul.f32 %v2191, 1.702
  %v2220 = vmul.f32 %v2214, 1.702
  %v2221 = vmul.f32 %v2194, 1.702
  %v2222 = vmul.f32 %v2217, 1.702
  %v2223 = vxor.u32 %v2219, 2147483648
  %v2224 = vxor.u32 %v2220, 2147483648
  %v2225 = vxor.u32 %v2221, 2147483648
  %v2226 = vxor.u32 %v2222, 2147483648
  %v2227 = vmul.f32 %v2223, 1.442695
  %v2228 = vpow.pop %v2227
  %v2229 = vmul.f32 %v2224, 1.442695
  %v2230 = vpow.pop %v2229
  %v2231 = vmul.f32 %v2225, 1.442695
  %v2232 = vpow.pop %v2231
  %v2233 = vmul.f32 %v2226, 1.442695
  %v2234 = vpow.pop %v2233
  %v2235 = vadd.f32 %v2228, 1.0
  %v2236 = vadd.f32 %v2230, 1.0
  %v2237 = vadd.f32 %v2232, 1.0
  %v2238 = vadd.f32 %v2234, 1.0
  %v2239 = vrcp.pop %v2235
  %v2240 = vmul.f32 %v2235, %v2239
  %v2241 = vsub.f32 1.0, %v2240
  %v2242 = vmul.f32 %v2239, %v2241
  %v2243 = vadd.f32 %v2239, %v2242
  %vm2244 = vweird.f32 %v2235
  %vm2245 = vweird.f32 %v2239
  %vm2246 = vmor %vm2244, %vm2245
  %v2247 = vsel %vm2246, %v2239, %v2243
  %v2248 = vand.u32 2147483647, %v2235
  %vm2249 = vcmp.eq.f32.partialorder %v2248, 8.507059e+37
  %v2250 = vand.u32 %v2235, 2147483648
  %v2251 = vor.u32 1.1754944e-38, %v2250
  %v2252 = vsel %vm2249, %v2251, %v2247
  %v2253 = vmul.f32 1.0, %v2252
  %v2254 = vrcp.pop %v2236
  %v2255 = vmul.f32 %v2236, %v2254
  %v2256 = vsub.f32 1.0, %v2255
  %v2257 = vmul.f32 %v2254, %v2256
  %v2258 = vadd.f32 %v2254, %v2257
  %vm2259 = vweird.f32 %v2236
  %vm2260 = vweird.f32 %v2254
  %vm2261 = vmor %vm2259, %vm2260
  %v2262 = vsel %vm2261, %v2254, %v2258
  %v2263 = vand.u32 2147483647, %v2236
  %vm2264 = vcmp.eq.f32.partialorder %v2263, 8.507059e+37
  %v2265 = vand.u32 %v2236, 2147483648
  %v2266 = vor.u32 1.1754944e-38, %v2265
  %v2267 = vsel %vm2264, %v2266, %v2262
  %v2268 = vmul.f32 1.0, %v2267
  %v2269 = vrcp.pop %v2237
  %v2270 = vmul.f32 %v2237, %v2269
  %v2271 = vsub.f32 1.0, %v2270
  %v2272 = vmul.f32 %v2269, %v2271
  %v2273 = vadd.f32 %v2269, %v2272
  %vm2274 = vweird.f32 %v2237
  %vm2275 = vweird.f32 %v2269
  %vm2276 = vmor %vm2274, %vm2275
  %v2277 = vsel %vm2276, %v2269, %v2273
  %v2278 = vand.u32 2147483647, %v2237
  %vm2279 = vcmp.eq.f32.partialorder %v2278, 8.507059e+37
  %v2280 = vand.u32 %v2237, 2147483648
  %v2281 = vor.u32 1.1754944e-38, %v2280
  %v2282 = vsel %vm2279, %v2281, %v2277
  %v2283 = vmul.f32 1.0, %v2282
  %v2284 = vrcp.pop %v2238
  %v2285 = vmul.f32 %v2238, %v2284
  %v2286 = vsub.f32 1.0, %v2285
  %v2287 = vmul.f32 %v2284, %v2286
  %v2288 = vadd.f32 %v2284, %v2287
  %vm2289 = vweird.f32 %v2238
  %vm2290 = vweird.f32 %v2284
  %vm2291 = vmor %vm2289, %vm2290
  %v2292 = vsel %vm2291, %v2284, %v2288
  %v2293 = vand.u32 2147483647, %v2238
  %vm2294 = vcmp.eq.f32.partialorder %v2293, 8.507059e+37
  %v2295 = vand.u32 %v2238, 2147483648
  %v2296 = vor.u32 1.1754944e-38, %v2295
  %v2297 = vsel %vm2294, %v2296, %v2292
  %v2298 = vmul.f32 1.0, %v2297
  %v2299 = vmul.f32 %v2191, %v2253
  %v2300 = vmul.f32 %v2214, %v2268
  %v2301 = vmul.f32 %v2194, %v2283
  %v2302 = vmul.f32 %v2217, %v2298
  %s2303 = scalar_lea.vmem %s4, 768
  %v2304 = vld [vmem:[%s2303] sm:$0xff]
  %v2305 = vld [vmem:[%s2303 + $0x8] sm:$0xff]
  %v2306 = vld [vmem:[%s2303 + $0x10] sm:$0xff]
  %v2307 = vld [vmem:[%s2303 + $0x18] sm:$0xff]
  %v2308 = vld [vmem:[%s2303 + $0x20] sm:$0xff]
  %v2309 = vld [vmem:[%s2303 + $0x28] sm:$0xff]
  %v2310 = vld [vmem:[%s2303 + $0x30] sm:$0xff]
  %v2311 = vld [vmem:[%s2303 + $0x38] sm:$0xff]
  %v2312 = vld [vmem:[%s2303 + $0x40] sm:$0xff]
  %v2313 = vld [vmem:[%s2303 + $0x48] sm:$0xff]
  %v2314 = vld [vmem:[%s2303 + $0x50] sm:$0xff]
  %v2315 = vld [vmem:[%s2303 + $0x58] sm:$0xff]
  %v2316 = vld [vmem:[%s2303 + $0x60] sm:$0xff]
  %v2317 = vld [vmem:[%s2303 + $0x68] sm:$0xff]
  %v2318 = vld [vmem:[%s2303 + $0x70] sm:$0xff]
  %v2319 = vld [vmem:[%s2303 + $0x78] sm:$0xff]
  %v2320 = vld [vmem:[%s2303 + $0x80] sm:$0xff]
  %v2321 = vld [vmem:[%s2303 + $0x88] sm:$0xff]
  %v2322 = vld [vmem:[%s2303 + $0x90] sm:$0xff]
  %v2323 = vld [vmem:[%s2303 + $0x98] sm:$0xff]
  %v2324 = vld [vmem:[%s2303 + $0xa0] sm:$0xff]
  %v2325 = vld [vmem:[%s2303 + $0xa8] sm:$0xff]
  %v2326 = vld [vmem:[%s2303 + $0xb0] sm:$0xff]
  %v2327 = vld [vmem:[%s2303 + $0xb8] sm:$0xff]
  %v2328 = vld [vmem:[%s2303 + $0xc0] sm:$0xff]
  %v2329 = vld [vmem:[%s2303 + $0xc8] sm:$0xff]
  %v2330 = vld [vmem:[%s2303 + $0xd0] sm:$0xff]
  %v2331 = vld [vmem:[%s2303 + $0xd8] sm:$0xff]
  %v2332 = vld [vmem:[%s2303 + $0xe0] sm:$0xff]
  %v2333 = vld [vmem:[%s2303 + $0xe8] sm:$0xff]
  %v2334 = vld [vmem:[%s2303 + $0xf0] sm:$0xff]
  %v2335 = vld [vmem:[%s2303 + $0xf8] sm:$0xff]
  %2336 = vmatpush.msra.mxu0 %v2319
  %2337 = vmatpush.msra.mxu0 %v2318
  %2338 = vmatpush.msra.mxu0 %v2317
  %2339 = vmatpush.msra.mxu0 %v2316
  %2340 = vmatpush.msra.mxu0 %v2315
  %2341 = vmatpush.msra.mxu0 %v2314
  %2342 = vmatpush.msra.mxu0 %v2313
  %2343 = vmatpush.msra.mxu0 %v2312
  %2344 = vmatpush.msra.mxu0 %v2311
  %2345 = vmatpush.msra.mxu0 %v2310
  %2346 = vmatpush.msra.mxu0 %v2309
  %2347 = vmatpush.msra.mxu0 %v2308
  %2348 = vmatpush.msra.mxu0 %v2307
  %2349 = vmatpush.msra.mxu0 %v2306
  %2350 = vmatpush.msra.mxu0 %v2305
  %2351 = vmatpush.msra.mxu0 %v2304
  %2352 = vmatmul.f32.gmra.mxu0 %v2299
  %v2353 = vpop.f32.mrf.mxu0
  %v2354 = vadd.f32 0.0, %v2353
  %2355 = vmatmul.f32.gmra.mxu0 %v2301
  %v2356 = vpop.f32.mrf.mxu0
  %v2357 = vadd.f32 0.0, %v2356
  %2358 = vdwg.mxu0
  %2359 = vmatpush.msra.mxu0 %v2335
  %2360 = vmatpush.msra.mxu0 %v2334
  %2361 = vmatpush.msra.mxu0 %v2333
  %2362 = vmatpush.msra.mxu0 %v2332
  %2363 = vmatpush.msra.mxu0 %v2331
  %2364 = vmatpush.msra.mxu0 %v2330
  %2365 = vmatpush.msra.mxu0 %v2329
  %2366 = vmatpush.msra.mxu0 %v2328
  %2367 = vmatpush.msra.mxu0 %v2327
  %2368 = vmatpush.msra.mxu0 %v2326
  %2369 = vmatpush.msra.mxu0 %v2325
  %2370 = vmatpush.msra.mxu0 %v2324
  %2371 = vmatpush.msra.mxu0 %v2323
  %2372 = vmatpush.msra.mxu0 %v2322
  %2373 = vmatpush.msra.mxu0 %v2321
  %2374 = vmatpush.msra.mxu0 %v2320
  %2375 = vmatmul.f32.gmra.mxu0 %v2300
  %v2376 = vpop.f32.mrf.mxu0
  %v2377 = vadd.f32 %v2354, %v2376
  %2378 = vmatmul.f32.gmra.mxu0 %v2302
  %v2379 = vpop.f32.mrf.mxu0
  %v2380 = vadd.f32 %v2357, %v2379
  %2381 = vdwg.mxu0
  %v2382 = vadd.f32 %v1979, %v2377
  %v2383 = vadd.f32 %v1980, %v2380
  %v2384 = vperm.slane %v1318, 0
  %v2385 = vadd.f32 %v2382, %v2384
  %v2386 = vadd.f32 %v2383, %v2384
  %v2387 = vld [vmem:[%s11 + $0x40] sm:$0xff]
  %v2388 = vld [vmem:[%s11 + $0x48] sm:$0xff]
  %v2389 = vld [vmem:[%s11 + $0x50] sm:$0xff]
  %v2390 = vld [vmem:[%s11 + $0x58] sm:$0xff]
  %v2391 = vld [vmem:[%s11 + $0x60] sm:$0xff]
  %v2392 = vld [vmem:[%s11 + $0x68] sm:$0xff]
  %v2393 = vld [vmem:[%s11 + $0x70] sm:$0xff]
  %v2394 = vld [vmem:[%s11 + $0x78] sm:$0xff]
  %v2395 = vld [vmem:[%s11 + $0x92] sm:$0x1]
  %v2396 = vperm.slane %v2395, 0
  %v2398 = vsel %vm73, %v2385, 0
  %v2401 = vsel %vm73, %v2386, 0
  %2403 = vmatpush.msra.mxu0 0.0
  %2404 = vmatpush.msra.mxu0 0.0
  %2405 = vmatpush.msra.mxu0 0.0
  %2406 = vmatpush.msra.mxu0 0.0
  %2407 = vmatpush.msra.mxu0 0.0
  %2408 = vmatpush.msra.mxu0 0.0
  %2409 = vmatpush.msra.mxu0 0.0
  %2410 = vmatpush.msra.mxu0 0.0
  %2411 = vmatpush.msra.mxu0 %v2394
  %2412 = vmatpush.msra.mxu0 %v2393
  %2413 = vmatpush.msra.mxu0 %v2392
  %2414 = vmatpush.msra.mxu0 %v2391
  %2415 = vmatpush.msra.mxu0 %v2390
  %2416 = vmatpush.msra.mxu0 %v2389
  %2417 = vmatpush.msra.mxu0 %v2388
  %2418 = vmatpush.msra.mxu0 %v2387
  %2419 = vmatmul.f32.gmra.mxu0 %v2398
  %v2420 = vpop.f32.mrf.mxu0
  %v2421 = vadd.f32 %v2396, %v2420
  %2422 = vmatmul.f32.gmra.mxu0 %v2401
  %v2423 = vpop.f32.mrf.mxu0
  %v2424 = vadd.f32 %v2396, %v2423
  %2425 = vdwg.mxu0
  %v2426 = vld [vmem:[%s11] sm:$0xff]
  %v2427 = vld [vmem:[%s11 + $0x8] sm:$0xff]
  %v2428 = vld [vmem:[%s11 + $0x10] sm:$0xff]
  %v2429 = vld [vmem:[%s11 + $0x18] sm:$0xff]
  %v2430 = vld [vmem:[%s11 + $0x20] sm:$0xff]
  %v2431 = vld [vmem:[%s11 + $0x28] sm:$0xff]
  %v2432 = vld [vmem:[%s11 + $0x30] sm:$0xff]
  %v2433 = vld [vmem:[%s11 + $0x38] sm:$0xff]
  %v2434 = vld [vmem:[%s11 + $0x80] sm:$0xff]
  %v2435 = vld [vmem:[%s11 + $0x88] sm:$0xff]
  %v2436 = vld [vmem:[%s11 + $0x90] sm:$0x1]
  %v2437 = vld [vmem:[%s11 + $0x91] sm:$0x1]
  %v2438 = vld [vmem:[%s1] sm:$0xff]
  %v2439 = vld [vmem:[%s1 + $0x8] sm:$0xff]
  %2440 = vset.pattern.permute.xlu0 0
  %2441 = vperm.xlu0 %2440, %v2438
  %v2442 = vpop.permute.xlu0 %2441
  %2443 = vset.pattern.permute.xlu0 0
  %2444 = vperm.xlu0 %2443, %v2439
  %v2445 = vpop.permute.xlu0 %2444
  %vm2446 = vcmp.eq.s32.totalorder %v185, %v2442
  %vm2447 = vcmp.eq.s32.totalorder %v185, %v2445
  %v2448 = vsel %vm2446, 1.0, 0.0
  %v2449 = vsel %vm2447, 1.0, 0.0
  %v2451 = vsel %vm73, %v2448, 0
  %v2454 = vsel %vm73, %v2449, 0
  %2456 = vmatpush.msra.mxu0 0.0
  %2457 = vmatpush.msra.mxu0 0.0
  %2458 = vmatpush.msra.mxu0 0.0
  %2459 = vmatpush.msra.mxu0 0.0
  %2460 = vmatpush.msra.mxu0 0.0
  %2461 = vmatpush.msra.mxu0 0.0
  %2462 = vmatpush.msra.mxu0 0.0
  %2463 = vmatpush.msra.mxu0 0.0
  %2464 = vmatpush.msra.mxu0 %v2433
  %2465 = vmatpush.msra.mxu0 %v2432
  %2466 = vmatpush.msra.mxu0 %v2431
  %2467 = vmatpush.msra.mxu0 %v2430
  %2468 = vmatpush.msra.mxu0 %v2429
  %2469 = vmatpush.msra.mxu0 %v2428
  %2470 = vmatpush.msra.mxu0 %v2427
  %2471 = vmatpush.msra.mxu0 %v2426
  %2472 = vmatmul.f32.gmra.mxu0 %v2451
  %v2473 = vpop.f32.mrf.mxu0
  %v2474 = vadd.f32 %v2434, %v2473
  %2475 = vmatmul.f32.gmra.mxu0 %v2454
  %v2476 = vpop.f32.mrf.mxu0
  %v2477 = vadd.f32 %v2435, %v2476
  %2478 = vdwg.mxu0
  %vm2479 = vcmp.lt.s32.totalorder %v203, 8
  %vm2480 = vcmp.lt.s32.totalorder %v204, 8
  %vm2481 = vmand %vm205, %vm2479
  %vm2482 = vmand %vm206, %vm2480
  %vm2483 = vmand %vm2481, %vm186
  %vm2484 = vmand %vm2482, %vm186
  %vm2485 = vcmp.lt.s32.totalorder %v185, 8
  %vm2486 = vmand %vm2483, %vm2485
  %vm2487 = vmand %vm2484, %vm2485
  %vm2488 = vcmp.ge.s32.totalorder %v203, 8
  %vm2489 = vcmp.ge.s32.totalorder %v204, 8
  %vm2490 = vcmp.lt.s32.totalorder %v203, 16
  %vm2491 = vcmp.lt.s32.totalorder %v204, 16
  %vm2492 = vmand %vm2488, %vm2490
  %vm2493 = vmand %vm2489, %vm2491
  %vm2494 = vcmp.ge.s32.totalorder %v185, 8
  %vm2495 = vmand %vm2492, %vm2494
  %vm2496 = vmand %vm2493, %vm2494
  %vm2497 = vmand %vm2495, %vm187
  %vm2498 = vmand %vm2496, %vm187
  %vm2499 = vmor %vm2486, %vm2497
  %vm2500 = vmor %vm2487, %vm2498
  %vm2501 = vcmp.le.s32.totalorder %v185, %v203
  %vm2502 = vcmp.le.s32.totalorder %v185, %v204
  %vm2503 = vmand %vm2499, %vm2501
  %vm2504 = vmand %vm2500, %vm2502
  %v2505 = vsel %vm2503, 0.0, -1e+09
  %v2506 = vsel %vm2504, 0.0, -1e+09
  %v2507 = vld [vmem:[%s9] sm:$0x1]
  %v2508 = vld [vmem:[%s9 + $0x1] sm:$0x1]
  %v2509 = vld [vmem:[%s9 + $0x2] sm:$0x1]
  %v2510 = vld [vmem:[%s9 + $0x3] sm:$0x1]
  %v2511 = vld [vmem:[%s9 + $0x4] sm:$0x1]
  %v2512 = vld [vmem:[%s9 + $0x5] sm:$0x1]
  %v2513 = vld [vmem:[%s9 + $0x6] sm:$0x1]
  %v2514 = vld [vmem:[%s9 + $0x7] sm:$0x1]
  %v2515 = vld [vmem:[%s9 + $0x8] sm:$0x1]
  %vm2516 = vcmask 261120
  %v2517 = vsel %vm2516, %v2474, 0.0
  %2518 = vadd.xlane.f32.xlu0 %v2517
  %v2519 = vpop.xlane.xlu0 %2518
  %v2520 = vsel %vm2516, %v2477, 0.0
  %2521 = vadd.xlane.f32.xlu0 %v2520
  %v2522 = vpop.xlane.xlu0 %2521
  %v2523 = vrcp.pop 32.0
  %v2524 = vmul.f32 32.0, %v2523
  %v2525 = vsub.f32 1.0, %v2524
  %v2526 = vmul.f32 %v2523, %v2525
  %v2527 = vadd.f32 %v2523, %v2526
  %vm2528 = vweird.f32 %v2523
  %v2529 = vsel %vm2528, %v2523, %v2527
  %v2530 = vmul.f32 %v2519, %v2529
  %v2531 = vmul.f32 %v2522, %v2529
  %v2532 = vsub.f32 %v2474, %v2530
  %v2533 = vsub.f32 %v2477, %v2531
  %v2534 = vmul.f32 %v2532, %v2532
  %v2535 = vmul.f32 %v2533, %v2533
  %v2536 = vsel %vm2516, %v2534, 0.0
  %2537 = vadd.xlane.f32.xlu0 %v2536
  %v2538 = vpop.xlane.xlu0 %2537
  %v2539 = vsel %vm2516, %v2535, 0.0
  %2540 = vadd.xlane.f32.xlu0 %v2539
  %v2541 = vpop.xlane.xlu0 %2540
  %v2542 = vmul.f32 %v2538, %v2529
  %v2543 = vmul.f32 %v2541, %v2529
  %v2544 = vadd.f32 %v2542, 1e-05
  %v2545 = vadd.f32 %v2543, 1e-05
  %v2546 = vrsqrt.pop %v2544
  %v2547 = vmul.f32 %v2546, %v2544
  %v2548 = vmul.f32 %v2547, %v2546
  %v2549 = vmul.f32 0.5, %v2548
  %v2550 = vsub.f32 1.5, %v2549
  %v2551 = vmul.f32 %v2546, %v2550
  %vm2552 = vweird.f32 %v2544
  %vm2553 = vweird.f32 %v2546
  %vm2554 = vmor %vm2552, %vm2553
  %v2555 = vsel %vm2554, %v2546, %v2551
  %v2556 = vrsqrt.pop %v2545
  %v2557 = vmul.f32 %v2556, %v2545
  %v2558 = vmul.f32 %v2557, %v2556
  %v2559 = vmul.f32 0.5, %v2558
  %v2560 = vsub.f32 1.5, %v2559
  %v2561 = vmul.f32 %v2556, %v2560
  %vm2562 = vweird.f32 %v2545
  %vm2563 = vweird.f32 %v2556
  %vm2564 = vmor %vm2562, %vm2563
  %v2565 = vsel %vm2564, %v2556, %v2561
  %v2566 = vmul.f32 %v2532, %v2555
  %v2567 = vmul.f32 %v2533, %v2565
  %v2568 = vperm.slane %v2507, 0
  %v2569 = vmul.f32 %v2566, %v2568
  %v2570 = vmul.f32 %v2567, %v2568
  %v2571 = vperm.slane %v2508, 0
  %v2572 = vadd.f32 %v2569, %v2571
  %v2573 = vadd.f32 %v2570, %v2571
  %v2574 = vld [vmem:[%s7] sm:$0xff]
  %v2575 = vld [vmem:[%s7 + $0x8] sm:$0xff]
  %v2576 = vld [vmem:[%s7 + $0x10] sm:$0xff]
  %v2577 = vld [vmem:[%s7 + $0x18] sm:$0xff]
  %v2578 = vperm.slane %v2509, 0
  %v2580 = vsel %vm2516, %v2572, 0
  %v2583 = vsel %vm2516, %v2573, 0
  %2585 = vmatpush.msra.mxu0 0.0
  %2586 = vmatpush.msra.mxu0 0.0
  %2587 = vmatpush.msra.mxu0 0.0
  %2588 = vmatpush.msra.mxu0 0.0
  %2589 = vmatpush.msra.mxu0 0.0
  %2590 = vmatpush.msra.mxu0 0.0
  %2591 = vmatpush.msra.mxu0 0.0
  %2592 = vmatpush.msra.mxu0 0.0
  %2593 = vmatpush.msra.mxu0 0.0
  %2594 = vmatpush.msra.mxu0 0.0
  %2595 = vmatpush.msra.mxu0 0.0
  %2596 = vmatpush.msra.mxu0 0.0
  %2597 = vmatpush.msra.mxu0 %v2577
  %2598 = vmatpush.msra.mxu0 %v2576
  %2599 = vmatpush.msra.mxu0 %v2575
  %2600 = vmatpush.msra.mxu0 %v2574
  %2601 = vmatmul.f32.gmra.mxu0 %v2580
  %v2602 = vpop.f32.mrf.mxu0
  %v2603 = vadd.f32 %v2578, %v2602
  %2604 = vmatmul.f32.gmra.mxu0 %v2583
  %v2605 = vpop.f32.mrf.mxu0
  %v2606 = vadd.f32 %v2578, %v2605
  %2607 = vdwg.mxu0
  %v2608 = vmul.f32 %v2603, 0.25
  %v2609 = vmul.f32 %v2606, 0.25
  %s2610 = scalar_lea.vmem %s7, 32
  %v2611 = vld [vmem:[%s2610] sm:$0xff]
  %v2612 = vld [vmem:[%s2610 + $0x8] sm:$0xff]
  %v2613 = vld [vmem:[%s2610 + $0x10] sm:$0xff]
  %v2614 = vld [vmem:[%s2610 + $0x18] sm:$0xff]
  %v2615 = vperm.slane %v2510, 0
  %2616 = vmatpush.msra.mxu0 0.0
  %2617 = vmatpush.msra.mxu0 0.0
  %2618 = vmatpush.msra.mxu0 0.0
  %2619 = vmatpush.msra.mxu0 0.0
  %2620 = vmatpush.msra.mxu0 0.0
  %2621 = vmatpush.msra.mxu0 0.0
  %2622 = vmatpush.msra.mxu0 0.0
  %2623 = vmatpush.msra.mxu0 0.0
  %2624 = vmatpush.msra.mxu0 0.0
  %2625 = vmatpush.msra.mxu0 0.0
  %2626 = vmatpush.msra.mxu0 0.0
  %2627 = vmatpush.msra.mxu0 0.0
  %2628 = vmatpush.msra.mxu0 %v2614
  %2629 = vmatpush.msra.mxu0 %v2613
  %2630 = vmatpush.msra.mxu0 %v2612
  %2631 = vmatpush.msra.mxu0 %v2611
  %2632 = vmatmul.f32.gmra.mxu0 %v2580
  %v2633 = vpop.f32.mrf.mxu0
  %v2634 = vadd.f32 %v2615, %v2633
  %2635 = vmatmul.f32.gmra.mxu0 %v2583
  %v2636 = vpop.f32.mrf.mxu0
  %v2637 = vadd.f32 %v2615, %v2636
  %2638 = vdwg.mxu0
  %s2639 = scalar_lea.vmem %s7, 64
  %v2640 = vld [vmem:[%s2639] sm:$0xff]
  %v2641 = vld [vmem:[%s2639 + $0x8] sm:$0xff]
  %v2642 = vld [vmem:[%s2639 + $0x10] sm:$0xff]
  %v2643 = vld [vmem:[%s2639 + $0x18] sm:$0xff]
  %v2644 = vperm.slane %v2511, 0
  %2645 = vmatpush.msra.mxu0 0.0
  %2646 = vmatpush.msra.mxu0 0.0
  %2647 = vmatpush.msra.mxu0 0.0
  %2648 = vmatpush.msra.mxu0 0.0
  %2649 = vmatpush.msra.mxu0 0.0
  %2650 = vmatpush.msra.mxu0 0.0
  %2651 = vmatpush.msra.mxu0 0.0
  %2652 = vmatpush.msra.mxu0 0.0
  %2653 = vmatpush.msra.mxu0 0.0
  %2654 = vmatpush.msra.mxu0 0.0
  %2655 = vmatpush.msra.mxu0 0.0
  %2656 = vmatpush.msra.mxu0 0.0
  %2657 = vmatpush.msra.mxu0 %v2643
  %2658 = vmatpush.msra.mxu0 %v2642
  %2659 = vmatpush.msra.mxu0 %v2641
  %2660 = vmatpush.msra.mxu0 %v2640
  %2661 = vmatmul.f32.gmra.mxu0 %v2580
  %v2662 = vpop.f32.mrf.mxu0
  %v2663 = vadd.f32 %v2644, %v2662
  %2664 = vmatmul.f32.gmra.mxu0 %v2583
  %v2665 = vpop.f32.mrf.mxu0
  %v2666 = vadd.f32 %v2644, %v2665
  %2667 = vdwg.mxu0
  %v2668 = vmul.f32 %v2608, %v189
  %v2669 = vmul.f32 %v2609, %v189
  %v2671 = vsel %vm2516, %v2668, 0
  %v2674 = vsel %vm2516, %v2669, 0
  %v2677 = vsel %vm2516, %v2634, 0
  %v2680 = vsel %vm2516, %v2637, 0
  %2682 = vmatpush.xpose.msra.mxu0 0.0
  %2683 = vmatpush.xpose.msra.mxu0 0.0
  %2684 = vmatpush.xpose.msra.mxu0 0.0
  %2685 = vmatpush.xpose.msra.mxu0 0.0
  %2686 = vmatpush.xpose.msra.mxu0 0.0
  %2687 = vmatpush.xpose.msra.mxu0 0.0
  %2688 = vmatpush.xpose.msra.mxu0 0.0
  %2689 = vmatpush.xpose.msra.mxu0 0.0
  %2690 = vmatpush.xpose.msra.mxu0 0.0
  %2691 = vmatpush.xpose.msra.mxu0 0.0
  %2692 = vmatpush.xpose.msra.mxu0 0.0
  %2693 = vmatpush.xpose.msra.mxu0 0.0
  %2694 = vmatpush.xpose.msra.mxu0 0.0
  %2695 = vmatpush.xpose.msra.mxu0 0.0
  %2696 = vmatpush.xpose.msra.mxu0 %v2680
  %2697 = vmatpush.xpose.msra.mxu0 %v2677
  %2698 = vmatmul.f32.gmra.mxu0 %v2671
  %v2699 = vpop.f32.mrf.mxu0
  %v2700 = vadd.f32 %v2505, %v2699
  %2701 = vmatmul.f32.gmra.mxu0 %v2674
  %v2702 = vpop.f32.mrf.mxu0
  %v2703 = vadd.f32 %v2506, %v2702
  %2704 = vdwg.mxu0
  %vm2705 = vcmask 130048
  %v2706 = vsel %vm2705, %v2700, -inf
  %2707 = vmax.xlane.f32.xlu0 %v2706
  %v2708 = vpop.xlane.xlu0 %2707
  %v2709 = vsel %vm2705, %v2703, -inf
  %2710 = vmax.xlane.f32.xlu0 %v2709
  %v2711 = vpop.xlane.xlu0 %2710
  %v2712 = vsub.f32 %v2700, %v2708
  %v2713 = vsub.f32 %v2703, %v2711
  %v2714 = vmul.f32 %v2712, 1.442695
  %v2715 = vpow.pop %v2714
  %v2716 = vmul.f32 %v2713, 1.442695
  %v2717 = vpow.pop %v2716
  %v2718 = vsel %vm2705, %v2715, 0.0
  %2719 = vadd.xlane.f32.xlu0 %v2718
  %v2720 = vpop.xlane.xlu0 %2719
  %v2721 = vsel %vm2705, %v2717, 0.0
  %2722 = vadd.xlane.f32.xlu0 %v2721
  %v2723 = vpop.xlane.xlu0 %2722
  %v2724 = vrcp.pop %v2720
  %v2725 = vmul.f32 %v2720, %v2724
  %v2726 = vsub.f32 1.0, %v2725
  %v2727 = vmul.f32 %v2724, %v2726
  %v2728 = vadd.f32 %v2724, %v2727
  %vm2729 = vweird.f32 %v2720
  %vm2730 = vweird.f32 %v2724
  %vm2731 = vmor %vm2729, %vm2730
  %v2732 = vsel %vm2731, %v2724, %v2728
  %v2733 = vand.u32 2147483647, %v2720
  %vm2734 = vcmp.eq.f32.partialorder %v2733, 8.507059e+37
  %v2735 = vand.u32 %v2720, 2147483648
  %v2736 = vor.u32 1.1754944e-38, %v2735
  %v2737 = vsel %vm2734, %v2736, %v2732
  %v2738 = vmul.f32 %v2715, %v2737
  %v2739 = vrcp.pop %v2723
  %v2740 = vmul.f32 %v2723, %v2739
  %v2741 = vsub.f32 1.0, %v2740
  %v2742 = vmul.f32 %v2739, %v2741
  %v2743 = vadd.f32 %v2739, %v2742
  %vm2744 = vweird.f32 %v2723
  %vm2745 = vweird.f32 %v2739
  %vm2746 = vmor %vm2744, %vm2745
  %v2747 = vsel %vm2746, %v2739, %v2743
  %v2748 = vand.u32 2147483647, %v2723
  %vm2749 = vcmp.eq.f32.partialorder %v2748, 8.507059e+37
  %v2750 = vand.u32 %v2723, 2147483648
  %v2751 = vor.u32 1.1754944e-38, %v2750
  %v2752 = vsel %vm2749, %v2751, %v2747
  %v2753 = vmul.f32 %v2717, %v2752
  %v2754 = vmul.f32 %v2663, %v189
  %v2755 = vmul.f32 %v2666, %v189
  %v2756 = vmul.f32 %v2608, %v193
  %v2757 = vmul.f32 %v2609, %v193
  %v2759 = vsel %vm2516, %v2756, 0
  %v2762 = vsel %vm2516, %v2757, 0
  %2764 = vmatpush.xpose.msra.mxu0 0.0
  %2765 = vmatpush.xpose.msra.mxu0 0.0
  %2766 = vmatpush.xpose.msra.mxu0 0.0
  %2767 = vmatpush.xpose.msra.mxu0 0.0
  %2768 = vmatpush.xpose.msra.mxu0 0.0
  %2769 = vmatpush.xpose.msra.mxu0 0.0
  %2770 = vmatpush.xpose.msra.mxu0 0.0
  %2771 = vmatpush.xpose.msra.mxu0 0.0
  %2772 = vmatpush.xpose.msra.mxu0 0.0
  %2773 = vmatpush.xpose.msra.mxu0 0.0
  %2774 = vmatpush.xpose.msra.mxu0 0.0
  %2775 = vmatpush.xpose.msra.mxu0 0.0
  %2776 = vmatpush.xpose.msra.mxu0 0.0
  %2777 = vmatpush.xpose.msra.mxu0 0.0
  %2778 = vmatpush.xpose.msra.mxu0 %v2680
  %2779 = vmatpush.xpose.msra.mxu0 %v2677
  %2780 = vmatmul.f32.gmra.mxu0 %v2759
  %v2781 = vpop.f32.mrf.mxu0
  %v2782 = vadd.f32 %v2505, %v2781
  %2783 = vmatmul.f32.gmra.mxu0 %v2762
  %v2784 = vpop.f32.mrf.mxu0
  %v2785 = vadd.f32 %v2506, %v2784
  %2786 = vdwg.mxu0
  %v2787 = vsel %vm2705, %v2782, -inf
  %2788 = vmax.xlane.f32.xlu0 %v2787
  %v2789 = vpop.xlane.xlu0 %2788
  %v2790 = vsel %vm2705, %v2785, -inf
  %2791 = vmax.xlane.f32.xlu0 %v2790
  %v2792 = vpop.xlane.xlu0 %2791
  %v2793 = vsub.f32 %v2782, %v2789
  %v2794 = vsub.f32 %v2785, %v2792
  %v2795 = vmul.f32 %v2793, 1.442695
  %v2796 = vpow.pop %v2795
  %v2797 = vmul.f32 %v2794, 1.442695
  %v2798 = vpow.pop %v2797
  %v2799 = vsel %vm2705, %v2796, 0.0
  %2800 = vadd.xlane.f32.xlu0 %v2799
  %v2801 = vpop.xlane.xlu0 %2800
  %v2802 = vsel %vm2705, %v2798, 0.0
  %2803 = vadd.xlane.f32.xlu0 %v2802
  %v2804 = vpop.xlane.xlu0 %2803
  %v2805 = vrcp.pop %v2801
  %v2806 = vmul.f32 %v2801, %v2805
  %v2807 = vsub.f32 1.0, %v2806
  %v2808 = vmul.f32 %v2805, %v2807
  %v2809 = vadd.f32 %v2805, %v2808
  %vm2810 = vweird.f32 %v2801
  %vm2811 = vweird.f32 %v2805
  %vm2812 = vmor %vm2810, %vm2811
  %v2813 = vsel %vm2812, %v2805, %v2809
  %v2814 = vand.u32 2147483647, %v2801
  %vm2815 = vcmp.eq.f32.partialorder %v2814, 8.507059e+37
  %v2816 = vand.u32 %v2801, 2147483648
  %v2817 = vor.u32 1.1754944e-38, %v2816
  %v2818 = vsel %vm2815, %v2817, %v2813
  %v2819 = vmul.f32 %v2796, %v2818
  %v2820 = vrcp.pop %v2804
  %v2821 = vmul.f32 %v2804, %v2820
  %v2822 = vsub.f32 1.0, %v2821
  %v2823 = vmul.f32 %v2820, %v2822
  %v2824 = vadd.f32 %v2820, %v2823
  %vm2825 = vweird.f32 %v2804
  %vm2826 = vweird.f32 %v2820
  %vm2827 = vmor %vm2825, %vm2826
  %v2828 = vsel %vm2827, %v2820, %v2824
  %v2829 = vand.u32 2147483647, %v2804
  %vm2830 = vcmp.eq.f32.partialorder %v2829, 8.507059e+37
  %v2831 = vand.u32 %v2804, 2147483648
  %v2832 = vor.u32 1.1754944e-38, %v2831
  %v2833 = vsel %vm2830, %v2832, %v2828
  %v2834 = vmul.f32 %v2798, %v2833
  %v2835 = vmul.f32 %v2663, %v193
  %v2836 = vmul.f32 %v2666, %v193
  %v2838 = vsel %vm2705, %v2819, 0
  %v2841 = vsel %vm2705, %v2834, 0
  %2843 = vmatpush.msra.mxu0 0.0
  %2844 = vmatpush.msra.mxu0 0.0
  %2845 = vmatpush.msra.mxu0 0.0
  %2846 = vmatpush.msra.mxu0 0.0
  %2847 = vmatpush.msra.mxu0 0.0
  %2848 = vmatpush.msra.mxu0 0.0
  %2849 = vmatpush.msra.mxu0 0.0
  %2850 = vmatpush.msra.mxu0 0.0
  %2851 = vmatpush.msra.mxu0 0.0
  %2852 = vmatpush.msra.mxu0 0.0
  %2853 = vmatpush.msra.mxu0 0.0
  %2854 = vmatpush.msra.mxu0 0.0
  %2855 = vmatpush.msra.mxu0 0.0
  %2856 = vmatpush.msra.mxu0 0.0
  %2857 = vmatpush.msra.mxu0 %v2836
  %2858 = vmatpush.msra.mxu0 %v2835
  %2859 = vmatmul.f32.gmra.mxu0 %v2838
  %v2860 = vpop.f32.mrf.mxu0
  %v2861 = vadd.f32 0.0, %v2860
  %2862 = vmatmul.f32.gmra.mxu0 %v2841
  %v2863 = vpop.f32.mrf.mxu0
  %v2864 = vadd.f32 0.0, %v2863
  %2865 = vdwg.mxu0
  %v2867 = vsel %vm2705, %v2738, 0
  %v2870 = vsel %vm2705, %v2753, 0
  %2872 = vmatpush.msra.mxu0 0.0
  %2873 = vmatpush.msra.mxu0 0.0
  %2874 = vmatpush.msra.mxu0 0.0
  %2875 = vmatpush.msra.mxu0 0.0
  %2876 = vmatpush.msra.mxu0 0.0
  %2877 = vmatpush.msra.mxu0 0.0
  %2878 = vmatpush.msra.mxu0 0.0
  %2879 = vmatpush.msra.mxu0 0.0
  %2880 = vmatpush.msra.mxu0 0.0
  %2881 = vmatpush.msra.mxu0 0.0
  %2882 = vmatpush.msra.mxu0 0.0
  %2883 = vmatpush.msra.mxu0 0.0
  %2884 = vmatpush.msra.mxu0 0.0
  %2885 = vmatpush.msra.mxu0 0.0
  %2886 = vmatpush.msra.mxu0 %v2755
  %2887 = vmatpush.msra.mxu0 %v2754
  %2888 = vmatmul.f32.gmra.mxu0 %v2867
  %v2889 = vpop.f32.mrf.mxu0
  %v2890 = vadd.f32 %v2861, %v2889
  %2891 = vmatmul.f32.gmra.mxu0 %v2870
  %v2892 = vpop.f32.mrf.mxu0
  %v2893 = vadd.f32 %v2864, %v2892
  %2894 = vdwg.mxu0
  %s2895 = scalar_lea.vmem %s7, 96
  %v2896 = vld [vmem:[%s2895] sm:$0xff]
  %v2897 = vld [vmem:[%s2895 + $0x8] sm:$0xff]
  %v2898 = vld [vmem:[%s2895 + $0x10] sm:$0xff]
  %v2899 = vld [vmem:[%s2895 + $0x18] sm:$0xff]
  %v2901 = vsel %vm2516, %v2890, 0
  %v2904 = vsel %vm2516, %v2893, 0
  %2906 = vmatpush.msra.mxu0 0.0
  %2907 = vmatpush.msra.mxu0 0.0
  %2908 = vmatpush.msra.mxu0 0.0
  %2909 = vmatpush.msra.mxu0 0.0
  %2910 = vmatpush.msra.mxu0 0.0
  %2911 = vmatpush.msra.mxu0 0.0
  %2912 = vmatpush.msra.mxu0 0.0
  %2913 = vmatpush.msra.mxu0 0.0
  %2914 = vmatpush.msra.mxu0 0.0
  %2915 = vmatpush.msra.mxu0 0.0
  %2916 = vmatpush.msra.mxu0 0.0
  %2917 = vmatpush.msra.mxu0 0.0
  %2918 = vmatpush.msra.mxu0 %v2899
  %2919 = vmatpush.msra.mxu0 %v2898
  %2920 = vmatpush.msra.mxu0 %v2897
  %2921 = vmatpush.msra.mxu0 %v2896
  %2922 = vmatmul.f32.gmra.mxu0 %v2901
  %v2923 = vpop.f32.mrf.mxu0
  %v2924 = vadd.f32 0.0, %v2923
  %2925 = vmatmul.f32.gmra.mxu0 %v2904
  %v2926 = vpop.f32.mrf.mxu0
  %v2927 = vadd.f32 0.0, %v2926
  %2928 = vdwg.mxu0
  %v2929 = vadd.f32 %v2474, %v2924
  %v2930 = vadd.f32 %v2477, %v2927
  %v2931 = vperm.slane %v2512, 0
  %v2932 = vadd.f32 %v2929, %v2931
  %v2933 = vadd.f32 %v2930, %v2931
  %v2934 = vsel %vm2516, %v2932, 0.0
  %2935 = vadd.xlane.f32.xlu0 %v2934
  %v2936 = vpop.xlane.xlu0 %2935
  %v2937 = vsel %vm2516, %v2933, 0.0
  %2938 = vadd.xlane.f32.xlu0 %v2937
  %v2939 = vpop.xlane.xlu0 %2938
  %v2940 = vmul.f32 %v2936, %v2529
  %v2941 = vmul.f32 %v2939, %v2529
  %v2942 = vsub.f32 %v2932, %v2940
  %v2943 = vsub.f32 %v2933, %v2941
  %v2944 = vmul.f32 %v2942, %v2942
  %v2945 = vmul.f32 %v2943, %v2943
  %v2946 = vsel %vm2516, %v2944, 0.0
  %2947 = vadd.xlane.f32.xlu0 %v2946
  %v2948 = vpop.xlane.xlu0 %2947
  %v2949 = vsel %vm2516, %v2945, 0.0
  %2950 = vadd.xlane.f32.xlu0 %v2949
  %v2951 = vpop.xlane.xlu0 %2950
  %v2952 = vmul.f32 %v2948, %v2529
  %v2953 = vmul.f32 %v2951, %v2529
  %v2954 = vadd.f32 %v2952, 1e-05
  %v2955 = vadd.f32 %v2953, 1e-05
  %v2956 = vrsqrt.pop %v2954
  %v2957 = vmul.f32 %v2956, %v2954
  %v2958 = vmul.f32 %v2957, %v2956
  %v2959 = vmul.f32 0.5, %v2958
  %v2960 = vsub.f32 1.5, %v2959
  %v2961 = vmul.f32 %v2956, %v2960
  %vm2962 = vweird.f32 %v2954
  %vm2963 = vweird.f32 %v2956
  %vm2964 = vmor %vm2962, %vm2963
  %v2965 = vsel %vm2964, %v2956, %v2961
  %v2966 = vrsqrt.pop %v2955
  %v2967 = vmul.f32 %v2966, %v2955
  %v2968 = vmul.f32 %v2967, %v2966
  %v2969 = vmul.f32 0.5, %v2968
  %v2970 = vsub.f32 1.5, %v2969
  %v2971 = vmul.f32 %v2966, %v2970
  %vm2972 = vweird.f32 %v2955
  %vm2973 = vweird.f32 %v2966
  %vm2974 = vmor %vm2972, %vm2973
  %v2975 = vsel %vm2974, %v2966, %v2971
  %v2976 = vmul.f32 %v2942, %v2965
  %v2977 = vmul.f32 %v2943, %v2975
  %v2978 = vperm.slane %v2513, 0
  %v2979 = vmul.f32 %v2976, %v2978
  %v2980 = vmul.f32 %v2977, %v2978
  %v2981 = vperm.slane %v2514, 0
  %v2982 = vadd.f32 %v2979, %v2981
  %v2983 = vadd.f32 %v2980, %v2981
  %v2984 = vld [vmem:[%s8] sm:$0xff]
  %v2985 = vld [vmem:[%s8 + $0x8] sm:$0xff]
  %v2986 = vld [vmem:[%s8 + $0x10] sm:$0xff]
  %v2987 = vld [vmem:[%s8 + $0x18] sm:$0xff]
  %v2988 = vld [vmem:[%s8 + $0x20] sm:$0xff]
  %v2989 = vld [vmem:[%s8 + $0x28] sm:$0xff]
  %v2990 = vld [vmem:[%s8 + $0x30] sm:$0xff]
  %v2991 = vld [vmem:[%s8 + $0x38] sm:$0xff]
  %v2992 = vld [vmem:[%s8 + $0x40] sm:$0xff]
  %v2993 = vld [vmem:[%s8 + $0x48] sm:$0xff]
  %v2994 = vld [vmem:[%s8 + $0x50] sm:$0xff]
  %v2995 = vld [vmem:[%s8 + $0x58] sm:$0xff]
  %v2996 = vld [vmem:[%s8 + $0x60] sm:$0xff]
  %v2997 = vld [vmem:[%s8 + $0x68] sm:$0xff]
  %v2998 = vld [vmem:[%s8 + $0x70] sm:$0xff]
  %v2999 = vld [vmem:[%s8 + $0x78] sm:$0xff]
  %v3000 = vld [vmem:[%s10] sm:$0x1]
  %v3002 = vperm.slane %v3000, 0
  %v3005 = vsel %vm2516, %v2982, 0
  %v3008 = vsel %vm2516, %v2983, 0
  %v3011 = vsel %vm2516, %v2984, 0
  %v3014 = vsel %vm2516, %v2985, 0
  %v3017 = vsel %vm2516, %v2986, 0
  %v3020 = vsel %vm2516, %v2987, 0
  %v3023 = vsel %vm2516, %v2988, 0
  %v3026 = vsel %vm2516, %v2989, 0
  %v3029 = vsel %vm2516, %v2990, 0
  %v3032 = vsel %vm2516, %v2991, 0
  %v3035 = vsel %vm2516, %v2992, 0
  %v3038 = vsel %vm2516, %v2993, 0
  %v3041 = vsel %vm2516, %v2994, 0
  %v3044 = vsel %vm2516, %v2995, 0
  %v3047 = vsel %vm2516, %v2996, 0
  %v3050 = vsel %vm2516, %v2997, 0
  %v3053 = vsel %vm2516, %v2998, 0
  %v3056 = vsel %vm2516, %v2999, 0
  %3058 = vmatpush.xpose.msra.mxu0 %v3056
  %3059 = vmatpush.xpose.msra.mxu0 %v3053
  %3060 = vmatpush.xpose.msra.mxu0 %v3050
  %3061 = vmatpush.xpose.msra.mxu0 %v3047
  %3062 = vmatpush.xpose.msra.mxu0 %v3044
  %3063 = vmatpush.xpose.msra.mxu0 %v3041
  %3064 = vmatpush.xpose.msra.mxu0 %v3038
  %3065 = vmatpush.xpose.msra.mxu0 %v3035
  %3066 = vmatpush.xpose.msra.mxu0 %v3032
  %3067 = vmatpush.xpose.msra.mxu0 %v3029
  %3068 = vmatpush.xpose.msra.mxu0 %v3026
  %3069 = vmatpush.xpose.msra.mxu0 %v3023
  %3070 = vmatpush.xpose.msra.mxu0 %v3020
  %3071 = vmatpush.xpose.msra.mxu0 %v3017
  %3072 = vmatpush.xpose.msra.mxu0 %v3014
  %3073 = vmatpush.xpose.msra.mxu0 %v3011
  %3074 = vmatmul.f32.gmra.mxu0 %v3005
  %v3075 = vpop.f32.mrf.mxu0
  %v3076 = vadd.f32 %v3002, %v3075
  %3077 = vmatmul.f32.gmra.mxu0 %v3008
  %v3078 = vpop.f32.mrf.mxu0
  %v3079 = vadd.f32 %v3002, %v3078
  %3080 = vdwg.mxu0
  %v3081 = vmul.f32 %v3076, 1.702
  %v3082 = vmul.f32 %v3079, 1.702
  %v3083 = vxor.u32 %v3081, 2147483648
  %v3084 = vxor.u32 %v3082, 2147483648
  %v3085 = vmul.f32 %v3083, 1.442695
  %v3086 = vpow.pop %v3085
  %v3087 = vmul.f32 %v3084, 1.442695
  %v3088 = vpow.pop %v3087
  %v3089 = vadd.f32 %v3086, 1.0
  %v3090 = vadd.f32 %v3088, 1.0
  %v3091 = vrcp.pop %v3089
  %v3092 = vmul.f32 %v3089, %v3091
  %v3093 = vsub.f32 1.0, %v3092
  %v3094 = vmul.f32 %v3091, %v3093
  %v3095 = vadd.f32 %v3091, %v3094
  %vm3096 = vweird.f32 %v3089
  %vm3097 = vweird.f32 %v3091
  %vm3098 = vmor %vm3096, %vm3097
  %v3099 = vsel %vm3098, %v3091, %v3095
  %v3100 = vand.u32 2147483647, %v3089
  %vm3101 = vcmp.eq.f32.partialorder %v3100, 8.507059e+37
  %v3102 = vand.u32 %v3089, 2147483648
  %v3103 = vor.u32 1.1754944e-38, %v3102
  %v3104 = vsel %vm3101, %v3103, %v3099
  %v3105 = vmul.f32 1.0, %v3104
  %v3106 = vrcp.pop %v3090
  %v3107 = vmul.f32 %v3090, %v3106
  %v3108 = vsub.f32 1.0, %v3107
  %v3109 = vmul.f32 %v3106, %v3108
  %v3110 = vadd.f32 %v3106, %v3109
  %vm3111 = vweird.f32 %v3090
  %vm3112 = vweird.f32 %v3106
  %vm3113 = vmor %vm3111, %vm3112
  %v3114 = vsel %vm3113, %v3106, %v3110
  %v3115 = vand.u32 2147483647, %v3090
  %vm3116 = vcmp.eq.f32.partialorder %v3115, 8.507059e+37
  %v3117 = vand.u32 %v3090, 2147483648
  %v3118 = vor.u32 1.1754944e-38, %v3117
  %v3119 = vsel %vm3116, %v3118, %v3114
  %v3120 = vmul.f32 1.0, %v3119
  %v3121 = vmul.f32 %v3076, %v3105
  %v3122 = vmul.f32 %v3079, %v3120
  %s3123 = scalar_lea.vmem %s8, 128
  %v3124 = vld [vmem:[%s3123] sm:$0xff]
  %v3125 = vld [vmem:[%s3123 + $0x8] sm:$0xff]
  %v3126 = vld [vmem:[%s3123 + $0x10] sm:$0xff]
  %v3127 = vld [vmem:[%s3123 + $0x18] sm:$0xff]
  %v3128 = vld [vmem:[%s3123 + $0x20] sm:$0xff]
  %v3129 = vld [vmem:[%s3123 + $0x28] sm:$0xff]
  %v3130 = vld [vmem:[%s3123 + $0x30] sm:$0xff]
  %v3131 = vld [vmem:[%s3123 + $0x38] sm:$0xff]
  %v3132 = vld [vmem:[%s3123 + $0x40] sm:$0xff]
  %v3133 = vld [vmem:[%s3123 + $0x48] sm:$0xff]
  %v3134 = vld [vmem:[%s3123 + $0x50] sm:$0xff]
  %v3135 = vld [vmem:[%s3123 + $0x58] sm:$0xff]
  %v3136 = vld [vmem:[%s3123 + $0x60] sm:$0xff]
  %v3137 = vld [vmem:[%s3123 + $0x68] sm:$0xff]
  %v3138 = vld [vmem:[%s3123 + $0x70] sm:$0xff]
  %v3139 = vld [vmem:[%s3123 + $0x78] sm:$0xff]
  %3140 = vmatpush.msra.mxu0 %v3139
  %3141 = vmatpush.msra.mxu0 %v3138
  %3142 = vmatpush.msra.mxu0 %v3137
  %3143 = vmatpush.msra.mxu0 %v3136
  %3144 = vmatpush.msra.mxu0 %v3135
  %3145 = vmatpush.msra.mxu0 %v3134
  %3146 = vmatpush.msra.mxu0 %v3133
  %3147 = vmatpush.msra.mxu0 %v3132
  %3148 = vmatpush.msra.mxu0 %v3131
  %3149 = vmatpush.msra.mxu0 %v3130
  %3150 = vmatpush.msra.mxu0 %v3129
  %3151 = vmatpush.msra.mxu0 %v3128
  %3152 = vmatpush.msra.mxu0 %v3127
  %3153 = vmatpush.msra.mxu0 %v3126
  %3154 = vmatpush.msra.mxu0 %v3125
  %3155 = vmatpush.msra.mxu0 %v3124
  %3156 = vmatmul.f32.gmra.mxu0 %v3121
  %v3157 = vpop.f32.mrf.mxu0
  %v3158 = vadd.f32 0.0, %v3157
  %3159 = vmatmul.f32.gmra.mxu0 %v3122
  %v3160 = vpop.f32.mrf.mxu0
  %v3161 = vadd.f32 0.0, %v3160
  %3162 = vdwg.mxu0
  %v3163 = vadd.f32 %v2932, %v3158
  %v3164 = vadd.f32 %v2933, %v3161
  %v3165 = vperm.slane %v2515, 0
  %v3166 = vadd.f32 %v3163, %v3165
  %v3167 = vadd.f32 %v3164, %v3165
  %s3168 = scalar_lea.vmem %s9, 16
  %v3169 = vld [vmem:[%s3168] sm:$0x1]
  %v3170 = vld [vmem:[%s3168 + $0x1] sm:$0x1]
  %v3171 = vld [vmem:[%s3168 + $0x2] sm:$0x1]
  %v3172 = vld [vmem:[%s3168 + $0x3] sm:$0x1]
  %v3173 = vld [vmem:[%s3168 + $0x4] sm:$0x1]
  %v3174 = vld [vmem:[%s3168 + $0x5] sm:$0x1]
  %v3175 = vld [vmem:[%s3168 + $0x6] sm:$0x1]
  %v3176 = vld [vmem:[%s3168 + $0x7] sm:$0x1]
  %v3177 = vld [vmem:[%s3168 + $0x8] sm:$0x1]
  %v3178 = vsel %vm2516, %v3166, 0.0
  %3179 = vadd.xlane.f32.xlu0 %v3178
  %v3180 = vpop.xlane.xlu0 %3179
  %v3181 = vsel %vm2516, %v3167, 0.0
  %3182 = vadd.xlane.f32.xlu0 %v3181
  %v3183 = vpop.xlane.xlu0 %3182
  %v3184 = vmul.f32 %v3180, %v2529
  %v3185 = vmul.f32 %v3183, %v2529
  %v3186 = vsub.f32 %v3166, %v3184
  %v3187 = vsub.f32 %v3167, %v3185
  %v3188 = vmul.f32 %v3186, %v3186
  %v3189 = vmul.f32 %v3187, %v3187
  %v3190 = vsel %vm2516, %v3188, 0.0
  %3191 = vadd.xlane.f32.xlu0 %v3190
  %v3192 = vpop.xlane.xlu0 %3191
  %v3193 = vsel %vm2516, %v3189, 0.0
  %3194 = vadd.xlane.f32.xlu0 %v3193
  %v3195 = vpop.xlane.xlu0 %3194
  %v3196 = vmul.f32 %v3192, %v2529
  %v3197 = vmul.f32 %v3195, %v2529
  %v3198 = vadd.f32 %v3196, 1e-05
  %v3199 = vadd.f32 %v3197, 1e-05
  %v3200 = vrsqrt.pop %v3198
  %v3201 = vmul.f32 %v3200, %v3198
  %v3202 = vmul.f32 %v3201, %v3200
  %v3203 = vmul.f32 0.5, %v3202
  %v3204 = vsub.f32 1.5, %v3203
  %v3205 = vmul.f32 %v3200, %v3204
  %vm3206 = vweird.f32 %v3198
  %vm3207 = vweird.f32 %v3200
  %vm3208 = vmor %vm3206, %vm3207
  %v3209 = vsel %vm3208, %v3200, %v3205
  %v3210 = vrsqrt.pop %v3199
  %v3211 = vmul.f32 %v3210, %v3199
  %v3212 = vmul.f32 %v3211, %v3210
  %v3213 = vmul.f32 0.5, %v3212
  %v3214 = vsub.f32 1.5, %v3213
  %v3215 = vmul.f32 %v3210, %v3214
  %vm3216 = vweird.f32 %v3199
  %vm3217 = vweird.f32 %v3210
  %vm3218 = vmor %vm3216, %vm3217
  %v3219 = vsel %vm3218, %v3210, %v3215
  %v3220 = vmul.f32 %v3186, %v3209
  %v3221 = vmul.f32 %v3187, %v3219
  %v3222 = vperm.slane %v3169, 0
  %v3223 = vmul.f32 %v3220, %v3222
  %v3224 = vmul.f32 %v3221, %v3222
  %v3225 = vperm.slane %v3170, 0
  %v3226 = vadd.f32 %v3223, %v3225
  %v3227 = vadd.f32 %v3224, %v3225
  %s3228 = scalar_lea.vmem %s7, 128
  %v3229 = vld [vmem:[%s3228] sm:$0xff]
  %v3230 = vld [vmem:[%s3228 + $0x8] sm:$0xff]
  %v3231 = vld [vmem:[%s3228 + $0x10] sm:$0xff]
  %v3232 = vld [vmem:[%s3228 + $0x18] sm:$0xff]
  %v3233 = vperm.slane %v3171, 0
  %v3235 = vsel %vm2516, %v3226, 0
  %v3238 = vsel %vm2516, %v3227, 0
  %3240 = vmatpush.msra.mxu0 0.0
  %3241 = vmatpush.msra.mxu0 0.0
  %3242 = vmatpush.msra.mxu0 0.0
  %3243 = vmatpush.msra.mxu0 0.0
  %3244 = vmatpush.msra.mxu0 0.0
  %3245 = vmatpush.msra.mxu0 0.0
  %3246 = vmatpush.msra.mxu0 0.0
  %3247 = vmatpush.msra.mxu0 0.0
  %3248 = vmatpush.msra.mxu0 0.0
  %3249 = vmatpush.msra.mxu0 0.0
  %3250 = vmatpush.msra.mxu0 0.0
  %3251 = vmatpush.msra.mxu0 0.0
  %3252 = vmatpush.msra.mxu0 %v3232
  %3253 = vmatpush.msra.mxu0 %v3231
  %3254 = vmatpush.msra.mxu0 %v3230
  %3255 = vmatpush.msra.mxu0 %v3229
  %3256 = vmatmul.f32.gmra.mxu0 %v3235
  %v3257 = vpop.f32.mrf.mxu0
  %v3258 = vadd.f32 %v3233, %v3257
  %3259 = vmatmul.f32.gmra.mxu0 %v3238
  %v3260 = vpop.f32.mrf.mxu0
  %v3261 = vadd.f32 %v3233, %v3260
  %3262 = vdwg.mxu0
  %v3263 = vmul.f32 %v3258, 0.25
  %v3264 = vmul.f32 %v3261, 0.25
  %s3265 = scalar_lea.vmem %s7, 160
  %v3266 = vld [vmem:[%s3265] sm:$0xff]
  %v3267 = vld [vmem:[%s3265 + $0x8] sm:$0xff]
  %v3268 = vld [vmem:[%s3265 + $0x10] sm:$0xff]
  %v3269 = vld [vmem:[%s3265 + $0x18] sm:$0xff]
  %v3270 = vperm.slane %v3172, 0
  %3271 = vmatpush.msra.mxu0 0.0
  %3272 = vmatpush.msra.mxu0 0.0
  %3273 = vmatpush.msra.mxu0 0.0
  %3274 = vmatpush.msra.mxu0 0.0
  %3275 = vmatpush.msra.mxu0 0.0
  %3276 = vmatpush.msra.mxu0 0.0
  %3277 = vmatpush.msra.mxu0 0.0
  %3278 = vmatpush.msra.mxu0 0.0
  %3279 = vmatpush.msra.mxu0 0.0
  %3280 = vmatpush.msra.mxu0 0.0
  %3281 = vmatpush.msra.mxu0 0.0
  %3282 = vmatpush.msra.mxu0 0.0
  %3283 = vmatpush.msra.mxu0 %v3269
  %3284 = vmatpush.msra.mxu0 %v3268
  %3285 = vmatpush.msra.mxu0 %v3267
  %3286 = vmatpush.msra.mxu0 %v3266
  %3287 = vmatmul.f32.gmra.mxu0 %v3235
  %v3288 = vpop.f32.mrf.mxu0
  %v3289 = vadd.f32 %v3270, %v3288
  %3290 = vmatmul.f32.gmra.mxu0 %v3238
  %v3291 = vpop.f32.mrf.mxu0
  %v3292 = vadd.f32 %v3270, %v3291
  %3293 = vdwg.mxu0
  %s3294 = scalar_lea.vmem %s7, 192
  %v3295 = vld [vmem:[%s3294] sm:$0xff]
  %v3296 = vld [vmem:[%s3294 + $0x8] sm:$0xff]
  %v3297 = vld [vmem:[%s3294 + $0x10] sm:$0xff]
  %v3298 = vld [vmem:[%s3294 + $0x18] sm:$0xff]
  %v3299 = vperm.slane %v3173, 0
  %3300 = vmatpush.msra.mxu0 0.0
  %3301 = vmatpush.msra.mxu0 0.0
  %3302 = vmatpush.msra.mxu0 0.0
  %3303 = vmatpush.msra.mxu0 0.0
  %3304 = vmatpush.msra.mxu0 0.0
  %3305 = vmatpush.msra.mxu0 0.0
  %3306 = vmatpush.msra.mxu0 0.0
  %3307 = vmatpush.msra.mxu0 0.0
  %3308 = vmatpush.msra.mxu0 0.0
  %3309 = vmatpush.msra.mxu0 0.0
  %3310 = vmatpush.msra.mxu0 0.0
  %3311 = vmatpush.msra.mxu0 0.0
  %3312 = vmatpush.msra.mxu0 %v3298
  %3313 = vmatpush.msra.mxu0 %v3297
  %3314 = vmatpush.msra.mxu0 %v3296
  %3315 = vmatpush.msra.mxu0 %v3295
  %3316 = vmatmul.f32.gmra.mxu0 %v3235
  %v3317 = vpop.f32.mrf.mxu0
  %v3318 = vadd.f32 %v3299, %v3317
  %3319 = vmatmul.f32.gmra.mxu0 %v3238
  %v3320 = vpop.f32.mrf.mxu0
  %v3321 = vadd.f32 %v3299, %v3320
  %3322 = vdwg.mxu0
  %v3323 = vmul.f32 %v3263, %v189
  %v3324 = vmul.f32 %v3264, %v189
  %v3326 = vsel %vm2516, %v3323, 0
  %v3329 = vsel %vm2516, %v3324, 0
  %v3332 = vsel %vm2516, %v3289, 0
  %v3335 = vsel %vm2516, %v3292, 0
  %3337 = vmatpush.xpose.msra.mxu0 0.0
  %3338 = vmatpush.xpose.msra.mxu0 0.0
  %3339 = vmatpush.xpose.msra.mxu0 0.0
  %3340 = vmatpush.xpose.msra.mxu0 0.0
  %3341 = vmatpush.xpose.msra.mxu0 0.0
  %3342 = vmatpush.xpose.msra.mxu0 0.0
  %3343 = vmatpush.xpose.msra.mxu0 0.0
  %3344 = vmatpush.xpose.msra.mxu0 0.0
  %3345 = vmatpush.xpose.msra.mxu0 0.0
  %3346 = vmatpush.xpose.msra.mxu0 0.0
  %3347 = vmatpush.xpose.msra.mxu0 0.0
  %3348 = vmatpush.xpose.msra.mxu0 0.0
  %3349 = vmatpush.xpose.msra.mxu0 0.0
  %3350 = vmatpush.xpose.msra.mxu0 0.0
  %3351 = vmatpush.xpose.msra.mxu0 %v3335
  %3352 = vmatpush.xpose.msra.mxu0 %v3332
  %3353 = vmatmul.f32.gmra.mxu0 %v3326
  %v3354 = vpop.f32.mrf.mxu0
  %v3355 = vadd.f32 %v2505, %v3354
  %3356 = vmatmul.f32.gmra.mxu0 %v3329
  %v3357 = vpop.f32.mrf.mxu0
  %v3358 = vadd.f32 %v2506, %v3357
  %3359 = vdwg.mxu0
  %v3360 = vsel %vm2705, %v3355, -inf
  %3361 = vmax.xlane.f32.xlu0 %v3360
  %v3362 = vpop.xlane.xlu0 %3361
  %v3363 = vsel %vm2705, %v3358, -inf
  %3364 = vmax.xlane.f32.xlu0 %v3363
  %v3365 = vpop.xlane.xlu0 %3364
  %v3366 = vsub.f32 %v3355, %v3362
  %v3367 = vsub.f32 %v3358, %v3365
  %v3368 = vmul.f32 %v3366, 1.442695
  %v3369 = vpow.pop %v3368
  %v3370 = vmul.f32 %v3367, 1.442695
  %v3371 = vpow.pop %v3370
  %v3372 = vsel %vm2705, %v3369, 0.0
  %3373 = vadd.xlane.f32.xlu0 %v3372
  %v3374 = vpop.xlane.xlu0 %3373
  %v3375 = vsel %vm2705, %v3371, 0.0
  %3376 = vadd.xlane.f32.xlu0 %v3375
  %v3377 = vpop.xlane.xlu0 %3376
  %v3378 = vrcp.pop %v3374
  %v3379 = vmul.f32 %v3374, %v3378
  %v3380 = vsub.f32 1.0, %v3379
  %v3381 = vmul.f32 %v3378, %v3380
  %v3382 = vadd.f32 %v3378, %v3381
  %vm3383 = vweird.f32 %v3374
  %vm3384 = vweird.f32 %v3378
  %vm3385 = vmor %vm3383, %vm3384
  %v3386 = vsel %vm3385, %v3378, %v3382
  %v3387 = vand.u32 2147483647, %v3374
  %vm3388 = vcmp.eq.f32.partialorder %v3387, 8.507059e+37
  %v3389 = vand.u32 %v3374, 2147483648
  %v3390 = vor.u32 1.1754944e-38, %v3389
  %v3391 = vsel %vm3388, %v3390, %v3386
  %v3392 = vmul.f32 %v3369, %v3391
  %v3393 = vrcp.pop %v3377
  %v3394 = vmul.f32 %v3377, %v3393
  %v3395 = vsub.f32 1.0, %v3394
  %v3396 = vmul.f32 %v3393, %v3395
  %v3397 = vadd.f32 %v3393, %v3396
  %vm3398 = vweird.f32 %v3377
  %vm3399 = vweird.f32 %v3393
  %vm3400 = vmor %vm3398, %vm3399
  %v3401 = vsel %vm3400, %v3393, %v3397
  %v3402 = vand.u32 2147483647, %v3377
  %vm3403 = vcmp.eq.f32.partialorder %v3402, 8.507059e+37
  %v3404 = vand.u32 %v3377, 2147483648
  %v3405 = vor.u32 1.1754944e-38, %v3404
  %v3406 = vsel %vm3403, %v3405, %v3401
  %v3407 = vmul.f32 %v3371, %v3406
  %v3408 = vmul.f32 %v3318, %v189
  %v3409 = vmul.f32 %v3321, %v189
  %v3410 = vmul.f32 %v3263, %v193
  %v3411 = vmul.f32 %v3264, %v193
  %v3413 = vsel %vm2516, %v3410, 0
  %v3416 = vsel %vm2516, %v3411, 0
  %3418 = vmatpush.xpose.msra.mxu0 0.0
  %3419 = vmatpush.xpose.msra.mxu0 0.0
  %3420 = vmatpush.xpose.msra.mxu0 0.0
  %3421 = vmatpush.xpose.msra.mxu0 0.0
  %3422 = vmatpush.xpose.msra.mxu0 0.0
  %3423 = vmatpush.xpose.msra.mxu0 0.0
  %3424 = vmatpush.xpose.msra.mxu0 0.0
  %3425 = vmatpush.xpose.msra.mxu0 0.0
  %3426 = vmatpush.xpose.msra.mxu0 0.0
  %3427 = vmatpush.xpose.msra.mxu0 0.0
  %3428 = vmatpush.xpose.msra.mxu0 0.0
  %3429 = vmatpush.xpose.msra.mxu0 0.0
  %3430 = vmatpush.xpose.msra.mxu0 0.0
  %3431 = vmatpush.xpose.msra.mxu0 0.0
  %3432 = vmatpush.xpose.msra.mxu0 %v3335
  %3433 = vmatpush.xpose.msra.mxu0 %v3332
  %3434 = vmatmul.f32.gmra.mxu0 %v3413
  %v3435 = vpop.f32.mrf.mxu0
  %v3436 = vadd.f32 %v2505, %v3435
  %3437 = vmatmul.f32.gmra.mxu0 %v3416
  %v3438 = vpop.f32.mrf.mxu0
  %v3439 = vadd.f32 %v2506, %v3438
  %3440 = vdwg.mxu0
  %v3441 = vsel %vm2705, %v3436, -inf
  %3442 = vmax.xlane.f32.xlu0 %v3441
  %v3443 = vpop.xlane.xlu0 %3442
  %v3444 = vsel %vm2705, %v3439, -inf
  %3445 = vmax.xlane.f32.xlu0 %v3444
  %v3446 = vpop.xlane.xlu0 %3445
  %v3447 = vsub.f32 %v3436, %v3443
  %v3448 = vsub.f32 %v3439, %v3446
  %v3449 = vmul.f32 %v3447, 1.442695
  %v3450 = vpow.pop %v3449
  %v3451 = vmul.f32 %v3448, 1.442695
  %v3452 = vpow.pop %v3451
  %v3453 = vsel %vm2705, %v3450, 0.0
  %3454 = vadd.xlane.f32.xlu0 %v3453
  %v3455 = vpop.xlane.xlu0 %3454
  %v3456 = vsel %vm2705, %v3452, 0.0
  %3457 = vadd.xlane.f32.xlu0 %v3456
  %v3458 = vpop.xlane.xlu0 %3457
  %v3459 = vrcp.pop %v3455
  %v3460 = vmul.f32 %v3455, %v3459
  %v3461 = vsub.f32 1.0, %v3460
  %v3462 = vmul.f32 %v3459, %v3461
  %v3463 = vadd.f32 %v3459, %v3462
  %vm3464 = vweird.f32 %v3455
  %vm3465 = vweird.f32 %v3459
  %vm3466 = vmor %vm3464, %vm3465
  %v3467 = vsel %vm3466, %v3459, %v3463
  %v3468 = vand.u32 2147483647, %v3455
  %vm3469 = vcmp.eq.f32.partialorder %v3468, 8.507059e+37
  %v3470 = vand.u32 %v3455, 2147483648
  %v3471 = vor.u32 1.1754944e-38, %v3470
  %v3472 = vsel %vm3469, %v3471, %v3467
  %v3473 = vmul.f32 %v3450, %v3472
  %v3474 = vrcp.pop %v3458
  %v3475 = vmul.f32 %v3458, %v3474
  %v3476 = vsub.f32 1.0, %v3475
  %v3477 = vmul.f32 %v3474, %v3476
  %v3478 = vadd.f32 %v3474, %v3477
  %vm3479 = vweird.f32 %v3458
  %vm3480 = vweird.f32 %v3474
  %vm3481 = vmor %vm3479, %vm3480
  %v3482 = vsel %vm3481, %v3474, %v3478
  %v3483 = vand.u32 2147483647, %v3458
  %vm3484 = vcmp.eq.f32.partialorder %v3483, 8.507059e+37
  %v3485 = vand.u32 %v3458, 2147483648
  %v3486 = vor.u32 1.1754944e-38, %v3485
  %v3487 = vsel %vm3484, %v3486, %v3482
  %v3488 = vmul.f32 %v3452, %v3487
  %v3489 = vmul.f32 %v3318, %v193
  %v3490 = vmul.f32 %v3321, %v193
  %v3492 = vsel %vm2705, %v3473, 0
  %v3495 = vsel %vm2705, %v3488, 0
  %3497 = vmatpush.msra.mxu0 0.0
  %3498 = vmatpush.msra.mxu0 0.0
  %3499 = vmatpush.msra.mxu0 0.0
  %3500 = vmatpush.msra.mxu0 0.0
  %3501 = vmatpush.msra.mxu0 0.0
  %3502 = vmatpush.msra.mxu0 0.0
  %3503 = vmatpush.msra.mxu0 0.0
  %3504 = vmatpush.msra.mxu0 0.0
  %3505 = vmatpush.msra.mxu0 0.0
  %3506 = vmatpush.msra.mxu0 0.0
  %3507 = vmatpush.msra.mxu0 0.0
  %3508 = vmatpush.msra.mxu0 0.0
  %3509 = vmatpush.msra.mxu0 0.0
  %3510 = vmatpush.msra.mxu0 0.0
  %3511 = vmatpush.msra.mxu0 %v3490
  %3512 = vmatpush.msra.mxu0 %v3489
  %3513 = vmatmul.f32.gmra.mxu0 %v3492
  %v3514 = vpop.f32.mrf.mxu0
  %v3515 = vadd.f32 0.0, %v3514
  %3516 = vmatmul.f32.gmra.mxu0 %v3495
  %v3517 = vpop.f32.mrf.mxu0
  %v3518 = vadd.f32 0.0, %v3517
  %3519 = vdwg.mxu0
  %v3521 = vsel %vm2705, %v3392, 0
  %v3524 = vsel %vm2705, %v3407, 0
  %3526 = vmatpush.msra.mxu0 0.0
  %3527 = vmatpush.msra.mxu0 0.0
  %3528 = vmatpush.msra.mxu0 0.0
  %3529 = vmatpush.msra.mxu0 0.0
  %3530 = vmatpush.msra.mxu0 0.0
  %3531 = vmatpush.msra.mxu0 0.0
  %3532 = vmatpush.msra.mxu0 0.0
  %3533 = vmatpush.msra.mxu0 0.0
  %3534 = vmatpush.msra.mxu0 0.0
  %3535 = vmatpush.msra.mxu0 0.0
  %3536 = vmatpush.msra.mxu0 0.0
  %3537 = vmatpush.msra.mxu0 0.0
  %3538 = vmatpush.msra.mxu0 0.0
  %3539 = vmatpush.msra.mxu0 0.0
  %3540 = vmatpush.msra.mxu0 %v3409
  %3541 = vmatpush.msra.mxu0 %v3408
  %3542 = vmatmul.f32.gmra.mxu0 %v3521
  %v3543 = vpop.f32.mrf.mxu0
  %v3544 = vadd.f32 %v3515, %v3543
  %3545 = vmatmul.f32.gmra.mxu0 %v3524
  %v3546 = vpop.f32.mrf.mxu0
  %v3547 = vadd.f32 %v3518, %v3546
  %3548 = vdwg.mxu0
  %s3549 = scalar_lea.vmem %s7, 224
  %v3550 = vld [vmem:[%s3549] sm:$0xff]
  %v3551 = vld [vmem:[%s3549 + $0x8] sm:$0xff]
  %v3552 = vld [vmem:[%s3549 + $0x10] sm:$0xff]
  %v3553 = vld [vmem:[%s3549 + $0x18] sm:$0xff]
  %v3555 = vsel %vm2516, %v3544, 0
  %v3558 = vsel %vm2516, %v3547, 0
  %3560 = vmatpush.msra.mxu0 0.0
  %3561 = vmatpush.msra.mxu0 0.0
  %3562 = vmatpush.msra.mxu0 0.0
  %3563 = vmatpush.msra.mxu0 0.0
  %3564 = vmatpush.msra.mxu0 0.0
  %3565 = vmatpush.msra.mxu0 0.0
  %3566 = vmatpush.msra.mxu0 0.0
  %3567 = vmatpush.msra.mxu0 0.0
  %3568 = vmatpush.msra.mxu0 0.0
  %3569 = vmatpush.msra.mxu0 0.0
  %3570 = vmatpush.msra.mxu0 0.0
  %3571 = vmatpush.msra.mxu0 0.0
  %3572 = vmatpush.msra.mxu0 %v3553
  %3573 = vmatpush.msra.mxu0 %v3552
  %3574 = vmatpush.msra.mxu0 %v3551
  %3575 = vmatpush.msra.mxu0 %v3550
  %3576 = vmatmul.f32.gmra.mxu0 %v3555
  %v3577 = vpop.f32.mrf.mxu0
  %v3578 = vadd.f32 0.0, %v3577
  %3579 = vmatmul.f32.gmra.mxu0 %v3558
  %v3580 = vpop.f32.mrf.mxu0
  %v3581 = vadd.f32 0.0, %v3580
  %3582 = vdwg.mxu0
  %v3583 = vadd.f32 %v3166, %v3578
  %v3584 = vadd.f32 %v3167, %v3581
  %v3585 = vperm.slane %v3174, 0
  %v3586 = vadd.f32 %v3583, %v3585
  %v3587 = vadd.f32 %v3584, %v3585
  %v3588 = vsel %vm2516, %v3586, 0.0
  %3589 = vadd.xlane.f32.xlu0 %v3588
  %v3590 = vpop.xlane.xlu0 %3589
  %v3591 = vsel %vm2516, %v3587, 0.0
  %3592 = vadd.xlane.f32.xlu0 %v3591
  %v3593 = vpop.xlane.xlu0 %3592
  %v3594 = vmul.f32 %v3590, %v2529
  %v3595 = vmul.f32 %v3593, %v2529
  %v3596 = vsub.f32 %v3586, %v3594
  %v3597 = vsub.f32 %v3587, %v3595
  %v3598 = vmul.f32 %v3596, %v3596
  %v3599 = vmul.f32 %v3597, %v3597
  %v3600 = vsel %vm2516, %v3598, 0.0
  %3601 = vadd.xlane.f32.xlu0 %v3600
  %v3602 = vpop.xlane.xlu0 %3601
  %v3603 = vsel %vm2516, %v3599, 0.0
  %3604 = vadd.xlane.f32.xlu0 %v3603
  %v3605 = vpop.xlane.xlu0 %3604
  %v3606 = vmul.f32 %v3602, %v2529
  %v3607 = vmul.f32 %v3605, %v2529
  %v3608 = vadd.f32 %v3606, 1e-05
  %v3609 = vadd.f32 %v3607, 1e-05
  %v3610 = vrsqrt.pop %v3608
  %v3611 = vmul.f32 %v3610, %v3608
  %v3612 = vmul.f32 %v3611, %v3610
  %v3613 = vmul.f32 0.5, %v3612
  %v3614 = vsub.f32 1.5, %v3613
  %v3615 = vmul.f32 %v3610, %v3614
  %vm3616 = vweird.f32 %v3608
  %vm3617 = vweird.f32 %v3610
  %vm3618 = vmor %vm3616, %vm3617
  %v3619 = vsel %vm3618, %v3610, %v3615
  %v3620 = vrsqrt.pop %v3609
  %v3621 = vmul.f32 %v3620, %v3609
  %v3622 = vmul.f32 %v3621, %v3620
  %v3623 = vmul.f32 0.5, %v3622
  %v3624 = vsub.f32 1.5, %v3623
  %v3625 = vmul.f32 %v3620, %v3624
  %vm3626 = vweird.f32 %v3609
  %vm3627 = vweird.f32 %v3620
  %vm3628 = vmor %vm3626, %vm3627
  %v3629 = vsel %vm3628, %v3620, %v3625
  %v3630 = vmul.f32 %v3596, %v3619
  %v3631 = vmul.f32 %v3597, %v3629
  %v3632 = vperm.slane %v3175, 0
  %v3633 = vmul.f32 %v3630, %v3632
  %v3634 = vmul.f32 %v3631, %v3632
  %v3635 = vperm.slane %v3176, 0
  %v3636 = vadd.f32 %v3633, %v3635
  %v3637 = vadd.f32 %v3634, %v3635
  %s3638 = scalar_lea.vmem %s8, 256
  %v3639 = vld [vmem:[%s3638] sm:$0xff]
  %v3640 = vld [vmem:[%s3638 + $0x8] sm:$0xff]
  %v3641 = vld [vmem:[%s3638 + $0x10] sm:$0xff]
  %v3642 = vld [vmem:[%s3638 + $0x18] sm:$0xff]
  %v3643 = vld [vmem:[%s3638 + $0x20] sm:$0xff]
  %v3644 = vld [vmem:[%s3638 + $0x28] sm:$0xff]
  %v3645 = vld [vmem:[%s3638 + $0x30] sm:$0xff]
  %v3646 = vld [vmem:[%s3638 + $0x38] sm:$0xff]
  %v3647 = vld [vmem:[%s3638 + $0x40] sm:$0xff]
  %v3648 = vld [vmem:[%s3638 + $0x48] sm:$0xff]
  %v3649 = vld [vmem:[%s3638 + $0x50] sm:$0xff]
  %v3650 = vld [vmem:[%s3638 + $0x58] sm:$0xff]
  %v3651 = vld [vmem:[%s3638 + $0x60] sm:$0xff]
  %v3652 = vld [vmem:[%s3638 + $0x68] sm:$0xff]
  %v3653 = vld [vmem:[%s3638 + $0x70] sm:$0xff]
  %v3654 = vld [vmem:[%s3638 + $0x78] sm:$0xff]
  %s3655 = scalar_lea.vmem %s10, 1
  %v3656 = vld [vmem:[%s3655] sm:$0x1]
  %v3658 = vperm.slane %v3656, 0
  %v3661 = vsel %vm2516, %v3636, 0
  %v3664 = vsel %vm2516, %v3637, 0
  %v3667 = vsel %vm2516, %v3639, 0
  %v3670 = vsel %vm2516, %v3640, 0
  %v3673 = vsel %vm2516, %v3641, 0
  %v3676 = vsel %vm2516, %v3642, 0
  %v3679 = vsel %vm2516, %v3643, 0
  %v3682 = vsel %vm2516, %v3644, 0
  %v3685 = vsel %vm2516, %v3645, 0
  %v3688 = vsel %vm2516, %v3646, 0
  %v3691 = vsel %vm2516, %v3647, 0
  %v3694 = vsel %vm2516, %v3648, 0
  %v3697 = vsel %vm2516, %v3649, 0
  %v3700 = vsel %vm2516, %v3650, 0
  %v3703 = vsel %vm2516, %v3651, 0
  %v3706 = vsel %vm2516, %v3652, 0
  %v3709 = vsel %vm2516, %v3653, 0
  %v3712 = vsel %vm2516, %v3654, 0
  %3714 = vmatpush.xpose.msra.mxu0 %v3712
  %3715 = vmatpush.xpose.msra.mxu0 %v3709
  %3716 = vmatpush.xpose.msra.mxu0 %v3706
  %3717 = vmatpush.xpose.msra.mxu0 %v3703
  %3718 = vmatpush.xpose.msra.mxu0 %v3700
  %3719 = vmatpush.xpose.msra.mxu0 %v3697
  %3720 = vmatpush.xpose.msra.mxu0 %v3694
  %3721 = vmatpush.xpose.msra.mxu0 %v3691
  %3722 = vmatpush.xpose.msra.mxu0 %v3688
  %3723 = vmatpush.xpose.msra.mxu0 %v3685
  %3724 = vmatpush.xpose.msra.mxu0 %v3682
  %3725 = vmatpush.xpose.msra.mxu0 %v3679
  %3726 = vmatpush.xpose.msra.mxu0 %v3676
  %3727 = vmatpush.xpose.msra.mxu0 %v3673
  %3728 = vmatpush.xpose.msra.mxu0 %v3670
  %3729 = vmatpush.xpose.msra.mxu0 %v3667
  %3730 = vmatmul.f32.gmra.mxu0 %v3661
  %v3731 = vpop.f32.mrf.mxu0
  %v3732 = vadd.f32 %v3658, %v3731
  %3733 = vmatmul.f32.gmra.mxu0 %v3664
  %v3734 = vpop.f32.mrf.mxu0
  %v3735 = vadd.f32 %v3658, %v3734
  %3736 = vdwg.mxu0
  %v3737 = vmul.f32 %v3732, 1.702
  %v3738 = vmul.f32 %v3735, 1.702
  %v3739 = vxor.u32 %v3737, 2147483648
  %v3740 = vxor.u32 %v3738, 2147483648
  %v3741 = vmul.f32 %v3739, 1.442695
  %v3742 = vpow.pop %v3741
  %v3743 = vmul.f32 %v3740, 1.442695
  %v3744 = vpow.pop %v3743
  %v3745 = vadd.f32 %v3742, 1.0
  %v3746 = vadd.f32 %v3744, 1.0
  %v3747 = vrcp.pop %v3745
  %v3748 = vmul.f32 %v3745, %v3747
  %v3749 = vsub.f32 1.0, %v3748
  %v3750 = vmul.f32 %v3747, %v3749
  %v3751 = vadd.f32 %v3747, %v3750
  %vm3752 = vweird.f32 %v3745
  %vm3753 = vweird.f32 %v3747
  %vm3754 = vmor %vm3752, %vm3753
  %v3755 = vsel %vm3754, %v3747, %v3751
  %v3756 = vand.u32 2147483647, %v3745
  %vm3757 = vcmp.eq.f32.partialorder %v3756, 8.507059e+37
  %v3758 = vand.u32 %v3745, 2147483648
  %v3759 = vor.u32 1.1754944e-38, %v3758
  %v3760 = vsel %vm3757, %v3759, %v3755
  %v3761 = vmul.f32 1.0, %v3760
  %v3762 = vrcp.pop %v3746
  %v3763 = vmul.f32 %v3746, %v3762
  %v3764 = vsub.f32 1.0, %v3763
  %v3765 = vmul.f32 %v3762, %v3764
  %v3766 = vadd.f32 %v3762, %v3765
  %vm3767 = vweird.f32 %v3746
  %vm3768 = vweird.f32 %v3762
  %vm3769 = vmor %vm3767, %vm3768
  %v3770 = vsel %vm3769, %v3762, %v3766
  %v3771 = vand.u32 2147483647, %v3746
  %vm3772 = vcmp.eq.f32.partialorder %v3771, 8.507059e+37
  %v3773 = vand.u32 %v3746, 2147483648
  %v3774 = vor.u32 1.1754944e-38, %v3773
  %v3775 = vsel %vm3772, %v3774, %v3770
  %v3776 = vmul.f32 1.0, %v3775
  %v3777 = vmul.f32 %v3732, %v3761
  %v3778 = vmul.f32 %v3735, %v3776
  %s3779 = scalar_lea.vmem %s8, 384
  %v3780 = vld [vmem:[%s3779] sm:$0xff]
  %v3781 = vld [vmem:[%s3779 + $0x8] sm:$0xff]
  %v3782 = vld [vmem:[%s3779 + $0x10] sm:$0xff]
  %v3783 = vld [vmem:[%s3779 + $0x18] sm:$0xff]
  %v3784 = vld [vmem:[%s3779 + $0x20] sm:$0xff]
  %v3785 = vld [vmem:[%s3779 + $0x28] sm:$0xff]
  %v3786 = vld [vmem:[%s3779 + $0x30] sm:$0xff]
  %v3787 = vld [vmem:[%s3779 + $0x38] sm:$0xff]
  %v3788 = vld [vmem:[%s3779 + $0x40] sm:$0xff]
  %v3789 = vld [vmem:[%s3779 + $0x48] sm:$0xff]
  %v3790 = vld [vmem:[%s3779 + $0x50] sm:$0xff]
  %v3791 = vld [vmem:[%s3779 + $0x58] sm:$0xff]
  %v3792 = vld [vmem:[%s3779 + $0x60] sm:$0xff]
  %v3793 = vld [vmem:[%s3779 + $0x68] sm:$0xff]
  %v3794 = vld [vmem:[%s3779 + $0x70] sm:$0xff]
  %v3795 = vld [vmem:[%s3779 + $0x78] sm:$0xff]
  %3796 = vmatpush.msra.mxu0 %v3795
  %3797 = vmatpush.msra.mxu0 %v3794
  %3798 = vmatpush.msra.mxu0 %v3793
  %3799 = vmatpush.msra.mxu0 %v3792
  %3800 = vmatpush.msra.mxu0 %v3791
  %3801 = vmatpush.msra.mxu0 %v3790
  %3802 = vmatpush.msra.mxu0 %v3789
  %3803 = vmatpush.msra.mxu0 %v3788
  %3804 = vmatpush.msra.mxu0 %v3787
  %3805 = vmatpush.msra.mxu0 %v3786
  %3806 = vmatpush.msra.mxu0 %v3785
  %3807 = vmatpush.msra.mxu0 %v3784
  %3808 = vmatpush.msra.mxu0 %v3783
  %3809 = vmatpush.msra.mxu0 %v3782
  %3810 = vmatpush.msra.mxu0 %v3781
  %3811 = vmatpush.msra.mxu0 %v3780
  %3812 = vmatmul.f32.gmra.mxu0 %v3777
  %v3813 = vpop.f32.mrf.mxu0
  %v3814 = vadd.f32 0.0, %v3813
  %3815 = vmatmul.f32.gmra.mxu0 %v3778
  %v3816 = vpop.f32.mrf.mxu0
  %v3817 = vadd.f32 0.0, %v3816
  %3818 = vdwg.mxu0
  %v3819 = vadd.f32 %v3586, %v3814
  %v3820 = vadd.f32 %v3587, %v3817
  %v3821 = vperm.slane %v3177, 0
  %v3822 = vadd.f32 %v3819, %v3821
  %v3823 = vadd.f32 %v3820, %v3821
  %v3824 = vsel %vm2516, %v3822, 0.0
  %3825 = vadd.xlane.f32.xlu0 %v3824
  %v3826 = vpop.xlane.xlu0 %3825
  %v3827 = vsel %vm2516, %v3823, 0.0
  %3828 = vadd.xlane.f32.xlu0 %v3827
  %v3829 = vpop.xlane.xlu0 %3828
  %v3830 = vmul.f32 %v3826, %v2529
  %v3831 = vmul.f32 %v3829, %v2529
  %v3832 = vsub.f32 %v3822, %v3830
  %v3833 = vsub.f32 %v3823, %v3831
  %v3834 = vmul.f32 %v3832, %v3832
  %v3835 = vmul.f32 %v3833, %v3833
  %v3836 = vsel %vm2516, %v3834, 0.0
  %3837 = vadd.xlane.f32.xlu0 %v3836
  %v3838 = vpop.xlane.xlu0 %3837
  %v3839 = vsel %vm2516, %v3835, 0.0
  %3840 = vadd.xlane.f32.xlu0 %v3839
  %v3841 = vpop.xlane.xlu0 %3840
  %v3842 = vmul.f32 %v3838, %v2529
  %v3843 = vmul.f32 %v3841, %v2529
  %v3844 = vadd.f32 %v3842, 1e-05
  %v3845 = vadd.f32 %v3843, 1e-05
  %v3846 = vrsqrt.pop %v3844
  %v3847 = vmul.f32 %v3846, %v3844
  %v3848 = vmul.f32 %v3847, %v3846
  %v3849 = vmul.f32 0.5, %v3848
  %v3850 = vsub.f32 1.5, %v3849
  %v3851 = vmul.f32 %v3846, %v3850
  %vm3852 = vweird.f32 %v3844
  %vm3853 = vweird.f32 %v3846
  %vm3854 = vmor %vm3852, %vm3853
  %v3855 = vsel %vm3854, %v3846, %v3851
  %v3856 = vrsqrt.pop %v3845
  %v3857 = vmul.f32 %v3856, %v3845
  %v3858 = vmul.f32 %v3857, %v3856
  %v3859 = vmul.f32 0.5, %v3858
  %v3860 = vsub.f32 1.5, %v3859
  %v3861 = vmul.f32 %v3856, %v3860
  %vm3862 = vweird.f32 %v3845
  %vm3863 = vweird.f32 %v3856
  %vm3864 = vmor %vm3862, %vm3863
  %v3865 = vsel %vm3864, %v3856, %v3861
  %v3866 = vmul.f32 %v3832, %v3855
  %v3867 = vmul.f32 %v3833, %v3865
  %v3868 = vperm.slane %v2436, 0
  %v3869 = vmul.f32 %v3866, %v3868
  %v3870 = vmul.f32 %v3867, %v3868
  %v3871 = vperm.slane %v2437, 0
  %v3872 = vadd.f32 %v3869, %v3871
  %v3873 = vadd.f32 %v3870, %v3871
  %v3875 = vrot.slane %v3873, 3
  %vm3877 = vcmask 1044480
  %v3878 = vsel %vm3877, %v2421, %v3875
  %v3879 = vsel %vm3877, %v3875, %v2421
  %3880 = vst.msk [vmem:[%s12] sm:$0xff] %vm2516, %v3872
  %3881 = vst.msk [vmem:[%s12 + $0x8] sm:$0xff] %vm2516, %v3878
  %3882 = vst.msk [vmem:[%s12 + $0x10] sm:$0xff] %vm2516, %v3879
  %vm3883 = vcmask 254976
  %3884 = vst.msk [vmem:[%s12 + $0x18] sm:$0x3] %vm3883, %v2424
  // Predicated region
  $region50: #{fine_tuned_clip_forward.1} parent=0 // pred_check
    _
  $region51: #{fine_tuned_clip_forward.1} parent=0 // pred_check_branch
    %3886 = sbr.rel (0) target = $region53
  $region52: #{fine_tuned_clip_forward.1} parent=0 // pred_region
    _
  $region53: #{fine_tuned_clip_forward.1} parent=0 // pred_fallthru
    _
  // Predicated region
  $region54: #{fine_tuned_clip_forward.1} parent=0 // pred_check
    _
  $region55: #{fine_tuned_clip_forward.1} parent=0 // pred_check_branch
    %3888 = sbr.rel (0) target = $region57
  $region56: #{fine_tuned_clip_forward.1} parent=0 // pred_region
    _
  $region57: #{fine_tuned_clip_forward.1} parent=0 // pred_fallthru
    _

</llo_original>
